<compile_context>
chip_gen: v6e
topology: v6e:2x2x1
jax: 0.10.0
libtpu: 0.0.40
codegen_flags: <defaults>
</compile_context>

<pallas_src>
import functools
import math

import jax
import jax.numpy as jnp
from jax import lax
from jax.experimental import pallas as pl
from jax.experimental.pallas import tpu as pltpu


# ----------------------------------------------------------------------------
# Fused bottleneck kernel (one (batch, row-tile) output block per grid step)
#   xm_ref : (1, TH, Wo+2, Cin)   main rows of the zero-padded, bf16 input
#   xh1/xh2: (1, 1,  Wo+2, Cin)   2 halo rows below the tile
#   w1/w2/w3 (+w4): bf16 conv weights with BN scale folded in
#   b1/b2/b3 (+b4): (1, C) f32 BN biases
# ----------------------------------------------------------------------------
def _bottleneck_kernel(xm_ref, xh1_ref, xh2_ref, w1_ref, w2_ref, w3_ref,
                       b1_ref, b2_ref, b3_ref, *rest, downsample):
    if downsample:
        w4_ref, b4_ref, o_ref = rest
    else:
        (o_ref,) = rest

    TH = xm_ref.shape[1]
    Wp = xm_ref.shape[2]
    Wo = Wp - 2
    cin = xm_ref.shape[3]
    cb = w1_ref.shape[1]
    cout = w3_ref.shape[1]

    # (TH+2, Wp, Cin) window: main rows + 2 halo rows (all already in VMEM).
    x_win = jnp.concatenate([xm_ref[0], xh1_ref[0], xh2_ref[0]], axis=0)

    # ---- conv1 (1x1, BN scale folded) + bias + relu, over the full halo window ----
    a = jnp.dot(x_win.reshape((TH + 2) * Wp, cin), w1_ref[...],
                preferred_element_type=jnp.float32)
    a = jnp.maximum(a + b1_ref[...], 0.0).reshape(TH + 2, Wp, cb)

    # The window includes the spatial zero-padding ring of the ORIGINAL conv2 input;
    # conv1(0)+bias passed through relu is not 0, so zero those positions explicitly.
    ho_total = pl.num_programs(1) * TH
    row_ids = pl.program_id(1) * TH + lax.broadcasted_iota(
        jnp.int32, (TH + 2, Wp, cb), 0)
    col_ids = lax.broadcasted_iota(jnp.int32, (TH + 2, Wp, cb), 1)
    valid = ((row_ids >= 1) & (row_ids <= ho_total) &
             (col_ids >= 1) & (col_ids <= Wo))
    a = jnp.where(valid, a, 0.0).astype(jnp.bfloat16)

    # ---- conv2 (3x3, stride 1, pad 1) + bias + relu ----
    # Only 3 W-shifted views (hoisted over kh); kh offsets are free major-dim slices.
    acc = jnp.zeros((TH * Wo, cb), jnp.float32)
    for kw in range(3):
        aw = a[:, kw:kw + Wo, :]                       # (TH+2, Wo, Cb)
        for kh in range(3):
            slab = aw[kh:kh + TH].reshape(TH * Wo, cb)
            acc = acc + jnp.dot(slab, w2_ref[kh, kw],
                                preferred_element_type=jnp.float32)
    y2 = jnp.maximum(acc + b2_ref[...], 0.0).astype(jnp.bfloat16)

    # ---- conv3 (1x1) + bias ----
    z = jnp.dot(y2, w3_ref[...], preferred_element_type=jnp.float32) + b3_ref[...]

    # ---- identity / downsample branch (reuses the already-loaded x window) ----
    x_int = x_win[1:TH + 1, 1:Wo + 1, :].reshape(TH * Wo, cin)
    if downsample:
        idn = (jnp.dot(x_int, w4_ref[...], preferred_element_type=jnp.float32)
               + b4_ref[...])
    else:
        idn = x_int.astype(jnp.float32)   # Cin == Cout in this branch

    out = jnp.maximum(z + idn, 0.0)
    o_ref[...] = out.reshape(1, TH, Wo, cout).astype(o_ref.dtype)


# ----------------------------------------------------------------------------
# FrozenBatchNorm folding + parameter construction
# ----------------------------------------------------------------------------
def _scale_bias(bn):
    """Exactly FrozenBatchNorm2d.get_scale_bias (note: no eps in the reference)."""
    weight, bias, mean, var = bn
    scale = weight * lax.rsqrt(var)
    return scale, bias - mean * scale


def kaiming_uniform(key, shape, fan_in, a=1.0):
    gain = math.sqrt(2.0 / (1.0 + a * a))
    bound = gain * math.sqrt(3.0 / fan_in)
    return jax.random.uniform(key, shape, jnp.float32, -bound, bound)


def make_bottleneck_params(key, in_channels, bottleneck_channels, out_channels,
                           stride=1):
    ks = jax.random.split(key, 8)

    def frozen_bn(k, n):
        # Randomized (instead of the all-ones/zeros __init__ defaults) so the
        # scale/bias folding is actually exercised by the correctness check.
        kw, kb, km, kv = jax.random.split(k, 4)
        return (jax.random.uniform(kw, (n,), jnp.float32, 0.8, 1.2),
                0.1 * jax.random.normal(kb, (n,), jnp.float32),
                0.1 * jax.random.normal(km, (n,), jnp.float32),
                jax.random.uniform(kv, (n,), jnp.float32, 0.8, 1.2))

    params = {
        # 1x1 weights stored as [Cin, Cout]; 3x3 as HWIO [3, 3, Cin, Cout].
        "w1": kaiming_uniform(ks[0], (in_channels, bottleneck_channels),
                              fan_in=in_channels),
        "w2": kaiming_uniform(ks[1], (3, 3, bottleneck_channels,
                                      bottleneck_channels),
                              fan_in=bottleneck_channels * 9),
        "w3": kaiming_uniform(ks[2], (bottleneck_channels, out_channels),
                              fan_in=bottleneck_channels),
        "bn1": frozen_bn(ks[3], bottleneck_channels),
        "bn2": frozen_bn(ks[4], bottleneck_channels),
        "bn3": frozen_bn(ks[5], out_channels),
        "stride": stride,
        "downsample": (stride != 1 or in_channels != out_channels),
    }
    if params["downsample"]:
        params["w4"] = kaiming_uniform(ks[6], (in_channels, out_channels),
                                       fan_in=in_channels)
        params["bn4"] = frozen_bn(ks[7], out_channels)
    return params


# ----------------------------------------------------------------------------
# Wrapper: builds specs and calls the single fused kernel
# ----------------------------------------------------------------------------
def _pick_row_tile(ho, cap=8):
    for th in range(min(cap, ho), 0, -1):
        if ho % th == 0:
            return th
    return 1


def bottleneck_forward_nhwc(x, params):
    """x: [N, H, W, Cin] float32 -> [N, Ho, Wo, Cout] float32."""
    s = params["stride"]
    if s != 1:
        # TODO(synk): fold the stride-s spatial subsample into the kernel via
        # strided loads / strided DMA instead of a wrapper-side copy.
        x = x[:, ::s, ::s, :]
    n, ho, wo, cin = x.shape
    cb = params["w1"].shape[1]
    cout = params["w3"].shape[1]
    out_dtype = x.dtype

    s1, b1 = _scale_bias(params["bn1"])
    s2, b2 = _scale_bias(params["bn2"])
    s3, b3 = _scale_bias(params["bn3"])

    # Fold BN scale into the conv weights; cast weights + activations to bf16.
    w1s = (params["w1"] * s1).astype(jnp.bfloat16)
    w2s = (params["w2"] * s2).astype(jnp.bfloat16)
    w3s = (params["w3"] * s3).astype(jnp.bfloat16)
    b1 = b1.reshape(1, cb).astype(jnp.float32)
    b2 = b2.reshape(1, cb).astype(jnp.float32)
    b3 = b3.reshape(1, cout).astype(jnp.float32)

    x_pad = jnp.pad(x.astype(jnp.bfloat16), ((0, 0), (1, 1), (1, 1), (0, 0)))
    th = _pick_row_tile(ho)
    t_steps = ho // th
    wp = wo + 2

    in_specs = [
        # main TH rows of this tile
        pl.BlockSpec((1, th, wp, cin), lambda i, t: (i, t, 0, 0)),
        # two halo rows just below the tile (same padded array, 1-row blocks)
        pl.BlockSpec((1, 1, wp, cin), lambda i, t: (i, (t + 1) * th, 0, 0)),
        pl.BlockSpec((1, 1, wp, cin), lambda i, t: (i, (t + 1) * th + 1, 0, 0)),
        pl.BlockSpec((cin, cb), lambda i, t: (0, 0)),
        pl.BlockSpec((3, 3, cb, cb), lambda i, t: (0, 0, 0, 0)),
        pl.BlockSpec((cb, cout), lambda i, t: (0, 0)),
        pl.BlockSpec((1, cb), lambda i, t: (0, 0)),
        pl.BlockSpec((1, cb), lambda i, t: (0, 0)),
        pl.BlockSpec((1, cout), lambda i, t: (0, 0)),
    ]
    args = [x_pad, x_pad, x_pad, w1s, w2s, w3s, b1, b2, b3]

    if params["downsample"]:
        s4, b4 = _scale_bias(params["bn4"])
        w4s = (params["w4"] * s4).astype(jnp.bfloat16)
        in_specs += [pl.BlockSpec((cin, cout), lambda i, t: (0, 0)),
                     pl.BlockSpec((1, cout), lambda i, t: (0, 0))]
        args += [w4s, b4.reshape(1, cout).astype(jnp.float32)]

    kernel = functools.partial(_bottleneck_kernel,
                               downsample=params["downsample"])
    out = pl.pallas_call(
        kernel,
        out_shape=jax.ShapeDtypeStruct((n, ho, wo, cout), out_dtype),
        grid_spec=pltpu.PrefetchScalarGridSpec(
            num_scalar_prefetch=0,
            grid=(n, t_steps),
            in_specs=in_specs,
            out_specs=pl.BlockSpec((1, th, wo, cout), lambda i, t: (i, t, 0, 0)),
        ),
        compiler_params=pltpu.CompilerParams(
            dimension_semantics=("parallel", "parallel")),
    )(*args)
    return out


def bottleneck_forward_nchw(x_nchw, params):
    """PyTorch-compatible entry point (NCHW in / NCHW out)."""
    x = jnp.transpose(x_nchw, (0, 2, 3, 1))
    y = bottleneck_forward_nhwc(x, params)
    return jnp.transpose(y, (0, 3, 1, 2))


# ----------------------------------------------------------------------------
# Pure-JAX f32 reference (lax conv) for correctness checking
# ----------------------------------------------------------------------------
def _ref_forward_nhwc(x, params):
    dn = ("NHWC", "HWIO", "NHWC")
    s = params["stride"]

    def conv1x1(inp, w2d, stride):
        w = w2d.reshape(1, 1, w2d.shape[0], w2d.shape[1])
        return lax.conv_general_dilated(inp, w, (stride, stride), "VALID",
                                        dimension_numbers=dn)

    def bn(inp, bnbuf):
        sc, bi = _scale_bias(bnbuf)
        return inp * sc.reshape(1, 1, 1, -1) + bi.reshape(1, 1, 1, -1)

    out = jnp.maximum(bn(conv1x1(x, params["w1"], s), params["bn1"]), 0.0)
    out = lax.conv_general_dilated(out, params["w2"], (1, 1),
                                   ((1, 1), (1, 1)), dimension_numbers=dn)
    out = jnp.maximum(bn(out, params["bn2"]), 0.0)
    out = bn(conv1x1(out, params["w3"], 1), params["bn3"])
    if params["downsample"]:
        identity = bn(conv1x1(x, params["w4"], s), params["bn4"])
    else:
        identity = x[:, ::s, ::s, :]
    return jnp.maximum(out + identity, 0.0)


if __name__ == "__main__":
    key = jax.random.PRNGKey(0)

    # (N, Cin, Cb, Cout, H, W, stride)
    configs = [
        (2, 8, 4, 16, 16, 16, 1),    # downsample via channel change, 2 row tiles
        (2, 16, 8, 16, 16, 16, 1),   # pure identity residual branch
        (2, 8, 4, 16, 16, 16, 2),    # stride-2 downsample
    ]

    for i, (N, Cin, Cb, Cout, H, W, stride) in enumerate(configs):
        k_x, k_p = jax.random.split(jax.random.fold_in(key, i))
        x_nchw = jax.random.normal(k_x, (N, Cin, H, W), jnp.float32)
        params = make_bottleneck_params(k_p, Cin, Cb, Cout, stride=stride)

        y = jax.block_until_ready(bottleneck_forward_nchw(x_nchw, params))

        x_nhwc = jnp.transpose(x_nchw, (0, 2, 3, 1))
        y_ref = jnp.transpose(_ref_forward_nhwc(x_nhwc, params), (0, 3, 1, 2))

        assert y.shape == (N, Cout, H // stride, W // stride), (y.shape,)
        max_err = float(jnp.max(jnp.abs(y - y_ref)))
        mean_err = float(jnp.mean(jnp.abs(y - y_ref)))
        # bf16 activations/weights with f32 accumulation vs. a pure-f32 reference.
        assert max_err < 0.25 and mean_err < 0.02, (i, max_err, mean_err)

    print("KERNEL_OK")
</pallas_src>

<mosaic_0001>
module attributes {stable_mosaic.version = 11 : i64} {
  func.func @_bottleneck_kernel(%arg0: i32, %arg1: i32, %arg2: memref<1x8x18x8xbf16, #tpu.memory_space<vmem>>, %arg3: memref<1x1x18x8xbf16, #tpu.memory_space<vmem>>, %arg4: memref<1x1x18x8xbf16, #tpu.memory_space<vmem>>, %arg5: memref<8x4xbf16, #tpu.memory_space<vmem>>, %arg6: memref<3x3x4x4xbf16, #tpu.memory_space<vmem>>, %arg7: memref<4x16xbf16, #tpu.memory_space<vmem>>, %arg8: memref<1x4xf32, #tpu.memory_space<vmem>>, %arg9: memref<1x4xf32, #tpu.memory_space<vmem>>, %arg10: memref<1x16xf32, #tpu.memory_space<vmem>>, %arg11: memref<8x16xbf16, #tpu.memory_space<vmem>>, %arg12: memref<1x16xf32, #tpu.memory_space<vmem>>, %arg13: memref<1x8x16x16xf32, #tpu.memory_space<vmem>>) attributes {dimension_semantics = [#tpu.dimension_semantics<parallel>, #tpu.dimension_semantics<parallel>], iteration_bounds = array<i64: 2, 2>, scalar_prefetch = 0 : i64, scratch_operands = 0 : i64, tpu.core_type = #tpu.core_type<tc>, window_params = [{transform_indices = @transform_0, window_bounds = array<i64: 1, 8, 18, 8>}, {transform_indices = @transform_1, window_bounds = array<i64: 1, 1, 18, 8>}, {transform_indices = @transform_2, window_bounds = array<i64: 1, 1, 18, 8>}, {pipeline_mode = #tpu.pipeline_mode<synchronous>, transform_indices = @transform_3, window_bounds = array<i64: 8, 4>}, {pipeline_mode = #tpu.pipeline_mode<synchronous>, transform_indices = @transform_4, window_bounds = array<i64: 3, 3, 4, 4>}, {pipeline_mode = #tpu.pipeline_mode<synchronous>, transform_indices = @transform_5, window_bounds = array<i64: 4, 16>}, {pipeline_mode = #tpu.pipeline_mode<synchronous>, transform_indices = @transform_6, window_bounds = array<i64: 1, 4>}, {pipeline_mode = #tpu.pipeline_mode<synchronous>, transform_indices = @transform_7, window_bounds = array<i64: 1, 4>}, {pipeline_mode = #tpu.pipeline_mode<synchronous>, transform_indices = @transform_8, window_bounds = array<i64: 1, 16>}, {pipeline_mode = #tpu.pipeline_mode<synchronous>, transform_indices = @transform_9, window_bounds = array<i64: 8, 16>}, {pipeline_mode = #tpu.pipeline_mode<synchronous>, transform_indices = @transform_10, window_bounds = array<i64: 1, 16>}, {transform_indices = @transform_11, window_bounds = array<i64: 1, 8, 16, 16>}]} {
    %c0 = arith.constant 0 : index
    %c0_0 = arith.constant 0 : index
    %c0_1 = arith.constant 0 : index
    %c0_2 = arith.constant 0 : index
    %0 = vector.load %arg2[%c0, %c0_0, %c0_1, %c0_2] : memref<1x8x18x8xbf16, #tpu.memory_space<vmem>>, vector<1x8x18x8xbf16>
    %1 = vector.shape_cast %0 : vector<1x8x18x8xbf16> to vector<8x18x8xbf16>
    %c0_3 = arith.constant 0 : index
    %c0_4 = arith.constant 0 : index
    %c0_5 = arith.constant 0 : index
    %c0_6 = arith.constant 0 : index
    %2 = vector.load %arg3[%c0_3, %c0_4, %c0_5, %c0_6] : memref<1x1x18x8xbf16, #tpu.memory_space<vmem>>, vector<1x1x18x8xbf16>
    %3 = vector.shape_cast %2 : vector<1x1x18x8xbf16> to vector<1x18x8xbf16>
    %c0_7 = arith.constant 0 : index
    %c0_8 = arith.constant 0 : index
    %c0_9 = arith.constant 0 : index
    %c0_10 = arith.constant 0 : index
    %4 = vector.load %arg4[%c0_7, %c0_8, %c0_9, %c0_10] : memref<1x1x18x8xbf16, #tpu.memory_space<vmem>>, vector<1x1x18x8xbf16>
    %5 = vector.shape_cast %4 : vector<1x1x18x8xbf16> to vector<1x18x8xbf16>
    %6 = tpu.concatenate %1, %3, %5 in 0 : vector<8x18x8xbf16>, vector<1x18x8xbf16>, vector<1x18x8xbf16> -> vector<10x18x8xbf16>
    %7 = vector.shape_cast %6 : vector<10x18x8xbf16> to vector<180x8xbf16>
    %c0_11 = arith.constant 0 : index
    %c0_12 = arith.constant 0 : index
    %8 = vector.load %arg5[%c0_11, %c0_12] : memref<8x4xbf16, #tpu.memory_space<vmem>>, vector<8x4xbf16>
    %cst = arith.constant dense<0.000000e+00> : vector<180x4xf32>
    %9 = tpu.matmul %7, %8, %cst {dimension_numbers = #tpu.dot_dimension_numbers<[1], [0], [0], [1], [0, 0, 1, 1], [], []>} : vector<180x8xbf16>, vector<8x4xbf16>, vector<180x4xf32> -> vector<180x4xf32>
    %c0_13 = arith.constant 0 : index
    %c0_14 = arith.constant 0 : index
    %10 = vector.load %arg8[%c0_13, %c0_14] : memref<1x4xf32, #tpu.memory_space<vmem>>, vector<1x4xf32>
    %11 = vector.broadcast %10 : vector<1x4xf32> to vector<180x4xf32>
    %12 = arith.addf %9, %11 : vector<180x4xf32>
    %cst_15 = arith.constant 0.000000e+00 : f32
    %13 = vector.broadcast %cst_15 : f32 to vector<180x4xf32>
    %14 = arith.maximumf %12, %13 : vector<180x4xf32>
    %15 = vector.shape_cast %14 : vector<180x4xf32> to vector<10x18x4xf32>
    %c8_i32 = arith.constant 8 : i32
    %16 = arith.muli %arg1, %c8_i32 : i32
    %17 = tpu.iota {dimensions = array<i32: 0>} : vector<10x18x4xi32>
    %18 = vector.broadcast %16 : i32 to vector<10x18x4xi32>
    %19 = arith.addi %18, %17 : vector<10x18x4xi32>
    %20 = tpu.iota {dimensions = array<i32: 1>} : vector<10x18x4xi32>
    %c1_i32 = arith.constant 1 : i32
    %21 = vector.broadcast %c1_i32 : i32 to vector<10x18x4xi32>
    %22 = arith.cmpi sge, %19, %21 : vector<10x18x4xi32>
    %c16_i32 = arith.constant 16 : i32
    %23 = vector.broadcast %c16_i32 : i32 to vector<10x18x4xi32>
    %24 = arith.cmpi sle, %19, %23 : vector<10x18x4xi32>
    %25 = arith.andi %22, %24 : vector<10x18x4xi1>
    %c1_i32_16 = arith.constant 1 : i32
    %26 = vector.broadcast %c1_i32_16 : i32 to vector<10x18x4xi32>
    %27 = arith.cmpi sge, %20, %26 : vector<10x18x4xi32>
    %28 = arith.andi %25, %27 : vector<10x18x4xi1>
    %c16_i32_17 = arith.constant 16 : i32
    %29 = vector.broadcast %c16_i32_17 : i32 to vector<10x18x4xi32>
    %30 = arith.cmpi sle, %20, %29 : vector<10x18x4xi32>
    %31 = arith.andi %28, %30 : vector<10x18x4xi1>
    %cst_18 = arith.constant 0.000000e+00 : f32
    %32 = vector.broadcast %cst_18 : f32 to vector<10x18x4xf32>
    %33 = arith.select %31, %15, %32 : vector<10x18x4xi1>, vector<10x18x4xf32>
    %34 = arith.truncf %33 : vector<10x18x4xf32> to vector<10x18x4xbf16>
    %cst_19 = arith.constant 0.000000e+00 : f32
    %35 = vector.broadcast %cst_19 : f32 to vector<128x4xf32>
    %36 = vector.extract_strided_slice %34 {offsets = [0, 0, 0], sizes = [10, 16, 4], strides = [1, 1, 1]} : vector<10x18x4xbf16> to vector<10x16x4xbf16>
    %37 = vector.extract_strided_slice %36 {offsets = [0, 0, 0], sizes = [8, 16, 4], strides = [1, 1, 1]} : vector<10x16x4xbf16> to vector<8x16x4xbf16>
    %38 = vector.shape_cast %37 : vector<8x16x4xbf16> to vector<128x4xbf16>
    %c0_20 = arith.constant 0 : index
    %c0_21 = arith.constant 0 : index
    %c0_22 = arith.constant 0 : index
    %c0_23 = arith.constant 0 : index
    %39 = vector.load %arg6[%c0_20, %c0_21, %c0_22, %c0_23] : memref<3x3x4x4xbf16, #tpu.memory_space<vmem>>, vector<1x1x4x4xbf16>
    %40 = vector.shape_cast %39 : vector<1x1x4x4xbf16> to vector<4x4xbf16>
    %cst_24 = arith.constant dense<0.000000e+00> : vector<128x4xf32>
    %41 = tpu.matmul %38, %40, %cst_24 {dimension_numbers = #tpu.dot_dimension_numbers<[1], [0], [0], [1], [0, 0, 1, 1], [], []>} : vector<128x4xbf16>, vector<4x4xbf16>, vector<128x4xf32> -> vector<128x4xf32>
    %42 = arith.addf %35, %41 : vector<128x4xf32>
    %43 = vector.extract_strided_slice %36 {offsets = [1, 0, 0], sizes = [8, 16, 4], strides = [1, 1, 1]} : vector<10x16x4xbf16> to vector<8x16x4xbf16>
    %44 = vector.shape_cast %43 : vector<8x16x4xbf16> to vector<128x4xbf16>
    %c1 = arith.constant 1 : index
    %c0_25 = arith.constant 0 : index
    %c0_26 = arith.constant 0 : index
    %c0_27 = arith.constant 0 : index
    %45 = vector.load %arg6[%c1, %c0_25, %c0_26, %c0_27] : memref<3x3x4x4xbf16, #tpu.memory_space<vmem>>, vector<1x1x4x4xbf16>
    %46 = vector.shape_cast %45 : vector<1x1x4x4xbf16> to vector<4x4xbf16>
    %cst_28 = arith.constant dense<0.000000e+00> : vector<128x4xf32>
    %47 = tpu.matmul %44, %46, %cst_28 {dimension_numbers = #tpu.dot_dimension_numbers<[1], [0], [0], [1], [0, 0, 1, 1], [], []>} : vector<128x4xbf16>, vector<4x4xbf16>, vector<128x4xf32> -> vector<128x4xf32>
    %48 = arith.addf %42, %47 : vector<128x4xf32>
    %49 = vector.extract_strided_slice %36 {offsets = [2, 0, 0], sizes = [8, 16, 4], strides = [1, 1, 1]} : vector<10x16x4xbf16> to vector<8x16x4xbf16>
    %50 = vector.shape_cast %49 : vector<8x16x4xbf16> to vector<128x4xbf16>
    %c2 = arith.constant 2 : index
    %c0_29 = arith.constant 0 : index
    %c0_30 = arith.constant 0 : index
    %c0_31 = arith.constant 0 : index
    %51 = vector.load %arg6[%c2, %c0_29, %c0_30, %c0_31] : memref<3x3x4x4xbf16, #tpu.memory_space<vmem>>, vector<1x1x4x4xbf16>
    %52 = vector.shape_cast %51 : vector<1x1x4x4xbf16> to vector<4x4xbf16>
    %cst_32 = arith.constant dense<0.000000e+00> : vector<128x4xf32>
    %53 = tpu.matmul %50, %52, %cst_32 {dimension_numbers = #tpu.dot_dimension_numbers<[1], [0], [0], [1], [0, 0, 1, 1], [], []>} : vector<128x4xbf16>, vector<4x4xbf16>, vector<128x4xf32> -> vector<128x4xf32>
    %54 = arith.addf %48, %53 : vector<128x4xf32>
    %55 = vector.extract_strided_slice %34 {offsets = [0, 1, 0], sizes = [10, 16, 4], strides = [1, 1, 1]} : vector<10x18x4xbf16> to vector<10x16x4xbf16>
    %56 = vector.extract_strided_slice %55 {offsets = [0, 0, 0], sizes = [8, 16, 4], strides = [1, 1, 1]} : vector<10x16x4xbf16> to vector<8x16x4xbf16>
    %57 = vector.shape_cast %56 : vector<8x16x4xbf16> to vector<128x4xbf16>
    %c0_33 = arith.constant 0 : index
    %c1_34 = arith.constant 1 : index
    %c0_35 = arith.constant 0 : index
    %c0_36 = arith.constant 0 : index
    %58 = vector.load %arg6[%c0_33, %c1_34, %c0_35, %c0_36] : memref<3x3x4x4xbf16, #tpu.memory_space<vmem>>, vector<1x1x4x4xbf16>
    %59 = vector.shape_cast %58 : vector<1x1x4x4xbf16> to vector<4x4xbf16>
    %cst_37 = arith.constant dense<0.000000e+00> : vector<128x4xf32>
    %60 = tpu.matmul %57, %59, %cst_37 {dimension_numbers = #tpu.dot_dimension_numbers<[1], [0], [0], [1], [0, 0, 1, 1], [], []>} : vector<128x4xbf16>, vector<4x4xbf16>, vector<128x4xf32> -> vector<128x4xf32>
    %61 = arith.addf %54, %60 : vector<128x4xf32>
    %62 = vector.extract_strided_slice %55 {offsets = [1, 0, 0], sizes = [8, 16, 4], strides = [1, 1, 1]} : vector<10x16x4xbf16> to vector<8x16x4xbf16>
    %63 = vector.shape_cast %62 : vector<8x16x4xbf16> to vector<128x4xbf16>
    %c1_38 = arith.constant 1 : index
    %c1_39 = arith.constant 1 : index
    %c0_40 = arith.constant 0 : index
    %c0_41 = arith.constant 0 : index
    %64 = vector.load %arg6[%c1_38, %c1_39, %c0_40, %c0_41] : memref<3x3x4x4xbf16, #tpu.memory_space<vmem>>, vector<1x1x4x4xbf16>
    %65 = vector.shape_cast %64 : vector<1x1x4x4xbf16> to vector<4x4xbf16>
    %cst_42 = arith.constant dense<0.000000e+00> : vector<128x4xf32>
    %66 = tpu.matmul %63, %65, %cst_42 {dimension_numbers = #tpu.dot_dimension_numbers<[1], [0], [0], [1], [0, 0, 1, 1], [], []>} : vector<128x4xbf16>, vector<4x4xbf16>, vector<128x4xf32> -> vector<128x4xf32>
    %67 = arith.addf %61, %66 : vector<128x4xf32>
    %68 = vector.extract_strided_slice %55 {offsets = [2, 0, 0], sizes = [8, 16, 4], strides = [1, 1, 1]} : vector<10x16x4xbf16> to vector<8x16x4xbf16>
    %69 = vector.shape_cast %68 : vector<8x16x4xbf16> to vector<128x4xbf16>
    %c2_43 = arith.constant 2 : index
    %c1_44 = arith.constant 1 : index
    %c0_45 = arith.constant 0 : index
    %c0_46 = arith.constant 0 : index
    %70 = vector.load %arg6[%c2_43, %c1_44, %c0_45, %c0_46] : memref<3x3x4x4xbf16, #tpu.memory_space<vmem>>, vector<1x1x4x4xbf16>
    %71 = vector.shape_cast %70 : vector<1x1x4x4xbf16> to vector<4x4xbf16>
    %cst_47 = arith.constant dense<0.000000e+00> : vector<128x4xf32>
    %72 = tpu.matmul %69, %71, %cst_47 {dimension_numbers = #tpu.dot_dimension_numbers<[1], [0], [0], [1], [0, 0, 1, 1], [], []>} : vector<128x4xbf16>, vector<4x4xbf16>, vector<128x4xf32> -> vector<128x4xf32>
    %73 = arith.addf %67, %72 : vector<128x4xf32>
    %74 = vector.extract_strided_slice %34 {offsets = [0, 2, 0], sizes = [10, 16, 4], strides = [1, 1, 1]} : vector<10x18x4xbf16> to vector<10x16x4xbf16>
    %75 = vector.extract_strided_slice %74 {offsets = [0, 0, 0], sizes = [8, 16, 4], strides = [1, 1, 1]} : vector<10x16x4xbf16> to vector<8x16x4xbf16>
    %76 = vector.shape_cast %75 : vector<8x16x4xbf16> to vector<128x4xbf16>
    %c0_48 = arith.constant 0 : index
    %c2_49 = arith.constant 2 : index
    %c0_50 = arith.constant 0 : index
    %c0_51 = arith.constant 0 : index
    %77 = vector.load %arg6[%c0_48, %c2_49, %c0_50, %c0_51] : memref<3x3x4x4xbf16, #tpu.memory_space<vmem>>, vector<1x1x4x4xbf16>
    %78 = vector.shape_cast %77 : vector<1x1x4x4xbf16> to vector<4x4xbf16>
    %cst_52 = arith.constant dense<0.000000e+00> : vector<128x4xf32>
    %79 = tpu.matmul %76, %78, %cst_52 {dimension_numbers = #tpu.dot_dimension_numbers<[1], [0], [0], [1], [0, 0, 1, 1], [], []>} : vector<128x4xbf16>, vector<4x4xbf16>, vector<128x4xf32> -> vector<128x4xf32>
    %80 = arith.addf %73, %79 : vector<128x4xf32>
    %81 = vector.extract_strided_slice %74 {offsets = [1, 0, 0], sizes = [8, 16, 4], strides = [1, 1, 1]} : vector<10x16x4xbf16> to vector<8x16x4xbf16>
    %82 = vector.shape_cast %81 : vector<8x16x4xbf16> to vector<128x4xbf16>
    %c1_53 = arith.constant 1 : index
    %c2_54 = arith.constant 2 : index
    %c0_55 = arith.constant 0 : index
    %c0_56 = arith.constant 0 : index
    %83 = vector.load %arg6[%c1_53, %c2_54, %c0_55, %c0_56] : memref<3x3x4x4xbf16, #tpu.memory_space<vmem>>, vector<1x1x4x4xbf16>
    %84 = vector.shape_cast %83 : vector<1x1x4x4xbf16> to vector<4x4xbf16>
    %cst_57 = arith.constant dense<0.000000e+00> : vector<128x4xf32>
    %85 = tpu.matmul %82, %84, %cst_57 {dimension_numbers = #tpu.dot_dimension_numbers<[1], [0], [0], [1], [0, 0, 1, 1], [], []>} : vector<128x4xbf16>, vector<4x4xbf16>, vector<128x4xf32> -> vector<128x4xf32>
    %86 = arith.addf %80, %85 : vector<128x4xf32>
    %87 = vector.extract_strided_slice %74 {offsets = [2, 0, 0], sizes = [8, 16, 4], strides = [1, 1, 1]} : vector<10x16x4xbf16> to vector<8x16x4xbf16>
    %88 = vector.shape_cast %87 : vector<8x16x4xbf16> to vector<128x4xbf16>
    %c2_58 = arith.constant 2 : index
    %c2_59 = arith.constant 2 : index
    %c0_60 = arith.constant 0 : index
    %c0_61 = arith.constant 0 : index
    %89 = vector.load %arg6[%c2_58, %c2_59, %c0_60, %c0_61] : memref<3x3x4x4xbf16, #tpu.memory_space<vmem>>, vector<1x1x4x4xbf16>
    %90 = vector.shape_cast %89 : vector<1x1x4x4xbf16> to vector<4x4xbf16>
    %cst_62 = arith.constant dense<0.000000e+00> : vector<128x4xf32>
    %91 = tpu.matmul %88, %90, %cst_62 {dimension_numbers = #tpu.dot_dimension_numbers<[1], [0], [0], [1], [0, 0, 1, 1], [], []>} : vector<128x4xbf16>, vector<4x4xbf16>, vector<128x4xf32> -> vector<128x4xf32>
    %92 = arith.addf %86, %91 : vector<128x4xf32>
    %c0_63 = arith.constant 0 : index
    %c0_64 = arith.constant 0 : index
    %93 = vector.load %arg9[%c0_63, %c0_64] : memref<1x4xf32, #tpu.memory_space<vmem>>, vector<1x4xf32>
    %94 = vector.broadcast %93 : vector<1x4xf32> to vector<128x4xf32>
    %95 = arith.addf %92, %94 : vector<128x4xf32>
    %cst_65 = arith.constant 0.000000e+00 : f32
    %96 = vector.broadcast %cst_65 : f32 to vector<128x4xf32>
    %97 = arith.maximumf %95, %96 : vector<128x4xf32>
    %98 = arith.truncf %97 : vector<128x4xf32> to vector<128x4xbf16>
    %c0_66 = arith.constant 0 : index
    %c0_67 = arith.constant 0 : index
    %99 = vector.load %arg7[%c0_66, %c0_67] : memref<4x16xbf16, #tpu.memory_space<vmem>>, vector<4x16xbf16>
    %cst_68 = arith.constant dense<0.000000e+00> : vector<128x16xf32>
    %100 = tpu.matmul %98, %99, %cst_68 {dimension_numbers = #tpu.dot_dimension_numbers<[1], [0], [0], [1], [0, 0, 1, 1], [], []>} : vector<128x4xbf16>, vector<4x16xbf16>, vector<128x16xf32> -> vector<128x16xf32>
    %c0_69 = arith.constant 0 : index
    %c0_70 = arith.constant 0 : index
    %101 = vector.load %arg10[%c0_69, %c0_70] : memref<1x16xf32, #tpu.memory_space<vmem>>, vector<1x16xf32>
    %102 = vector.broadcast %101 : vector<1x16xf32> to vector<128x16xf32>
    %103 = arith.addf %100, %102 : vector<128x16xf32>
    %104 = vector.extract_strided_slice %6 {offsets = [1, 1, 0], sizes = [8, 16, 8], strides = [1, 1, 1]} : vector<10x18x8xbf16> to vector<8x16x8xbf16>
    %105 = vector.shape_cast %104 : vector<8x16x8xbf16> to vector<128x8xbf16>
    %c0_71 = arith.constant 0 : index
    %c0_72 = arith.constant 0 : index
    %106 = vector.load %arg11[%c0_71, %c0_72] : memref<8x16xbf16, #tpu.memory_space<vmem>>, vector<8x16xbf16>
    %cst_73 = arith.constant dense<0.000000e+00> : vector<128x16xf32>
    %107 = tpu.matmul %105, %106, %cst_73 {dimension_numbers = #tpu.dot_dimension_numbers<[1], [0], [0], [1], [0, 0, 1, 1], [], []>} : vector<128x8xbf16>, vector<8x16xbf16>, vector<128x16xf32> -> vector<128x16xf32>
    %c0_74 = arith.constant 0 : index
    %c0_75 = arith.constant 0 : index
    %108 = vector.load %arg12[%c0_74, %c0_75] : memref<1x16xf32, #tpu.memory_space<vmem>>, vector<1x16xf32>
    %109 = vector.broadcast %108 : vector<1x16xf32> to vector<128x16xf32>
    %110 = arith.addf %107, %109 : vector<128x16xf32>
    %111 = arith.addf %103, %110 : vector<128x16xf32>
    %cst_76 = arith.constant 0.000000e+00 : f32
    %112 = vector.broadcast %cst_76 : f32 to vector<128x16xf32>
    %113 = arith.maximumf %111, %112 : vector<128x16xf32>
    %114 = vector.shape_cast %113 : vector<128x16xf32> to vector<1x8x16x16xf32>
    %c0_77 = arith.constant 0 : index
    %c0_78 = arith.constant 0 : index
    %c0_79 = arith.constant 0 : index
    %c0_80 = arith.constant 0 : index
    %115 = vector.load %arg13[%c0_77, %c0_78, %c0_79, %c0_80] : memref<1x8x16x16xf32, #tpu.memory_space<vmem>>, vector<1x8x16x16xf32>
    tpu.vector_store %arg13[%c0_77, %c0_78, %c0_79, %c0_80], %114 {strides = array<i32>} : memref<1x8x16x16xf32, #tpu.memory_space<vmem>>, vector<1x8x16x16xf32>,
    return
  }
  func.func @transform_0(%arg0: i32, %arg1: i32) -> (i32, i32, i32, i32) {
    %c0_i32 = arith.constant 0 : i32
    %c0_i32_0 = arith.constant 0 : i32
    %c0_i32_1 = arith.constant 0 : i32
    return %arg0, %arg1, %c0_i32, %c0_i32_0 : i32, i32, i32, i32
  }
  func.func @transform_1(%arg0: i32, %arg1: i32) -> (i32, i32, i32, i32) {
    %c1_i32 = arith.constant 1 : i32
    %0 = arith.addi %arg1, %c1_i32 : i32
    %c8_i32 = arith.constant 8 : i32
    %1 = arith.muli %0, %c8_i32 : i32
    %c0_i32 = arith.constant 0 : i32
    %c0_i32_0 = arith.constant 0 : i32
    %c0_i32_1 = arith.constant 0 : i32
    return %arg0, %1, %c0_i32, %c0_i32_0 : i32, i32, i32, i32
  }
  func.func @transform_2(%arg0: i32, %arg1: i32) -> (i32, i32, i32, i32) {
    %c1_i32 = arith.constant 1 : i32
    %0 = arith.addi %arg1, %c1_i32 : i32
    %c8_i32 = arith.constant 8 : i32
    %1 = arith.muli %0, %c8_i32 : i32
    %c1_i32_0 = arith.constant 1 : i32
    %2 = arith.addi %1, %c1_i32_0 : i32
    %c0_i32 = arith.constant 0 : i32
    %c0_i32_1 = arith.constant 0 : i32
    %c0_i32_2 = arith.constant 0 : i32
    return %arg0, %2, %c0_i32, %c0_i32_1 : i32, i32, i32, i32
  }
  func.func @transform_3(%arg0: i32, %arg1: i32) -> (i32, i32) {
    %c0_i32 = arith.constant 0 : i32
    %c0_i32_0 = arith.constant 0 : i32
    %c0_i32_1 = arith.constant 0 : i32
    return %c0_i32, %c0_i32_0 : i32, i32
  }
  func.func @transform_4(%arg0: i32, %arg1: i32) -> (i32, i32, i32, i32) {
    %c0_i32 = arith.constant 0 : i32
    %c0_i32_0 = arith.constant 0 : i32
    %c0_i32_1 = arith.constant 0 : i32
    %c0_i32_2 = arith.constant 0 : i32
    %c0_i32_3 = arith.constant 0 : i32
    return %c0_i32, %c0_i32_0, %c0_i32_1, %c0_i32_2 : i32, i32, i32, i32
  }
  func.func @transform_5(%arg0: i32, %arg1: i32) -> (i32, i32) {
    %c0_i32 = arith.constant 0 : i32
    %c0_i32_0 = arith.constant 0 : i32
    %c0_i32_1 = arith.constant 0 : i32
    return %c0_i32, %c0_i32_0 : i32, i32
  }
  func.func @transform_6(%arg0: i32, %arg1: i32) -> (i32, i32) {
    %c0_i32 = arith.constant 0 : i32
    %c0_i32_0 = arith.constant 0 : i32
    %c0_i32_1 = arith.constant 0 : i32
    return %c0_i32, %c0_i32_0 : i32, i32
  }
  func.func @transform_7(%arg0: i32, %arg1: i32) -> (i32, i32) {
    %c0_i32 = arith.constant 0 : i32
    %c0_i32_0 = arith.constant 0 : i32
    %c0_i32_1 = arith.constant 0 : i32
    return %c0_i32, %c0_i32_0 : i32, i32
  }
  func.func @transform_8(%arg0: i32, %arg1: i32) -> (i32, i32) {
    %c0_i32 = arith.constant 0 : i32
    %c0_i32_0 = arith.constant 0 : i32
    %c0_i32_1 = arith.constant 0 : i32
    return %c0_i32, %c0_i32_0 : i32, i32
  }
  func.func @transform_9(%arg0: i32, %arg1: i32) -> (i32, i32) {
    %c0_i32 = arith.constant 0 : i32
    %c0_i32_0 = arith.constant 0 : i32
    %c0_i32_1 = arith.constant 0 : i32
    return %c0_i32, %c0_i32_0 : i32, i32
  }
  func.func @transform_10(%arg0: i32, %arg1: i32) -> (i32, i32) {
    %c0_i32 = arith.constant 0 : i32
    %c0_i32_0 = arith.constant 0 : i32
    %c0_i32_1 = arith.constant 0 : i32
    return %c0_i32, %c0_i32_0 : i32, i32
  }
  func.func @transform_11(%arg0: i32, %arg1: i32) -> (i32, i32, i32, i32) {
    %c0_i32 = arith.constant 0 : i32
    %c0_i32_0 = arith.constant 0 : i32
    %c0_i32_1 = arith.constant 0 : i32
    return %arg0, %arg1, %c0_i32, %c0_i32_0 : i32, i32, i32, i32
  }
}

</mosaic_0001>

<llo_original>
// kernel: tpu_custom_call.1
$region0: #{tpu_custom_call.1}
  #allocation0 [shape = 'u32[]', space=smem, size = 0x4, offset = 0x4, fixed_abs, tag = 'smem constant byte address 0x4 - core index']
  #allocation1 [shape = 'u32[144,128]{1,0:T(1,128)}', space=vmem, size = 0x12000, scoped, tag = 'internal scratch']
  %s0 = inlined_call_operand.vmem [shape: bf16[2,18,18,8], index: 0, kind: input, shape index: {}]
  %s1 = inlined_call_operand.vmem [shape: bf16[2,18,18,8], index: 1, kind: input, shape index: {}]
  %s2 = inlined_call_operand.vmem [shape: bf16[2,18,18,8], index: 2, kind: input, shape index: {}]
  %s3 = inlined_call_operand.vmem [shape: bf16[8,4], index: 3, kind: input, shape index: {}]
  %s4 = inlined_call_operand.vmem [shape: bf16[3,3,4,4], index: 4, kind: input, shape index: {}]
  %s5 = inlined_call_operand.vmem [shape: bf16[4,16], index: 5, kind: input, shape index: {}]
  %s6 = inlined_call_operand.vmem [shape: f32[1,4], index: 6, kind: input, shape index: {}]
  %s7 = inlined_call_operand.vmem [shape: f32[1,4], index: 7, kind: input, shape index: {}]
  %s8 = inlined_call_operand.vmem [shape: f32[1,16], index: 8, kind: input, shape index: {}]
  %s9 = inlined_call_operand.vmem [shape: bf16[8,16], index: 9, kind: input, shape index: {}]
  %s10 = inlined_call_operand.vmem [shape: f32[1,16], index: 10, kind: input, shape index: {}]
  %s11 = inlined_call_operand.hbm [shape: f32[2,16,16,16], index: 11, kind: output, shape index: {}]
  %s12 = sld [smem:[#allocation0]]
  $region77: #{tpu_custom_call.1} parent=0
    _
  %s14 = ssub.s32 1, %s12
  %s15 = scalar_select 0, %s14, %s12
  $region1: #{tpu_custom_call.1} parent=0
    #allocation2 [shape = 'u8[131072]{0}', space=vmem, size = 0x20000, scoped, tag = 'output window, operand 0']
    #allocation3 [shape = 's32[2]{0}', space=sflag, size = 0x8, scoped, tag = 'scoped memory for tpu_custom_call.1']
    %16 = vsyncpa [#allocation3], 0
    %s17 = scalar_lea.sflag [#allocation3], 1
    %18 = vsyncpa %s17, 0
    loop: start=0, step=1, limit=6
    $region2: #{tpu_custom_call.1} parent=1 // loop_pre_header
      _
    $region3: #{tpu_custom_call.1} parent=1 // loop_header
      %s20 = sphi 0, %s24
      %p21 = scmp.ge.s32.totalorder %s20, 6
      %s27 = sphi 0, %s39
      %s28 = sphi 0, %s35
      %s29 = sphi 0, %s27
      %s30 = sphi 0, %s28
      %s31 = sphi 0, %s29
      %s32 = sphi 0, %s30
      %s44 = sphi 0, %s46
      %s47 = sphi 0, %s44
      %s48 = sphi 0, %s47
      %s64 = sphi 0, %s48
      %s76 = sphi 0, %s78
      %s79 = sphi 0, %s76
      %s80 = sphi 0, %s79
      %s96 = sphi 0, %s80
      %s110 = sphi 0, %s112
      %s113 = sphi 0, %s110
      %s114 = sphi 0, %s113
      %s130 = sphi 0, %s114
      %s134 = sphi 0, %s134
      %s136 = sphi 0, %s134
      %s137 = sphi 0, %s136
      %s151 = sphi 0, %s137
      %s155 = sphi 0, %s155
      %s157 = sphi 0, %s155
      %s158 = sphi 0, %s157
      %s172 = sphi 0, %s158
      %s176 = sphi 0, %s176
      %s178 = sphi 0, %s176
      %s179 = sphi 0, %s178
      %s193 = sphi 0, %s179
      %s197 = sphi 0, %s197
      %s199 = sphi 0, %s197
      %s200 = sphi 0, %s199
      %s214 = sphi 0, %s200
      %s218 = sphi 0, %s218
      %s220 = sphi 0, %s218
      %s221 = sphi 0, %s220
      %s235 = sphi 0, %s221
      %s239 = sphi 0, %s239
      %s241 = sphi 0, %s239
      %s242 = sphi 0, %s241
      %s256 = sphi 0, %s242
      %s260 = sphi 0, %s260
      %s262 = sphi 0, %s260
      %s263 = sphi 0, %s262
      %s277 = sphi 0, %s263
      %s281 = sphi 0, %s281
      %s283 = sphi 0, %s281
      %s284 = sphi 0, %s283
      %s298 = sphi 0, %s284
      %s306 = sphi 0, %s308
      %s309 = sphi 0, %s306
      %s310 = sphi 0, %s309
      %s326 = sphi 0, %s310
    $region4: #{tpu_custom_call.1} parent=1 // loop_header_branch
      %23 = sbr.rel (%p21) target = $region8
    $region5: #{tpu_custom_call.1} parent=1 // loop_body
      %s25 = ssub.s32 %s20, 1
      %s26 = ssub.s32 %s20, 2
      %s33 = sadd.s32 1, %s28
      %p34 = scmp.ge.s32.totalorder %s33, 2
      %s35 = scalar_select %p34, 0, %s33
      %s36 = sadd.s32 1, %s27
      %s37 = scalar_select %p34, %s36, %s27
      %p38 = scmp.ge.s32.totalorder %s37, 2
      %s39 = scalar_select %p38, 0, %s37
      %s40 = ssub.s32 %s27, %s39
      %s41 = ssub.s32 %s28, %s35
      %s42 = sor.u32 %s40, %s41
      %p43 = scmp.eq.s32.totalorder %s42, 0
      %s45 = sadd.s32 %s44, 1
      %s46 = scalar_select %p43, %s44, %s45
      %p49 = pneg %p43
      %p50 = scmp.eq.s32.totalorder %s20, 3
      %p51 = por %p49, %p50
      %p52 = scmp.ne.s32.totalorder %s44, %s47
      %p53 = scmp.eq.s32.totalorder %s20, 0
      %p54 = por %p52, %p53
      %p55 = scmp.ne.s32.totalorder %s44, %s47
      %p56 = scmp.eq.s32.totalorder %s25, 3
      %p57 = por %p55, %p56
      %p58 = scmp.ne.s32.totalorder %s47, %s48
      %p59 = scmp.eq.s32.totalorder %s25, 0
      %p60 = por %p58, %p59
      %p61 = scmp.ne.s32.totalorder %s47, %s48
      %p62 = scmp.eq.s32.totalorder %s26, 3
      %p63 = por %p61, %p62
      %p65 = scmp.ne.s32.totalorder %s48, %s64
      %p66 = scmp.eq.s32.totalorder %s26, 0
      %p67 = por %p65, %p66
      %s68 = sadd.s32 %s28, 1
      %s69 = smul.u32 %s68, 8
      %s70 = sadd.s32 %s35, 1
      %s71 = smul.u32 %s70, 8
      %s72 = ssub.s32 %s27, %s39
      %s73 = ssub.s32 %s69, %s71
      %s74 = sor.u32 %s72, %s73
      %p75 = scmp.eq.s32.totalorder %s74, 0
      %s77 = sadd.s32 %s76, 1
      %s78 = scalar_select %p75, %s76, %s77
      %p81 = pneg %p75
      %p82 = scmp.eq.s32.totalorder %s20, 3
      %p83 = por %p81, %p82
      %p84 = scmp.ne.s32.totalorder %s76, %s79
      %p85 = scmp.eq.s32.totalorder %s20, 0
      %p86 = por %p84, %p85
      %p87 = scmp.ne.s32.totalorder %s76, %s79
      %p88 = scmp.eq.s32.totalorder %s25, 3
      %p89 = por %p87, %p88
      %p90 = scmp.ne.s32.totalorder %s79, %s80
      %p91 = scmp.eq.s32.totalorder %s25, 0
      %p92 = por %p90, %p91
      %p93 = scmp.ne.s32.totalorder %s79, %s80
      %p94 = scmp.eq.s32.totalorder %s26, 3
      %p95 = por %p93, %p94
      %p97 = scmp.ne.s32.totalorder %s80, %s96
      %p98 = scmp.eq.s32.totalorder %s26, 0
      %p99 = por %p97, %p98
      %s100 = sadd.s32 %s28, 1
      %s101 = smul.u32 %s100, 8
      %s102 = sadd.s32 %s101, 1
      %s103 = sadd.s32 %s35, 1
      %s104 = smul.u32 %s103, 8
      %s105 = sadd.s32 %s104, 1
      %s106 = ssub.s32 %s27, %s39
      %s107 = ssub.s32 %s102, %s105
      %s108 = sor.u32 %s106, %s107
      %p109 = scmp.eq.s32.totalorder %s108, 0
      %s111 = sadd.s32 %s110, 1
      %s112 = scalar_select %p109, %s110, %s111
      %p115 = pneg %p109
      %p116 = scmp.eq.s32.totalorder %s20, 3
      %p117 = por %p115, %p116
      %p118 = scmp.ne.s32.totalorder %s110, %s113
      %p119 = scmp.eq.s32.totalorder %s20, 0
      %p120 = por %p118, %p119
      %p121 = scmp.ne.s32.totalorder %s110, %s113
      %p122 = scmp.eq.s32.totalorder %s25, 3
      %p123 = por %p121, %p122
      %p124 = scmp.ne.s32.totalorder %s113, %s114
      %p125 = scmp.eq.s32.totalorder %s25, 0
      %p126 = por %p124, %p125
      %p127 = scmp.ne.s32.totalorder %s113, %s114
      %p128 = scmp.eq.s32.totalorder %s26, 3
      %p129 = por %p127, %p128
      %p131 = scmp.ne.s32.totalorder %s114, %s130
      %p132 = scmp.eq.s32.totalorder %s26, 0
      %p133 = por %p131, %p132
      %s135 = sadd.s32 %s134, 1
      %p138 = scmp.eq.s32.totalorder %s20, 3
      %p139 = scmp.ne.s32.totalorder %s134, %s136
      %p140 = scmp.eq.s32.totalorder %s20, 0
      %p141 = por %p139, %p140
      %p142 = scmp.ne.s32.totalorder %s134, %s136
      %p143 = scmp.eq.s32.totalorder %s25, 3
      %p144 = por %p142, %p143
      %p145 = scmp.ne.s32.totalorder %s136, %s137
      %p146 = scmp.eq.s32.totalorder %s25, 0
      %p147 = por %p145, %p146
      %p148 = scmp.ne.s32.totalorder %s136, %s137
      %p149 = scmp.eq.s32.totalorder %s26, 3
      %p150 = por %p148, %p149
      %p152 = scmp.ne.s32.totalorder %s137, %s151
      %p153 = scmp.eq.s32.totalorder %s26, 0
      %p154 = por %p152, %p153
      %s156 = sadd.s32 %s155, 1
      %p159 = scmp.eq.s32.totalorder %s20, 3
      %p160 = scmp.ne.s32.totalorder %s155, %s157
      %p161 = scmp.eq.s32.totalorder %s20, 0
      %p162 = por %p160, %p161
      %p163 = scmp.ne.s32.totalorder %s155, %s157
      %p164 = scmp.eq.s32.totalorder %s25, 3
      %p165 = por %p163, %p164
      %p166 = scmp.ne.s32.totalorder %s157, %s158
      %p167 = scmp.eq.s32.totalorder %s25, 0
      %p168 = por %p166, %p167
      %p169 = scmp.ne.s32.totalorder %s157, %s158
      %p170 = scmp.eq.s32.totalorder %s26, 3
      %p171 = por %p169, %p170
      %p173 = scmp.ne.s32.totalorder %s158, %s172
      %p174 = scmp.eq.s32.totalorder %s26, 0
      %p175 = por %p173, %p174
      %s177 = sadd.s32 %s176, 1
      %p180 = scmp.eq.s32.totalorder %s20, 3
      %p181 = scmp.ne.s32.totalorder %s176, %s178
      %p182 = scmp.eq.s32.totalorder %s20, 0
      %p183 = por %p181, %p182
      %p184 = scmp.ne.s32.totalorder %s176, %s178
      %p185 = scmp.eq.s32.totalorder %s25, 3
      %p186 = por %p184, %p185
      %p187 = scmp.ne.s32.totalorder %s178, %s179
      %p188 = scmp.eq.s32.totalorder %s25, 0
      %p189 = por %p187, %p188
      %p190 = scmp.ne.s32.totalorder %s178, %s179
      %p191 = scmp.eq.s32.totalorder %s26, 3
      %p192 = por %p190, %p191
      %p194 = scmp.ne.s32.totalorder %s179, %s193
      %p195 = scmp.eq.s32.totalorder %s26, 0
      %p196 = por %p194, %p195
      %s198 = sadd.s32 %s197, 1
      %p201 = scmp.eq.s32.totalorder %s20, 3
      %p202 = scmp.ne.s32.totalorder %s197, %s199
      %p203 = scmp.eq.s32.totalorder %s20, 0
      %p204 = por %p202, %p203
      %p205 = scmp.ne.s32.totalorder %s197, %s199
      %p206 = scmp.eq.s32.totalorder %s25, 3
      %p207 = por %p205, %p206
      %p208 = scmp.ne.s32.totalorder %s199, %s200
      %p209 = scmp.eq.s32.totalorder %s25, 0
      %p210 = por %p208, %p209
      %p211 = scmp.ne.s32.totalorder %s199, %s200
      %p212 = scmp.eq.s32.totalorder %s26, 3
      %p213 = por %p211, %p212
      %p215 = scmp.ne.s32.totalorder %s200, %s214
      %p216 = scmp.eq.s32.totalorder %s26, 0
      %p217 = por %p215, %p216
      %s219 = sadd.s32 %s218, 1
      %p222 = scmp.eq.s32.totalorder %s20, 3
      %p223 = scmp.ne.s32.totalorder %s218, %s220
      %p224 = scmp.eq.s32.totalorder %s20, 0
      %p225 = por %p223, %p224
      %p226 = scmp.ne.s32.totalorder %s218, %s220
      %p227 = scmp.eq.s32.totalorder %s25, 3
      %p228 = por %p226, %p227
      %p229 = scmp.ne.s32.totalorder %s220, %s221
      %p230 = scmp.eq.s32.totalorder %s25, 0
      %p231 = por %p229, %p230
      %p232 = scmp.ne.s32.totalorder %s220, %s221
      %p233 = scmp.eq.s32.totalorder %s26, 3
      %p234 = por %p232, %p233
      %p236 = scmp.ne.s32.totalorder %s221, %s235
      %p237 = scmp.eq.s32.totalorder %s26, 0
      %p238 = por %p236, %p237
      %s240 = sadd.s32 %s239, 1
      %p243 = scmp.eq.s32.totalorder %s20, 3
      %p244 = scmp.ne.s32.totalorder %s239, %s241
      %p245 = scmp.eq.s32.totalorder %s20, 0
      %p246 = por %p244, %p245
      %p247 = scmp.ne.s32.totalorder %s239, %s241
      %p248 = scmp.eq.s32.totalorder %s25, 3
      %p249 = por %p247, %p248
      %p250 = scmp.ne.s32.totalorder %s241, %s242
      %p251 = scmp.eq.s32.totalorder %s25, 0
      %p252 = por %p250, %p251
      %p253 = scmp.ne.s32.totalorder %s241, %s242
      %p254 = scmp.eq.s32.totalorder %s26, 3
      %p255 = por %p253, %p254
      %p257 = scmp.ne.s32.totalorder %s242, %s256
      %p258 = scmp.eq.s32.totalorder %s26, 0
      %p259 = por %p257, %p258
      %s261 = sadd.s32 %s260, 1
      %p264 = scmp.eq.s32.totalorder %s20, 3
      %p265 = scmp.ne.s32.totalorder %s260, %s262
      %p266 = scmp.eq.s32.totalorder %s20, 0
      %p267 = por %p265, %p266
      %p268 = scmp.ne.s32.totalorder %s260, %s262
      %p269 = scmp.eq.s32.totalorder %s25, 3
      %p270 = por %p268, %p269
      %p271 = scmp.ne.s32.totalorder %s262, %s263
      %p272 = scmp.eq.s32.totalorder %s25, 0
      %p273 = por %p271, %p272
      %p274 = scmp.ne.s32.totalorder %s262, %s263
      %p275 = scmp.eq.s32.totalorder %s26, 3
      %p276 = por %p274, %p275
      %p278 = scmp.ne.s32.totalorder %s263, %s277
      %p279 = scmp.eq.s32.totalorder %s26, 0
      %p280 = por %p278, %p279
      %s282 = sadd.s32 %s281, 1
      %p285 = scmp.eq.s32.totalorder %s20, 3
      %p286 = scmp.ne.s32.totalorder %s281, %s283
      %p287 = scmp.eq.s32.totalorder %s20, 0
      %p288 = por %p286, %p287
      %p289 = scmp.ne.s32.totalorder %s281, %s283
      %p290 = scmp.eq.s32.totalorder %s25, 3
      %p291 = por %p289, %p290
      %p292 = scmp.ne.s32.totalorder %s283, %s284
      %p293 = scmp.eq.s32.totalorder %s25, 0
      %p294 = por %p292, %p293
      %p295 = scmp.ne.s32.totalorder %s283, %s284
      %p296 = scmp.eq.s32.totalorder %s26, 3
      %p297 = por %p295, %p296
      %p299 = scmp.ne.s32.totalorder %s284, %s298
      %p300 = scmp.eq.s32.totalorder %s26, 0
      %p301 = por %p299, %p300
      %s302 = ssub.s32 %s27, %s39
      %s303 = ssub.s32 %s28, %s35
      %s304 = sor.u32 %s302, %s303
      %p305 = scmp.eq.s32.totalorder %s304, 0
      %s307 = sadd.s32 %s306, 1
      %s308 = scalar_select %p305, %s306, %s307
      %p311 = pneg %p305
      %p312 = scmp.eq.s32.totalorder %s20, 3
      %p313 = por %p311, %p312
      %p314 = scmp.ne.s32.totalorder %s306, %s309
      %p315 = scmp.eq.s32.totalorder %s20, 0
      %p316 = por %p314, %p315
      %p317 = scmp.ne.s32.totalorder %s306, %s309
      %p318 = scmp.eq.s32.totalorder %s25, 3
      %p319 = por %p317, %p318
      %p320 = scmp.ne.s32.totalorder %s309, %s310
      %p321 = scmp.eq.s32.totalorder %s25, 0
      %p322 = por %p320, %p321
      %p323 = scmp.ne.s32.totalorder %s309, %s310
      %p324 = scmp.eq.s32.totalorder %s26, 3
      %p325 = por %p323, %p324
      %p327 = scmp.ne.s32.totalorder %s310, %s326
      %p328 = scmp.eq.s32.totalorder %s26, 0
      %p329 = por %p327, %p328
      %p330 = scmp.le.s32.totalorder 1, %s20
      %p331 = scmp.lt.s32.totalorder %s20, 5
      %p332 = pnand %p330, %p331
      %p333 = pneg %p332
      // Predicated region
      $region9: #{tpu_custom_call.1} parent=5 // pred_check
        _
      $region10: #{tpu_custom_call.1} parent=5 // pred_check_branch
        %335 = sbr.rel (%p332) target = $region12
      $region11: #{tpu_custom_call.1} parent=5 // pred_region
        %s336 = ssub.s32 %s20, 1
        // Predicated region
        $region13: #{tpu_custom_call.1} parent=11 // pred_check
          %p337 = pneg %p147
        $region14: #{tpu_custom_call.1} parent=11 // pred_check_branch
          %339 = sbr.rel (%p337) target = $region16
        $region15: #{tpu_custom_call.1} parent=11 // pred_region
          _
        $region16: #{tpu_custom_call.1} parent=11 // pred_fallthru
          _
        // Predicated region
        $region17: #{tpu_custom_call.1} parent=11 // pred_check
          %p340 = pneg %p168
        $region18: #{tpu_custom_call.1} parent=11 // pred_check_branch
          %342 = sbr.rel (%p340) target = $region20
        $region19: #{tpu_custom_call.1} parent=11 // pred_region
          _
        $region20: #{tpu_custom_call.1} parent=11 // pred_fallthru
          _
        // Predicated region
        $region21: #{tpu_custom_call.1} parent=11 // pred_check
          %p343 = pneg %p189
        $region22: #{tpu_custom_call.1} parent=11 // pred_check_branch
          %345 = sbr.rel (%p343) target = $region24
        $region23: #{tpu_custom_call.1} parent=11 // pred_region
          _
        $region24: #{tpu_custom_call.1} parent=11 // pred_fallthru
          _
        // Predicated region
        $region25: #{tpu_custom_call.1} parent=11 // pred_check
          %p346 = pneg %p210
        $region26: #{tpu_custom_call.1} parent=11 // pred_check_branch
          %348 = sbr.rel (%p346) target = $region28
        $region27: #{tpu_custom_call.1} parent=11 // pred_region
          _
        $region28: #{tpu_custom_call.1} parent=11 // pred_fallthru
          _
        // Predicated region
        $region29: #{tpu_custom_call.1} parent=11 // pred_check
          %p349 = pneg %p231
        $region30: #{tpu_custom_call.1} parent=11 // pred_check_branch
          %351 = sbr.rel (%p349) target = $region32
        $region31: #{tpu_custom_call.1} parent=11 // pred_region
          _
        $region32: #{tpu_custom_call.1} parent=11 // pred_fallthru
          _
        // Predicated region
        $region33: #{tpu_custom_call.1} parent=11 // pred_check
          %p352 = pneg %p252
        $region34: #{tpu_custom_call.1} parent=11 // pred_check_branch
          %354 = sbr.rel (%p352) target = $region36
        $region35: #{tpu_custom_call.1} parent=11 // pred_region
          _
        $region36: #{tpu_custom_call.1} parent=11 // pred_fallthru
          _
        // Predicated region
        $region37: #{tpu_custom_call.1} parent=11 // pred_check
          %p355 = pneg %p273
        $region38: #{tpu_custom_call.1} parent=11 // pred_check_branch
          %357 = sbr.rel (%p355) target = $region40
        $region39: #{tpu_custom_call.1} parent=11 // pred_region
          _
        $region40: #{tpu_custom_call.1} parent=11 // pred_fallthru
          _
        // Predicated region
        $region41: #{tpu_custom_call.1} parent=11 // pred_check
          %p358 = pneg %p294
        $region42: #{tpu_custom_call.1} parent=11 // pred_check_branch
          %360 = sbr.rel (%p358) target = $region44
        $region43: #{tpu_custom_call.1} parent=11 // pred_region
          _
        $region44: #{tpu_custom_call.1} parent=11 // pred_fallthru
          _
      $region12: #{tpu_custom_call.1} parent=5 // pred_fallthru
        _
      %p361 = scmp.lt.s32.totalorder %s20, 4
      // Predicated region
      $region45: #{tpu_custom_call.1} parent=5 // pred_check
        %p362 = pneg %p361
      $region46: #{tpu_custom_call.1} parent=5 // pred_check_branch
        %364 = sbr.rel (%p362) target = $region48
      $region47: #{tpu_custom_call.1} parent=5 // pred_region
        // Predicated region
        $region49: #{tpu_custom_call.1} parent=47 // pred_check
          %p365 = pneg %p54
        $region50: #{tpu_custom_call.1} parent=47 // pred_check_branch
          %367 = sbr.rel (%p365) target = $region52
        $region51: #{tpu_custom_call.1} parent=47 // pred_region
          %s368 = smul.u32 8, %s28
          %s369 = ssub.s32 18, %s368
          %p370 = scmp.lt.s32.totalorder %s369, 8
          %s371 = scalar_select %p370, %s369, 8
          %s372 = smul.u32 64, %s371
          %s373 = smul.u32 %s372, 3
          %p374 = scmp.lt.s32.totalorder %s27, 1
          %s375 = scalar_select %p374, %s27, 1
          %p376 = scmp.lt.s32.totalorder %s368, 17
          %s377 = scalar_select %p376, %s368, 17
          %s378 = smul.addr %s377, 3
          %s379 = smul.addr %s375, 54
          %s380 = sadd.s32 %s378, %s379
          %s381 = smul.addr %s380, 4
          %s382 = scalar_lea.vmem %s0, %s381
          %s383 = smul.u32 8, %s28
          %s384 = ssub.s32 18, %s383
          %p385 = scmp.lt.s32.totalorder %s384, 8
          %s386 = scalar_select %p385, %s384, 8
          %s387 = smul.u32 64, %s386
          %s388 = smul.u32 %s387, 3
        $region52: #{tpu_custom_call.1} parent=47 // pred_fallthru
          _
        // Predicated region
        $region53: #{tpu_custom_call.1} parent=47 // pred_check
          %p389 = pneg %p86
        $region54: #{tpu_custom_call.1} parent=47 // pred_check_branch
          %391 = sbr.rel (%p389) target = $region56
        $region55: #{tpu_custom_call.1} parent=47 // pred_region
          %s392 = sadd.s32 %s28, 1
          %s393 = smul.u32 %s392, 8
          %p394 = scmp.lt.s32.totalorder %s27, 1
          %s395 = scalar_select %p394, %s27, 1
          %p396 = scmp.lt.s32.totalorder %s393, 17
          %s397 = scalar_select %p396, %s393, 17
          %s398 = smul.addr %s397, 3
          %s399 = smul.addr %s395, 54
          %s400 = sadd.s32 %s398, %s399
          %s401 = smul.addr %s400, 4
          %s402 = scalar_lea.vmem %s1, %s401
          %s403 = sadd.s32 %s28, 1
          %s404 = smul.u32 %s403, 8
        $region56: #{tpu_custom_call.1} parent=47 // pred_fallthru
          _
        // Predicated region
        $region57: #{tpu_custom_call.1} parent=47 // pred_check
          %p405 = pneg %p120
        $region58: #{tpu_custom_call.1} parent=47 // pred_check_branch
          %407 = sbr.rel (%p405) target = $region60
        $region59: #{tpu_custom_call.1} parent=47 // pred_region
          %s408 = sadd.s32 %s28, 1
          %s409 = smul.u32 %s408, 8
          %s410 = sadd.s32 %s409, 1
          %p411 = scmp.lt.s32.totalorder %s27, 1
          %s412 = scalar_select %p411, %s27, 1
          %p413 = scmp.lt.s32.totalorder %s410, 17
          %s414 = scalar_select %p413, %s410, 17
          %s415 = smul.addr %s414, 3
          %s416 = smul.addr %s412, 54
          %s417 = sadd.s32 %s415, %s416
          %s418 = smul.addr %s417, 4
          %s419 = scalar_lea.vmem %s2, %s418
          %s420 = sadd.s32 %s28, 1
          %s421 = smul.u32 %s420, 8
          %s422 = sadd.s32 %s421, 1
        $region60: #{tpu_custom_call.1} parent=47 // pred_fallthru
          _
      $region48: #{tpu_custom_call.1} parent=5 // pred_fallthru
        _
      %p423 = scmp.le.s32.totalorder 1, %s20
      %p424 = scmp.lt.s32.totalorder %s20, 5
      %p425 = pnand %p423, %p424
      %p426 = pneg %p425
      // Predicated region
      $region61: #{tpu_custom_call.1} parent=5 // pred_check
        _
      $region62: #{tpu_custom_call.1} parent=5 // pred_check_branch
        %428 = sbr.rel (%p425) target = $region64
      $region63: #{tpu_custom_call.1} parent=5 // pred_region
        %s429 = ssub.s32 %s20, 1
        %s430 = smul.u32 8, %s30
        %s431 = ssub.s32 18, %s430
        %p432 = scmp.lt.s32.totalorder %s431, 8
        %s433 = scalar_select %p432, %s431, 8
        %s434 = smul.u32 64, %s433
        %s435 = smul.u32 %s434, 3
        %p436 = scmp.lt.s32.totalorder %s29, 1
        %s437 = scalar_select %p436, %s29, 1
        %p438 = scmp.lt.s32.totalorder %s430, 17
        %s439 = scalar_select %p438, %s430, 17
        %s440 = smul.addr %s439, 3
        %s441 = smul.addr %s437, 54
        %s442 = sadd.s32 %s440, %s441
        %s443 = smul.addr %s442, 4
        %s444 = scalar_lea.vmem %s0, %s443
        %p445 = pneg %p60
        %p446 = pneg %p57
        %s447 = sadd.s32 %s30, 1
        %s448 = smul.u32 %s447, 8
        %p449 = scmp.lt.s32.totalorder %s29, 1
        %s450 = scalar_select %p449, %s29, 1
        %p451 = scmp.lt.s32.totalorder %s448, 17
        %s452 = scalar_select %p451, %s448, 17
        %s453 = smul.addr %s452, 3
        %s454 = smul.addr %s450, 54
        %s455 = sadd.s32 %s453, %s454
        %s456 = smul.addr %s455, 4
        %s457 = scalar_lea.vmem %s1, %s456
        %p458 = pneg %p92
        %p459 = pneg %p89
        %s460 = sadd.s32 %s30, 1
        %s461 = smul.u32 %s460, 8
        %s462 = sadd.s32 %s461, 1
        %p463 = scmp.lt.s32.totalorder %s29, 1
        %s464 = scalar_select %p463, %s29, 1
        %p465 = scmp.lt.s32.totalorder %s462, 17
        %s466 = scalar_select %p465, %s462, 17
        %s467 = smul.addr %s466, 3
        %s468 = smul.addr %s464, 54
        %s469 = sadd.s32 %s467, %s468
        %s470 = smul.addr %s469, 4
        %s471 = scalar_lea.vmem %s2, %s470
        %p472 = pneg %p126
        %p473 = pneg %p123
        %p474 = pneg %p147
        %p475 = pneg %p144
        %p476 = pneg %p168
        %p477 = pneg %p165
        %p478 = pneg %p189
        %p479 = pneg %p186
        %p480 = pneg %p210
        %p481 = pneg %p207
        %p482 = pneg %p231
        %p483 = pneg %p228
        %p484 = pneg %p252
        %p485 = pneg %p249
        %p486 = pneg %p273
        %p487 = pneg %p270
        %p488 = pneg %p294
        %p489 = pneg %p291
        %p490 = pneg %p322
        %p491 = pneg %p319
        %s492 = sand.u32 %s309, 1
        %s493 = scalar_lea.sflag [#allocation3], %s492
        %s494 = sand.u32 %s309, 1
        %s495 = smul.addr %s494, 128
        %s496 = scalar_lea.vmem [#allocation2], %s495
        %s497 = smul.u32 8, %s30
        %s498 = ssub.s32 18, %s497
        %p499 = scmp.lt.s32.totalorder %s498, 8
        %s500 = scalar_select %p499, %s498, 8
        %s501 = smul.u32 64, %s500
        %s502 = smul.u32 %s501, 3
        %p503 = scmp.lt.s32.totalorder %s29, 1
        %s504 = scalar_select %p503, %s29, 1
        %p505 = scmp.lt.s32.totalorder %s497, 17
        %s506 = scalar_select %p505, %s497, 17
        %s507 = smul.addr %s506, 3
        %s508 = smul.addr %s504, 54
        %s509 = sadd.s32 %s507, %s508
        %s510 = smul.addr %s509, 4
        %s511 = scalar_lea.vmem %s0, %s510
        %s512 = smul.u32 8, %s30
        %s513 = ssub.s32 18, %s512
        %p514 = scmp.lt.s32.totalorder %s513, 8
        %s515 = scalar_select %p514, %s513, 8
        %s516 = smul.u32 64, %s515
        %s517 = smul.u32 %s516, 3
        %s518 = sadd.s32 %s30, 1
        %s519 = smul.u32 %s518, 8
        %p520 = scmp.lt.s32.totalorder %s29, 1
        %s521 = scalar_select %p520, %s29, 1
        %p522 = scmp.lt.s32.totalorder %s519, 17
        %s523 = scalar_select %p522, %s519, 17
        %s524 = smul.addr %s523, 3
        %s525 = smul.addr %s521, 54
        %s526 = sadd.s32 %s524, %s525
        %s527 = smul.addr %s526, 4
        %s528 = scalar_lea.vmem %s1, %s527
        %s529 = sadd.s32 %s30, 1
        %s530 = smul.u32 %s529, 8
        %s531 = sadd.s32 %s30, 1
        %s532 = smul.u32 %s531, 8
        %s533 = sadd.s32 %s532, 1
        %p534 = scmp.lt.s32.totalorder %s29, 1
        %s535 = scalar_select %p534, %s29, 1
        %p536 = scmp.lt.s32.totalorder %s533, 17
        %s537 = scalar_select %p536, %s533, 17
        %s538 = smul.addr %s537, 3
        %s539 = smul.addr %s535, 54
        %s540 = sadd.s32 %s538, %s539
        %s541 = smul.addr %s540, 4
        %s542 = scalar_lea.vmem %s2, %s541
        %s543 = sadd.s32 %s30, 1
        %s544 = smul.u32 %s543, 8
        %s545 = sadd.s32 %s544, 1
        %s546 = smul.u32 8, %s30
        %v548 = vld [vmem:[%s511] sm:$0xf]
        %v549 = vld [vmem:[%s511 + $0x4] sm:$0xf]
        %v550 = vld [vmem:[%s511 + $0x8] sm:$0x1]
        %v551 = vld [vmem:[%s511 + $0xc] sm:$0xf]
        %v552 = vld [vmem:[%s511 + $0x10] sm:$0xf]
        %v553 = vld [vmem:[%s511 + $0x14] sm:$0x1]
        %v554 = vld [vmem:[%s511 + $0x18] sm:$0xf]
        %v555 = vld [vmem:[%s511 + $0x1c] sm:$0xf]
        %v556 = vld [vmem:[%s511 + $0x20] sm:$0x1]
        %v557 = vld [vmem:[%s511 + $0x24] sm:$0xf]
        %v558 = vld [vmem:[%s511 + $0x28] sm:$0xf]
        %v559 = vld [vmem:[%s511 + $0x2c] sm:$0x1]
        %v560 = vld [vmem:[%s511 + $0x30] sm:$0xf]
        %v561 = vld [vmem:[%s511 + $0x34] sm:$0xf]
        %v562 = vld [vmem:[%s511 + $0x38] sm:$0x1]
        %v563 = vld [vmem:[%s511 + $0x3c] sm:$0xf]
        %v564 = vld [vmem:[%s511 + $0x40] sm:$0xf]
        %v565 = vld [vmem:[%s511 + $0x44] sm:$0x1]
        %v566 = vld [vmem:[%s511 + $0x48] sm:$0xf]
        %v567 = vld [vmem:[%s511 + $0x4c] sm:$0xf]
        %v568 = vld [vmem:[%s511 + $0x50] sm:$0x1]
        %v569 = vld [vmem:[%s511 + $0x54] sm:$0xf]
        %v570 = vld [vmem:[%s511 + $0x58] sm:$0xf]
        %v571 = vld [vmem:[%s511 + $0x5c] sm:$0x1]
        %v572 = vld [vmem:[%s528] sm:$0xf]
        %v573 = vld [vmem:[%s528 + $0x4] sm:$0xf]
        %v574 = vld [vmem:[%s528 + $0x8] sm:$0x1]
        %v575 = vld [vmem:[%s542] sm:$0xf]
        %v576 = vld [vmem:[%s542 + $0x4] sm:$0xf]
        %v577 = vld [vmem:[%s542 + $0x8] sm:$0x1]
        %v609 = vunpack.c.l.s4 1966171168
        %v610 = vunpack.c.0.s8 %v609
        %v611 = vlaneseq
        %v612 = vshrl.u32 %v611, 7
        %v613 = vsub.s32 %v610, %v612
        %v614 = vrot.slane %v548, %v613
        %v615 = vcombine.high %v614, %v614
        %v617 = vunpack.c.l.s4 1966171168
        %v618 = vunpack.c.0.s8 %v617
        %v619 = vlaneseq
        %v620 = vshrl.u32 %v619, 7
        %v621 = vsub.s32 %v618, %v620
        %v622 = vrot.slane %v614, %v621
        %v624 = vunpack.c.l.s4 1966171168
        %v625 = vunpack.c.0.s8 %v624
        %v626 = vlaneseq
        %v627 = vshrl.u32 %v626, 7
        %v628 = vsub.s32 %v625, %v627
        %v629 = vrot.slane %v615, %v628
        %v630 = vcombine.high %v622, %v622
        %v631 = vcombine.high %v629, %v629
        %v633 = vunpack.c.l.s4 1966171168
        %v634 = vunpack.c.0.s8 %v633
        %v635 = vlaneseq
        %v636 = vshrl.u32 %v635, 7
        %v637 = vsub.s32 %v634, %v636
        %v638 = vrot.slane %v549, %v637
        %v639 = vcombine.high %v638, %v638
        %v641 = vunpack.c.l.s4 1966171168
        %v642 = vunpack.c.0.s8 %v641
        %v643 = vlaneseq
        %v644 = vshrl.u32 %v643, 7
        %v645 = vsub.s32 %v642, %v644
        %v646 = vrot.slane %v638, %v645
        %v648 = vunpack.c.l.s4 1966171168
        %v649 = vunpack.c.0.s8 %v648
        %v650 = vlaneseq
        %v651 = vshrl.u32 %v650, 7
        %v652 = vsub.s32 %v649, %v651
        %v653 = vrot.slane %v639, %v652
        %v654 = vcombine.high %v646, %v646
        %v655 = vcombine.high %v653, %v653
        %v657 = vunpack.c.l.s4 1966171168
        %v658 = vunpack.c.0.s8 %v657
        %v659 = vlaneseq
        %v660 = vshrl.u32 %v659, 7
        %v661 = vsub.s32 %v658, %v660
        %v662 = vrot.slane %v550, %v661
        %v664 = vunpack.c.l.s4 1966171168
        %v665 = vunpack.c.0.s8 %v664
        %v666 = vlaneseq
        %v667 = vshrl.u32 %v666, 7
        %v668 = vsub.s32 %v665, %v667
        %v669 = vrot.slane %v662, %v668
        %v671 = vunpack.c.l.s4 1966171168
        %v672 = vunpack.c.0.s8 %v671
        %v673 = vlaneseq
        %v674 = vshrl.u32 %v673, 7
        %v675 = vsub.s32 %v672, %v674
        %v676 = vrot.slane %v551, %v675
        %v677 = vcombine.high %v676, %v676
        %v679 = vunpack.c.l.s4 1966171168
        %v680 = vunpack.c.0.s8 %v679
        %v681 = vlaneseq
        %v682 = vshrl.u32 %v681, 7
        %v683 = vsub.s32 %v680, %v682
        %v684 = vrot.slane %v676, %v683
        %v686 = vunpack.c.l.s4 1966171168
        %v687 = vunpack.c.0.s8 %v686
        %v688 = vlaneseq
        %v689 = vshrl.u32 %v688, 7
        %v690 = vsub.s32 %v687, %v689
        %v691 = vrot.slane %v677, %v690
        %v692 = vcombine.high %v684, %v684
        %v693 = vcombine.high %v691, %v691
        %v695 = vunpack.c.l.s4 1966171168
        %v696 = vunpack.c.0.s8 %v695
        %v697 = vlaneseq
        %v698 = vshrl.u32 %v697, 7
        %v699 = vsub.s32 %v696, %v698
        %v700 = vrot.slane %v552, %v699
        %v701 = vcombine.high %v700, %v700
        %v703 = vunpack.c.l.s4 1966171168
        %v704 = vunpack.c.0.s8 %v703
        %v705 = vlaneseq
        %v706 = vshrl.u32 %v705, 7
        %v707 = vsub.s32 %v704, %v706
        %v708 = vrot.slane %v700, %v707
        %v710 = vunpack.c.l.s4 1966171168
        %v711 = vunpack.c.0.s8 %v710
        %v712 = vlaneseq
        %v713 = vshrl.u32 %v712, 7
        %v714 = vsub.s32 %v711, %v713
        %v715 = vrot.slane %v701, %v714
        %v716 = vcombine.high %v708, %v708
        %v717 = vcombine.high %v715, %v715
        %v719 = vunpack.c.l.s4 1966171168
        %v720 = vunpack.c.0.s8 %v719
        %v721 = vlaneseq
        %v722 = vshrl.u32 %v721, 7
        %v723 = vsub.s32 %v720, %v722
        %v724 = vrot.slane %v553, %v723
        %v726 = vunpack.c.l.s4 1966171168
        %v727 = vunpack.c.0.s8 %v726
        %v728 = vlaneseq
        %v729 = vshrl.u32 %v728, 7
        %v730 = vsub.s32 %v727, %v729
        %v731 = vrot.slane %v724, %v730
        %v733 = vunpack.c.l.s4 1966171168
        %v734 = vunpack.c.0.s8 %v733
        %v735 = vlaneseq
        %v736 = vshrl.u32 %v735, 7
        %v737 = vsub.s32 %v734, %v736
        %v738 = vrot.slane %v554, %v737
        %v739 = vcombine.high %v738, %v738
        %v741 = vunpack.c.l.s4 1966171168
        %v742 = vunpack.c.0.s8 %v741
        %v743 = vlaneseq
        %v744 = vshrl.u32 %v743, 7
        %v745 = vsub.s32 %v742, %v744
        %v746 = vrot.slane %v738, %v745
        %v748 = vunpack.c.l.s4 1966171168
        %v749 = vunpack.c.0.s8 %v748
        %v750 = vlaneseq
        %v751 = vshrl.u32 %v750, 7
        %v752 = vsub.s32 %v749, %v751
        %v753 = vrot.slane %v739, %v752
        %v754 = vcombine.high %v746, %v746
        %v755 = vcombine.high %v753, %v753
        %v757 = vunpack.c.l.s4 1966171168
        %v758 = vunpack.c.0.s8 %v757
        %v759 = vlaneseq
        %v760 = vshrl.u32 %v759, 7
        %v761 = vsub.s32 %v758, %v760
        %v762 = vrot.slane %v555, %v761
        %v763 = vcombine.high %v762, %v762
        %v765 = vunpack.c.l.s4 1966171168
        %v766 = vunpack.c.0.s8 %v765
        %v767 = vlaneseq
        %v768 = vshrl.u32 %v767, 7
        %v769 = vsub.s32 %v766, %v768
        %v770 = vrot.slane %v762, %v769
        %v772 = vunpack.c.l.s4 1966171168
        %v773 = vunpack.c.0.s8 %v772
        %v774 = vlaneseq
        %v775 = vshrl.u32 %v774, 7
        %v776 = vsub.s32 %v773, %v775
        %v777 = vrot.slane %v763, %v776
        %v778 = vcombine.high %v770, %v770
        %v779 = vcombine.high %v777, %v777
        %v781 = vunpack.c.l.s4 1966171168
        %v782 = vunpack.c.0.s8 %v781
        %v783 = vlaneseq
        %v784 = vshrl.u32 %v783, 7
        %v785 = vsub.s32 %v782, %v784
        %v786 = vrot.slane %v556, %v785
        %v788 = vunpack.c.l.s4 1966171168
        %v789 = vunpack.c.0.s8 %v788
        %v790 = vlaneseq
        %v791 = vshrl.u32 %v790, 7
        %v792 = vsub.s32 %v789, %v791
        %v793 = vrot.slane %v786, %v792
        %v795 = vunpack.c.l.s4 1966171168
        %v796 = vunpack.c.0.s8 %v795
        %v797 = vlaneseq
        %v798 = vshrl.u32 %v797, 7
        %v799 = vsub.s32 %v796, %v798
        %v800 = vrot.slane %v557, %v799
        %v801 = vcombine.high %v800, %v800
        %v803 = vunpack.c.l.s4 1966171168
        %v804 = vunpack.c.0.s8 %v803
        %v805 = vlaneseq
        %v806 = vshrl.u32 %v805, 7
        %v807 = vsub.s32 %v804, %v806
        %v808 = vrot.slane %v800, %v807
        %v810 = vunpack.c.l.s4 1966171168
        %v811 = vunpack.c.0.s8 %v810
        %v812 = vlaneseq
        %v813 = vshrl.u32 %v812, 7
        %v814 = vsub.s32 %v811, %v813
        %v815 = vrot.slane %v801, %v814
        %v816 = vcombine.high %v808, %v808
        %v817 = vcombine.high %v815, %v815
        %v819 = vunpack.c.l.s4 1966171168
        %v820 = vunpack.c.0.s8 %v819
        %v821 = vlaneseq
        %v822 = vshrl.u32 %v821, 7
        %v823 = vsub.s32 %v820, %v822
        %v824 = vrot.slane %v558, %v823
        %v825 = vcombine.high %v824, %v824
        %v827 = vunpack.c.l.s4 1966171168
        %v828 = vunpack.c.0.s8 %v827
        %v829 = vlaneseq
        %v830 = vshrl.u32 %v829, 7
        %v831 = vsub.s32 %v828, %v830
        %v832 = vrot.slane %v824, %v831
        %v834 = vunpack.c.l.s4 1966171168
        %v835 = vunpack.c.0.s8 %v834
        %v836 = vlaneseq
        %v837 = vshrl.u32 %v836, 7
        %v838 = vsub.s32 %v835, %v837
        %v839 = vrot.slane %v825, %v838
        %v840 = vcombine.high %v832, %v832
        %v841 = vcombine.high %v839, %v839
        %v843 = vunpack.c.l.s4 1966171168
        %v844 = vunpack.c.0.s8 %v843
        %v845 = vlaneseq
        %v846 = vshrl.u32 %v845, 7
        %v847 = vsub.s32 %v844, %v846
        %v848 = vrot.slane %v559, %v847
        %v850 = vunpack.c.l.s4 1966171168
        %v851 = vunpack.c.0.s8 %v850
        %v852 = vlaneseq
        %v853 = vshrl.u32 %v852, 7
        %v854 = vsub.s32 %v851, %v853
        %v855 = vrot.slane %v848, %v854
        %v857 = vunpack.c.l.s4 1966171168
        %v858 = vunpack.c.0.s8 %v857
        %v859 = vlaneseq
        %v860 = vshrl.u32 %v859, 7
        %v861 = vsub.s32 %v858, %v860
        %v862 = vrot.slane %v560, %v861
        %v863 = vcombine.high %v862, %v862
        %v865 = vunpack.c.l.s4 1966171168
        %v866 = vunpack.c.0.s8 %v865
        %v867 = vlaneseq
        %v868 = vshrl.u32 %v867, 7
        %v869 = vsub.s32 %v866, %v868
        %v870 = vrot.slane %v862, %v869
        %v872 = vunpack.c.l.s4 1966171168
        %v873 = vunpack.c.0.s8 %v872
        %v874 = vlaneseq
        %v875 = vshrl.u32 %v874, 7
        %v876 = vsub.s32 %v873, %v875
        %v877 = vrot.slane %v863, %v876
        %v878 = vcombine.high %v870, %v870
        %v879 = vcombine.high %v877, %v877
        %v881 = vunpack.c.l.s4 1966171168
        %v882 = vunpack.c.0.s8 %v881
        %v883 = vlaneseq
        %v884 = vshrl.u32 %v883, 7
        %v885 = vsub.s32 %v882, %v884
        %v886 = vrot.slane %v561, %v885
        %v887 = vcombine.high %v886, %v886
        %v889 = vunpack.c.l.s4 1966171168
        %v890 = vunpack.c.0.s8 %v889
        %v891 = vlaneseq
        %v892 = vshrl.u32 %v891, 7
        %v893 = vsub.s32 %v890, %v892
        %v894 = vrot.slane %v886, %v893
        %v896 = vunpack.c.l.s4 1966171168
        %v897 = vunpack.c.0.s8 %v896
        %v898 = vlaneseq
        %v899 = vshrl.u32 %v898, 7
        %v900 = vsub.s32 %v897, %v899
        %v901 = vrot.slane %v887, %v900
        %v902 = vcombine.high %v894, %v894
        %v903 = vcombine.high %v901, %v901
        %v905 = vunpack.c.l.s4 1966171168
        %v906 = vunpack.c.0.s8 %v905
        %v907 = vlaneseq
        %v908 = vshrl.u32 %v907, 7
        %v909 = vsub.s32 %v906, %v908
        %v910 = vrot.slane %v562, %v909
        %v912 = vunpack.c.l.s4 1966171168
        %v913 = vunpack.c.0.s8 %v912
        %v914 = vlaneseq
        %v915 = vshrl.u32 %v914, 7
        %v916 = vsub.s32 %v913, %v915
        %v917 = vrot.slane %v910, %v916
        %v919 = vunpack.c.l.s4 1966171168
        %v920 = vunpack.c.0.s8 %v919
        %v921 = vlaneseq
        %v922 = vshrl.u32 %v921, 7
        %v923 = vsub.s32 %v920, %v922
        %v924 = vrot.slane %v563, %v923
        %v925 = vcombine.high %v924, %v924
        %v927 = vunpack.c.l.s4 1966171168
        %v928 = vunpack.c.0.s8 %v927
        %v929 = vlaneseq
        %v930 = vshrl.u32 %v929, 7
        %v931 = vsub.s32 %v928, %v930
        %v932 = vrot.slane %v924, %v931
        %v934 = vunpack.c.l.s4 1966171168
        %v935 = vunpack.c.0.s8 %v934
        %v936 = vlaneseq
        %v937 = vshrl.u32 %v936, 7
        %v938 = vsub.s32 %v935, %v937
        %v939 = vrot.slane %v925, %v938
        %v940 = vcombine.high %v932, %v932
        %v941 = vcombine.high %v939, %v939
        %v943 = vunpack.c.l.s4 1966171168
        %v944 = vunpack.c.0.s8 %v943
        %v945 = vlaneseq
        %v946 = vshrl.u32 %v945, 7
        %v947 = vsub.s32 %v944, %v946
        %v948 = vrot.slane %v564, %v947
        %v949 = vcombine.high %v948, %v948
        %v951 = vunpack.c.l.s4 1966171168
        %v952 = vunpack.c.0.s8 %v951
        %v953 = vlaneseq
        %v954 = vshrl.u32 %v953, 7
        %v955 = vsub.s32 %v952, %v954
        %v956 = vrot.slane %v948, %v955
        %v958 = vunpack.c.l.s4 1966171168
        %v959 = vunpack.c.0.s8 %v958
        %v960 = vlaneseq
        %v961 = vshrl.u32 %v960, 7
        %v962 = vsub.s32 %v959, %v961
        %v963 = vrot.slane %v949, %v962
        %v964 = vcombine.high %v956, %v956
        %v965 = vcombine.high %v963, %v963
        %v967 = vunpack.c.l.s4 1966171168
        %v968 = vunpack.c.0.s8 %v967
        %v969 = vlaneseq
        %v970 = vshrl.u32 %v969, 7
        %v971 = vsub.s32 %v968, %v970
        %v972 = vrot.slane %v565, %v971
        %v974 = vunpack.c.l.s4 1966171168
        %v975 = vunpack.c.0.s8 %v974
        %v976 = vlaneseq
        %v977 = vshrl.u32 %v976, 7
        %v978 = vsub.s32 %v975, %v977
        %v979 = vrot.slane %v972, %v978
        %v981 = vunpack.c.l.s4 1966171168
        %v982 = vunpack.c.0.s8 %v981
        %v983 = vlaneseq
        %v984 = vshrl.u32 %v983, 7
        %v985 = vsub.s32 %v982, %v984
        %v986 = vrot.slane %v566, %v985
        %v987 = vcombine.high %v986, %v986
        %v989 = vunpack.c.l.s4 1966171168
        %v990 = vunpack.c.0.s8 %v989
        %v991 = vlaneseq
        %v992 = vshrl.u32 %v991, 7
        %v993 = vsub.s32 %v990, %v992
        %v994 = vrot.slane %v986, %v993
        %v996 = vunpack.c.l.s4 1966171168
        %v997 = vunpack.c.0.s8 %v996
        %v998 = vlaneseq
        %v999 = vshrl.u32 %v998, 7
        %v1000 = vsub.s32 %v997, %v999
        %v1001 = vrot.slane %v987, %v1000
        %v1002 = vcombine.high %v994, %v994
        %v1003 = vcombine.high %v1001, %v1001
        %v1005 = vunpack.c.l.s4 1966171168
        %v1006 = vunpack.c.0.s8 %v1005
        %v1007 = vlaneseq
        %v1008 = vshrl.u32 %v1007, 7
        %v1009 = vsub.s32 %v1006, %v1008
        %v1010 = vrot.slane %v567, %v1009
        %v1011 = vcombine.high %v1010, %v1010
        %v1013 = vunpack.c.l.s4 1966171168
        %v1014 = vunpack.c.0.s8 %v1013
        %v1015 = vlaneseq
        %v1016 = vshrl.u32 %v1015, 7
        %v1017 = vsub.s32 %v1014, %v1016
        %v1018 = vrot.slane %v1010, %v1017
        %v1020 = vunpack.c.l.s4 1966171168
        %v1021 = vunpack.c.0.s8 %v1020
        %v1022 = vlaneseq
        %v1023 = vshrl.u32 %v1022, 7
        %v1024 = vsub.s32 %v1021, %v1023
        %v1025 = vrot.slane %v1011, %v1024
        %v1026 = vcombine.high %v1018, %v1018
        %v1027 = vcombine.high %v1025, %v1025
        %v1029 = vunpack.c.l.s4 1966171168
        %v1030 = vunpack.c.0.s8 %v1029
        %v1031 = vlaneseq
        %v1032 = vshrl.u32 %v1031, 7
        %v1033 = vsub.s32 %v1030, %v1032
        %v1034 = vrot.slane %v568, %v1033
        %v1036 = vunpack.c.l.s4 1966171168
        %v1037 = vunpack.c.0.s8 %v1036
        %v1038 = vlaneseq
        %v1039 = vshrl.u32 %v1038, 7
        %v1040 = vsub.s32 %v1037, %v1039
        %v1041 = vrot.slane %v1034, %v1040
        %v1043 = vunpack.c.l.s4 1966171168
        %v1044 = vunpack.c.0.s8 %v1043
        %v1045 = vlaneseq
        %v1046 = vshrl.u32 %v1045, 7
        %v1047 = vsub.s32 %v1044, %v1046
        %v1048 = vrot.slane %v569, %v1047
        %v1049 = vcombine.high %v1048, %v1048
        %v1051 = vunpack.c.l.s4 1966171168
        %v1052 = vunpack.c.0.s8 %v1051
        %v1053 = vlaneseq
        %v1054 = vshrl.u32 %v1053, 7
        %v1055 = vsub.s32 %v1052, %v1054
        %v1056 = vrot.slane %v1048, %v1055
        %v1058 = vunpack.c.l.s4 1966171168
        %v1059 = vunpack.c.0.s8 %v1058
        %v1060 = vlaneseq
        %v1061 = vshrl.u32 %v1060, 7
        %v1062 = vsub.s32 %v1059, %v1061
        %v1063 = vrot.slane %v1049, %v1062
        %v1064 = vcombine.high %v1056, %v1056
        %v1065 = vcombine.high %v1063, %v1063
        %v1067 = vunpack.c.l.s4 1966171168
        %v1068 = vunpack.c.0.s8 %v1067
        %v1069 = vlaneseq
        %v1070 = vshrl.u32 %v1069, 7
        %v1071 = vsub.s32 %v1068, %v1070
        %v1072 = vrot.slane %v570, %v1071
        %v1073 = vcombine.high %v1072, %v1072
        %v1075 = vunpack.c.l.s4 1966171168
        %v1076 = vunpack.c.0.s8 %v1075
        %v1077 = vlaneseq
        %v1078 = vshrl.u32 %v1077, 7
        %v1079 = vsub.s32 %v1076, %v1078
        %v1080 = vrot.slane %v1072, %v1079
        %v1082 = vunpack.c.l.s4 1966171168
        %v1083 = vunpack.c.0.s8 %v1082
        %v1084 = vlaneseq
        %v1085 = vshrl.u32 %v1084, 7
        %v1086 = vsub.s32 %v1083, %v1085
        %v1087 = vrot.slane %v1073, %v1086
        %v1088 = vcombine.high %v1080, %v1080
        %v1089 = vcombine.high %v1087, %v1087
        %v1091 = vunpack.c.l.s4 1966171168
        %v1092 = vunpack.c.0.s8 %v1091
        %v1093 = vlaneseq
        %v1094 = vshrl.u32 %v1093, 7
        %v1095 = vsub.s32 %v1092, %v1094
        %v1096 = vrot.slane %v571, %v1095
        %v1098 = vunpack.c.l.s4 1966171168
        %v1099 = vunpack.c.0.s8 %v1098
        %v1100 = vlaneseq
        %v1101 = vshrl.u32 %v1100, 7
        %v1102 = vsub.s32 %v1099, %v1101
        %v1103 = vrot.slane %v1096, %v1102
        %v1105 = vunpack.c.l.s4 1966171168
        %v1106 = vunpack.c.0.s8 %v1105
        %v1107 = vlaneseq
        %v1108 = vshrl.u32 %v1107, 7
        %v1109 = vsub.s32 %v1106, %v1108
        %v1110 = vrot.slane %v572, %v1109
        %v1111 = vcombine.high %v1110, %v1110
        %v1113 = vunpack.c.l.s4 1966171168
        %v1114 = vunpack.c.0.s8 %v1113
        %v1115 = vlaneseq
        %v1116 = vshrl.u32 %v1115, 7
        %v1117 = vsub.s32 %v1114, %v1116
        %v1118 = vrot.slane %v1110, %v1117
        %v1120 = vunpack.c.l.s4 1966171168
        %v1121 = vunpack.c.0.s8 %v1120
        %v1122 = vlaneseq
        %v1123 = vshrl.u32 %v1122, 7
        %v1124 = vsub.s32 %v1121, %v1123
        %v1125 = vrot.slane %v1111, %v1124
        %v1126 = vcombine.high %v1118, %v1118
        %v1127 = vcombine.high %v1125, %v1125
        %v1129 = vunpack.c.l.s4 1966171168
        %v1130 = vunpack.c.0.s8 %v1129
        %v1131 = vlaneseq
        %v1132 = vshrl.u32 %v1131, 7
        %v1133 = vsub.s32 %v1130, %v1132
        %v1134 = vrot.slane %v573, %v1133
        %v1135 = vcombine.high %v1134, %v1134
        %v1137 = vunpack.c.l.s4 1966171168
        %v1138 = vunpack.c.0.s8 %v1137
        %v1139 = vlaneseq
        %v1140 = vshrl.u32 %v1139, 7
        %v1141 = vsub.s32 %v1138, %v1140
        %v1142 = vrot.slane %v1134, %v1141
        %v1144 = vunpack.c.l.s4 1966171168
        %v1145 = vunpack.c.0.s8 %v1144
        %v1146 = vlaneseq
        %v1147 = vshrl.u32 %v1146, 7
        %v1148 = vsub.s32 %v1145, %v1147
        %v1149 = vrot.slane %v1135, %v1148
        %v1150 = vcombine.high %v1142, %v1142
        %v1151 = vcombine.high %v1149, %v1149
        %v1153 = vunpack.c.l.s4 1966171168
        %v1154 = vunpack.c.0.s8 %v1153
        %v1155 = vlaneseq
        %v1156 = vshrl.u32 %v1155, 7
        %v1157 = vsub.s32 %v1154, %v1156
        %v1158 = vrot.slane %v574, %v1157
        %v1160 = vunpack.c.l.s4 1966171168
        %v1161 = vunpack.c.0.s8 %v1160
        %v1162 = vlaneseq
        %v1163 = vshrl.u32 %v1162, 7
        %v1164 = vsub.s32 %v1161, %v1163
        %v1165 = vrot.slane %v1158, %v1164
        %v1167 = vunpack.c.l.s4 1966171168
        %v1168 = vunpack.c.0.s8 %v1167
        %v1169 = vlaneseq
        %v1170 = vshrl.u32 %v1169, 7
        %v1171 = vsub.s32 %v1168, %v1170
        %v1172 = vrot.slane %v575, %v1171
        %v1173 = vcombine.high %v1172, %v1172
        %v1175 = vunpack.c.l.s4 1966171168
        %v1176 = vunpack.c.0.s8 %v1175
        %v1177 = vlaneseq
        %v1178 = vshrl.u32 %v1177, 7
        %v1179 = vsub.s32 %v1176, %v1178
        %v1180 = vrot.slane %v1172, %v1179
        %v1182 = vunpack.c.l.s4 1966171168
        %v1183 = vunpack.c.0.s8 %v1182
        %v1184 = vlaneseq
        %v1185 = vshrl.u32 %v1184, 7
        %v1186 = vsub.s32 %v1183, %v1185
        %v1187 = vrot.slane %v1173, %v1186
        %v1188 = vcombine.high %v1180, %v1180
        %v1189 = vcombine.high %v1187, %v1187
        %v1191 = vunpack.c.l.s4 1966171168
        %v1192 = vunpack.c.0.s8 %v1191
        %v1193 = vlaneseq
        %v1194 = vshrl.u32 %v1193, 7
        %v1195 = vsub.s32 %v1192, %v1194
        %v1196 = vrot.slane %v576, %v1195
        %v1197 = vcombine.high %v1196, %v1196
        %v1199 = vunpack.c.l.s4 1966171168
        %v1200 = vunpack.c.0.s8 %v1199
        %v1201 = vlaneseq
        %v1202 = vshrl.u32 %v1201, 7
        %v1203 = vsub.s32 %v1200, %v1202
        %v1204 = vrot.slane %v1196, %v1203
        %v1206 = vunpack.c.l.s4 1966171168
        %v1207 = vunpack.c.0.s8 %v1206
        %v1208 = vlaneseq
        %v1209 = vshrl.u32 %v1208, 7
        %v1210 = vsub.s32 %v1207, %v1209
        %v1211 = vrot.slane %v1197, %v1210
        %v1212 = vcombine.high %v1204, %v1204
        %v1213 = vcombine.high %v1211, %v1211
        %v1215 = vunpack.c.l.s4 1966171168
        %v1216 = vunpack.c.0.s8 %v1215
        %v1217 = vlaneseq
        %v1218 = vshrl.u32 %v1217, 7
        %v1219 = vsub.s32 %v1216, %v1218
        %v1220 = vrot.slane %v577, %v1219
        %v1222 = vunpack.c.l.s4 1966171168
        %v1223 = vunpack.c.0.s8 %v1222
        %v1224 = vlaneseq
        %v1225 = vshrl.u32 %v1224, 7
        %v1226 = vsub.s32 %v1223, %v1225
        %v1227 = vrot.slane %v1220, %v1226
        %v1228 = vld [vmem:[%s3] sm:$0xf]
        %v1229 = vld [vmem:[%s6] sm:$0x1]
        %v1231 = vlaneseq
        %v1232 = vshrl.u32 %v1231, 7
        %v1233 = vsub.s32 0, %v1232
        %v1234 = vrot.slane %v1229, %v1233
        %v1236 = vcombine.low %v622, %v629
        %v1237 = vcombine.low %v630, %v631
        %v1238 = vcombine.low %v646, %v653
        %v1239 = vcombine.low %v654, %v655
        %v1241 = vunpack.c.l.s4 1966171168
        %v1242 = vunpack.c.0.s8 %v1241
        %v1243 = vlaneseq
        %v1244 = vshrl.u32 %v1243, 7
        %v1245 = vsub.s32 %v1242, %v1244
        %v1246 = vrot.slane %v1236, %v1245
        %v1248 = vunpack.c.l.s4 1966171168
        %v1249 = vunpack.c.0.s8 %v1248
        %v1250 = vlaneseq
        %v1251 = vshrl.u32 %v1250, 7
        %v1252 = vsub.s32 %v1249, %v1251
        %v1253 = vrot.slane %v1237, %v1252
        %v1255 = vunpack.c.l.s4 1966171168
        %v1256 = vunpack.c.0.s8 %v1255
        %v1257 = vlaneseq
        %v1258 = vshrl.u32 %v1257, 7
        %v1259 = vsub.s32 %v1256, %v1258
        %v1260 = vrot.slane %v1238, %v1259
        %v1262 = vunpack.c.l.s4 1966171168
        %v1263 = vunpack.c.0.s8 %v1262
        %v1264 = vlaneseq
        %v1265 = vshrl.u32 %v1264, 7
        %v1266 = vsub.s32 %v1263, %v1265
        %v1267 = vrot.slane %v1239, %v1266
        %v1268 = vcombine.low %v1246, %v1253
        %v1269 = vcombine.low %v1260, %v1267
        %v1271 = vunpack.c.l.s4 1966171168
        %v1272 = vunpack.c.0.s8 %v1271
        %v1273 = vlaneseq
        %v1274 = vshrl.u32 %v1273, 7
        %v1275 = vsub.s32 %v1272, %v1274
        %v1276 = vrot.slane %v1268, %v1275
        %v1278 = vunpack.c.l.s4 1966171168
        %v1279 = vunpack.c.0.s8 %v1278
        %v1280 = vlaneseq
        %v1281 = vshrl.u32 %v1280, 7
        %v1282 = vsub.s32 %v1279, %v1281
        %v1283 = vrot.slane %v1269, %v1282
        %v1284 = vcombine.low %v1276, %v1283
        %v1285 = vcombine.low %v669, %v684
        %v1286 = vcombine.low %v691, %v692
        %v1287 = vcombine.low %v693, %v708
        %v1288 = vcombine.low %v715, %v716
        %v1290 = vunpack.c.l.s4 1966171168
        %v1291 = vunpack.c.0.s8 %v1290
        %v1292 = vlaneseq
        %v1293 = vshrl.u32 %v1292, 7
        %v1294 = vsub.s32 %v1291, %v1293
        %v1295 = vrot.slane %v1285, %v1294
        %v1297 = vunpack.c.l.s4 1966171168
        %v1298 = vunpack.c.0.s8 %v1297
        %v1299 = vlaneseq
        %v1300 = vshrl.u32 %v1299, 7
        %v1301 = vsub.s32 %v1298, %v1300
        %v1302 = vrot.slane %v1286, %v1301
        %v1304 = vunpack.c.l.s4 1966171168
        %v1305 = vunpack.c.0.s8 %v1304
        %v1306 = vlaneseq
        %v1307 = vshrl.u32 %v1306, 7
        %v1308 = vsub.s32 %v1305, %v1307
        %v1309 = vrot.slane %v1287, %v1308
        %v1311 = vunpack.c.l.s4 1966171168
        %v1312 = vunpack.c.0.s8 %v1311
        %v1313 = vlaneseq
        %v1314 = vshrl.u32 %v1313, 7
        %v1315 = vsub.s32 %v1312, %v1314
        %v1316 = vrot.slane %v1288, %v1315
        %v1317 = vcombine.low %v1295, %v1302
        %v1318 = vcombine.low %v1309, %v1316
        %v1320 = vunpack.c.l.s4 1966171168
        %v1321 = vunpack.c.0.s8 %v1320
        %v1322 = vlaneseq
        %v1323 = vshrl.u32 %v1322, 7
        %v1324 = vsub.s32 %v1321, %v1323
        %v1325 = vrot.slane %v1317, %v1324
        %v1327 = vunpack.c.l.s4 1966171168
        %v1328 = vunpack.c.0.s8 %v1327
        %v1329 = vlaneseq
        %v1330 = vshrl.u32 %v1329, 7
        %v1331 = vsub.s32 %v1328, %v1330
        %v1332 = vrot.slane %v1318, %v1331
        %v1333 = vcombine.low %v1325, %v1332
        %v1334 = vcombine.low %v717, %v731
        %v1335 = vcombine.low %v746, %v753
        %v1336 = vcombine.low %v754, %v755
        %v1337 = vcombine.low %v770, %v777
        %v1339 = vunpack.c.l.s4 1966171168
        %v1340 = vunpack.c.0.s8 %v1339
        %v1341 = vlaneseq
        %v1342 = vshrl.u32 %v1341, 7
        %v1343 = vsub.s32 %v1340, %v1342
        %v1344 = vrot.slane %v1334, %v1343
        %v1346 = vunpack.c.l.s4 1966171168
        %v1347 = vunpack.c.0.s8 %v1346
        %v1348 = vlaneseq
        %v1349 = vshrl.u32 %v1348, 7
        %v1350 = vsub.s32 %v1347, %v1349
        %v1351 = vrot.slane %v1335, %v1350
        %v1353 = vunpack.c.l.s4 1966171168
        %v1354 = vunpack.c.0.s8 %v1353
        %v1355 = vlaneseq
        %v1356 = vshrl.u32 %v1355, 7
        %v1357 = vsub.s32 %v1354, %v1356
        %v1358 = vrot.slane %v1336, %v1357
        %v1360 = vunpack.c.l.s4 1966171168
        %v1361 = vunpack.c.0.s8 %v1360
        %v1362 = vlaneseq
        %v1363 = vshrl.u32 %v1362, 7
        %v1364 = vsub.s32 %v1361, %v1363
        %v1365 = vrot.slane %v1337, %v1364
        %v1366 = vcombine.low %v1344, %v1351
        %v1367 = vcombine.low %v1358, %v1365
        %v1369 = vunpack.c.l.s4 1966171168
        %v1370 = vunpack.c.0.s8 %v1369
        %v1371 = vlaneseq
        %v1372 = vshrl.u32 %v1371, 7
        %v1373 = vsub.s32 %v1370, %v1372
        %v1374 = vrot.slane %v1366, %v1373
        %v1376 = vunpack.c.l.s4 1966171168
        %v1377 = vunpack.c.0.s8 %v1376
        %v1378 = vlaneseq
        %v1379 = vshrl.u32 %v1378, 7
        %v1380 = vsub.s32 %v1377, %v1379
        %v1381 = vrot.slane %v1367, %v1380
        %v1382 = vcombine.low %v1374, %v1381
        %v1383 = vcombine.low %v778, %v779
        %v1384 = vcombine.low %v793, %v808
        %v1385 = vcombine.low %v815, %v816
        %v1386 = vcombine.low %v817, %v832
        %v1388 = vunpack.c.l.s4 1966171168
        %v1389 = vunpack.c.0.s8 %v1388
        %v1390 = vlaneseq
        %v1391 = vshrl.u32 %v1390, 7
        %v1392 = vsub.s32 %v1389, %v1391
        %v1393 = vrot.slane %v1383, %v1392
        %v1395 = vunpack.c.l.s4 1966171168
        %v1396 = vunpack.c.0.s8 %v1395
        %v1397 = vlaneseq
        %v1398 = vshrl.u32 %v1397, 7
        %v1399 = vsub.s32 %v1396, %v1398
        %v1400 = vrot.slane %v1384, %v1399
        %v1402 = vunpack.c.l.s4 1966171168
        %v1403 = vunpack.c.0.s8 %v1402
        %v1404 = vlaneseq
        %v1405 = vshrl.u32 %v1404, 7
        %v1406 = vsub.s32 %v1403, %v1405
        %v1407 = vrot.slane %v1385, %v1406
        %v1409 = vunpack.c.l.s4 1966171168
        %v1410 = vunpack.c.0.s8 %v1409
        %v1411 = vlaneseq
        %v1412 = vshrl.u32 %v1411, 7
        %v1413 = vsub.s32 %v1410, %v1412
        %v1414 = vrot.slane %v1386, %v1413
        %v1415 = vcombine.low %v1393, %v1400
        %v1416 = vcombine.low %v1407, %v1414
        %v1418 = vunpack.c.l.s4 1966171168
        %v1419 = vunpack.c.0.s8 %v1418
        %v1420 = vlaneseq
        %v1421 = vshrl.u32 %v1420, 7
        %v1422 = vsub.s32 %v1419, %v1421
        %v1423 = vrot.slane %v1415, %v1422
        %v1425 = vunpack.c.l.s4 1966171168
        %v1426 = vunpack.c.0.s8 %v1425
        %v1427 = vlaneseq
        %v1428 = vshrl.u32 %v1427, 7
        %v1429 = vsub.s32 %v1426, %v1428
        %v1430 = vrot.slane %v1416, %v1429
        %v1431 = vcombine.low %v1423, %v1430
        %v1432 = vcombine.low %v839, %v840
        %v1433 = vcombine.low %v841, %v855
        %v1434 = vcombine.low %v870, %v877
        %v1435 = vcombine.low %v878, %v879
        %v1437 = vunpack.c.l.s4 1966171168
        %v1438 = vunpack.c.0.s8 %v1437
        %v1439 = vlaneseq
        %v1440 = vshrl.u32 %v1439, 7
        %v1441 = vsub.s32 %v1438, %v1440
        %v1442 = vrot.slane %v1432, %v1441
        %v1444 = vunpack.c.l.s4 1966171168
        %v1445 = vunpack.c.0.s8 %v1444
        %v1446 = vlaneseq
        %v1447 = vshrl.u32 %v1446, 7
        %v1448 = vsub.s32 %v1445, %v1447
        %v1449 = vrot.slane %v1433, %v1448
        %v1451 = vunpack.c.l.s4 1966171168
        %v1452 = vunpack.c.0.s8 %v1451
        %v1453 = vlaneseq
        %v1454 = vshrl.u32 %v1453, 7
        %v1455 = vsub.s32 %v1452, %v1454
        %v1456 = vrot.slane %v1434, %v1455
        %v1458 = vunpack.c.l.s4 1966171168
        %v1459 = vunpack.c.0.s8 %v1458
        %v1460 = vlaneseq
        %v1461 = vshrl.u32 %v1460, 7
        %v1462 = vsub.s32 %v1459, %v1461
        %v1463 = vrot.slane %v1435, %v1462
        %v1464 = vcombine.low %v1442, %v1449
        %v1465 = vcombine.low %v1456, %v1463
        %v1467 = vunpack.c.l.s4 1966171168
        %v1468 = vunpack.c.0.s8 %v1467
        %v1469 = vlaneseq
        %v1470 = vshrl.u32 %v1469, 7
        %v1471 = vsub.s32 %v1468, %v1470
        %v1472 = vrot.slane %v1464, %v1471
        %v1474 = vunpack.c.l.s4 1966171168
        %v1475 = vunpack.c.0.s8 %v1474
        %v1476 = vlaneseq
        %v1477 = vshrl.u32 %v1476, 7
        %v1478 = vsub.s32 %v1475, %v1477
        %v1479 = vrot.slane %v1465, %v1478
        %v1480 = vcombine.low %v1472, %v1479
        %v1481 = vcombine.low %v894, %v901
        %v1482 = vcombine.low %v902, %v903
        %v1483 = vcombine.low %v917, %v932
        %v1484 = vcombine.low %v939, %v940
        %v1486 = vunpack.c.l.s4 1966171168
        %v1487 = vunpack.c.0.s8 %v1486
        %v1488 = vlaneseq
        %v1489 = vshrl.u32 %v1488, 7
        %v1490 = vsub.s32 %v1487, %v1489
        %v1491 = vrot.slane %v1481, %v1490
        %v1493 = vunpack.c.l.s4 1966171168
        %v1494 = vunpack.c.0.s8 %v1493
        %v1495 = vlaneseq
        %v1496 = vshrl.u32 %v1495, 7
        %v1497 = vsub.s32 %v1494, %v1496
        %v1498 = vrot.slane %v1482, %v1497
        %v1500 = vunpack.c.l.s4 1966171168
        %v1501 = vunpack.c.0.s8 %v1500
        %v1502 = vlaneseq
        %v1503 = vshrl.u32 %v1502, 7
        %v1504 = vsub.s32 %v1501, %v1503
        %v1505 = vrot.slane %v1483, %v1504
        %v1507 = vunpack.c.l.s4 1966171168
        %v1508 = vunpack.c.0.s8 %v1507
        %v1509 = vlaneseq
        %v1510 = vshrl.u32 %v1509, 7
        %v1511 = vsub.s32 %v1508, %v1510
        %v1512 = vrot.slane %v1484, %v1511
        %v1513 = vcombine.low %v1491, %v1498
        %v1514 = vcombine.low %v1505, %v1512
        %v1516 = vunpack.c.l.s4 1966171168
        %v1517 = vunpack.c.0.s8 %v1516
        %v1518 = vlaneseq
        %v1519 = vshrl.u32 %v1518, 7
        %v1520 = vsub.s32 %v1517, %v1519
        %v1521 = vrot.slane %v1513, %v1520
        %v1523 = vunpack.c.l.s4 1966171168
        %v1524 = vunpack.c.0.s8 %v1523
        %v1525 = vlaneseq
        %v1526 = vshrl.u32 %v1525, 7
        %v1527 = vsub.s32 %v1524, %v1526
        %v1528 = vrot.slane %v1514, %v1527
        %v1529 = vcombine.low %v1521, %v1528
        %v1530 = vcombine.low %v941, %v956
        %v1531 = vcombine.low %v963, %v964
        %v1532 = vcombine.low %v965, %v979
        %v1533 = vcombine.low %v994, %v1001
        %v1535 = vunpack.c.l.s4 1966171168
        %v1536 = vunpack.c.0.s8 %v1535
        %v1537 = vlaneseq
        %v1538 = vshrl.u32 %v1537, 7
        %v1539 = vsub.s32 %v1536, %v1538
        %v1540 = vrot.slane %v1530, %v1539
        %v1542 = vunpack.c.l.s4 1966171168
        %v1543 = vunpack.c.0.s8 %v1542
        %v1544 = vlaneseq
        %v1545 = vshrl.u32 %v1544, 7
        %v1546 = vsub.s32 %v1543, %v1545
        %v1547 = vrot.slane %v1531, %v1546
        %v1549 = vunpack.c.l.s4 1966171168
        %v1550 = vunpack.c.0.s8 %v1549
        %v1551 = vlaneseq
        %v1552 = vshrl.u32 %v1551, 7
        %v1553 = vsub.s32 %v1550, %v1552
        %v1554 = vrot.slane %v1532, %v1553
        %v1556 = vunpack.c.l.s4 1966171168
        %v1557 = vunpack.c.0.s8 %v1556
        %v1558 = vlaneseq
        %v1559 = vshrl.u32 %v1558, 7
        %v1560 = vsub.s32 %v1557, %v1559
        %v1561 = vrot.slane %v1533, %v1560
        %v1562 = vcombine.low %v1540, %v1547
        %v1563 = vcombine.low %v1554, %v1561
        %v1565 = vunpack.c.l.s4 1966171168
        %v1566 = vunpack.c.0.s8 %v1565
        %v1567 = vlaneseq
        %v1568 = vshrl.u32 %v1567, 7
        %v1569 = vsub.s32 %v1566, %v1568
        %v1570 = vrot.slane %v1562, %v1569
        %v1572 = vunpack.c.l.s4 1966171168
        %v1573 = vunpack.c.0.s8 %v1572
        %v1574 = vlaneseq
        %v1575 = vshrl.u32 %v1574, 7
        %v1576 = vsub.s32 %v1573, %v1575
        %v1577 = vrot.slane %v1563, %v1576
        %v1578 = vcombine.low %v1570, %v1577
        %v1579 = vcombine.low %v1002, %v1003
        %v1580 = vcombine.low %v1018, %v1025
        %v1581 = vcombine.low %v1026, %v1027
        %v1582 = vcombine.low %v1041, %v1056
        %v1584 = vunpack.c.l.s4 1966171168
        %v1585 = vunpack.c.0.s8 %v1584
        %v1586 = vlaneseq
        %v1587 = vshrl.u32 %v1586, 7
        %v1588 = vsub.s32 %v1585, %v1587
        %v1589 = vrot.slane %v1579, %v1588
        %v1591 = vunpack.c.l.s4 1966171168
        %v1592 = vunpack.c.0.s8 %v1591
        %v1593 = vlaneseq
        %v1594 = vshrl.u32 %v1593, 7
        %v1595 = vsub.s32 %v1592, %v1594
        %v1596 = vrot.slane %v1580, %v1595
        %v1598 = vunpack.c.l.s4 1966171168
        %v1599 = vunpack.c.0.s8 %v1598
        %v1600 = vlaneseq
        %v1601 = vshrl.u32 %v1600, 7
        %v1602 = vsub.s32 %v1599, %v1601
        %v1603 = vrot.slane %v1581, %v1602
        %v1605 = vunpack.c.l.s4 1966171168
        %v1606 = vunpack.c.0.s8 %v1605
        %v1607 = vlaneseq
        %v1608 = vshrl.u32 %v1607, 7
        %v1609 = vsub.s32 %v1606, %v1608
        %v1610 = vrot.slane %v1582, %v1609
        %v1611 = vcombine.low %v1589, %v1596
        %v1612 = vcombine.low %v1603, %v1610
        %v1614 = vunpack.c.l.s4 1966171168
        %v1615 = vunpack.c.0.s8 %v1614
        %v1616 = vlaneseq
        %v1617 = vshrl.u32 %v1616, 7
        %v1618 = vsub.s32 %v1615, %v1617
        %v1619 = vrot.slane %v1611, %v1618
        %v1621 = vunpack.c.l.s4 1966171168
        %v1622 = vunpack.c.0.s8 %v1621
        %v1623 = vlaneseq
        %v1624 = vshrl.u32 %v1623, 7
        %v1625 = vsub.s32 %v1622, %v1624
        %v1626 = vrot.slane %v1612, %v1625
        %v1627 = vcombine.low %v1619, %v1626
        %v1628 = vcombine.low %v1063, %v1064
        %v1629 = vcombine.low %v1065, %v1080
        %v1630 = vcombine.low %v1087, %v1088
        %v1631 = vcombine.low %v1089, %v1103
        %v1633 = vunpack.c.l.s4 1966171168
        %v1634 = vunpack.c.0.s8 %v1633
        %v1635 = vlaneseq
        %v1636 = vshrl.u32 %v1635, 7
        %v1637 = vsub.s32 %v1634, %v1636
        %v1638 = vrot.slane %v1628, %v1637
        %v1640 = vunpack.c.l.s4 1966171168
        %v1641 = vunpack.c.0.s8 %v1640
        %v1642 = vlaneseq
        %v1643 = vshrl.u32 %v1642, 7
        %v1644 = vsub.s32 %v1641, %v1643
        %v1645 = vrot.slane %v1629, %v1644
        %v1647 = vunpack.c.l.s4 1966171168
        %v1648 = vunpack.c.0.s8 %v1647
        %v1649 = vlaneseq
        %v1650 = vshrl.u32 %v1649, 7
        %v1651 = vsub.s32 %v1648, %v1650
        %v1652 = vrot.slane %v1630, %v1651
        %v1654 = vunpack.c.l.s4 1966171168
        %v1655 = vunpack.c.0.s8 %v1654
        %v1656 = vlaneseq
        %v1657 = vshrl.u32 %v1656, 7
        %v1658 = vsub.s32 %v1655, %v1657
        %v1659 = vrot.slane %v1631, %v1658
        %v1660 = vcombine.low %v1638, %v1645
        %v1661 = vcombine.low %v1652, %v1659
        %v1663 = vunpack.c.l.s4 1966171168
        %v1664 = vunpack.c.0.s8 %v1663
        %v1665 = vlaneseq
        %v1666 = vshrl.u32 %v1665, 7
        %v1667 = vsub.s32 %v1664, %v1666
        %v1668 = vrot.slane %v1660, %v1667
        %v1670 = vunpack.c.l.s4 1966171168
        %v1671 = vunpack.c.0.s8 %v1670
        %v1672 = vlaneseq
        %v1673 = vshrl.u32 %v1672, 7
        %v1674 = vsub.s32 %v1671, %v1673
        %v1675 = vrot.slane %v1661, %v1674
        %v1676 = vcombine.low %v1668, %v1675
        %v1677 = vcombine.low %v1118, %v1125
        %v1678 = vcombine.low %v1126, %v1127
        %v1679 = vcombine.low %v1142, %v1149
        %v1680 = vcombine.low %v1150, %v1151
        %v1682 = vunpack.c.l.s4 1966171168
        %v1683 = vunpack.c.0.s8 %v1682
        %v1684 = vlaneseq
        %v1685 = vshrl.u32 %v1684, 7
        %v1686 = vsub.s32 %v1683, %v1685
        %v1687 = vrot.slane %v1677, %v1686
        %v1689 = vunpack.c.l.s4 1966171168
        %v1690 = vunpack.c.0.s8 %v1689
        %v1691 = vlaneseq
        %v1692 = vshrl.u32 %v1691, 7
        %v1693 = vsub.s32 %v1690, %v1692
        %v1694 = vrot.slane %v1678, %v1693
        %v1696 = vunpack.c.l.s4 1966171168
        %v1697 = vunpack.c.0.s8 %v1696
        %v1698 = vlaneseq
        %v1699 = vshrl.u32 %v1698, 7
        %v1700 = vsub.s32 %v1697, %v1699
        %v1701 = vrot.slane %v1679, %v1700
        %v1703 = vunpack.c.l.s4 1966171168
        %v1704 = vunpack.c.0.s8 %v1703
        %v1705 = vlaneseq
        %v1706 = vshrl.u32 %v1705, 7
        %v1707 = vsub.s32 %v1704, %v1706
        %v1708 = vrot.slane %v1680, %v1707
        %v1709 = vcombine.low %v1687, %v1694
        %v1710 = vcombine.low %v1701, %v1708
        %v1712 = vunpack.c.l.s4 1966171168
        %v1713 = vunpack.c.0.s8 %v1712
        %v1714 = vlaneseq
        %v1715 = vshrl.u32 %v1714, 7
        %v1716 = vsub.s32 %v1713, %v1715
        %v1717 = vrot.slane %v1709, %v1716
        %v1719 = vunpack.c.l.s4 1966171168
        %v1720 = vunpack.c.0.s8 %v1719
        %v1721 = vlaneseq
        %v1722 = vshrl.u32 %v1721, 7
        %v1723 = vsub.s32 %v1720, %v1722
        %v1724 = vrot.slane %v1710, %v1723
        %v1725 = vcombine.low %v1717, %v1724
        %v1726 = vcombine.low %v1165, %v1180
        %v1727 = vcombine.low %v1187, %v1188
        %v1728 = vcombine.low %v1189, %v1204
        %v1729 = vcombine.low %v1211, %v1212
        %v1731 = vunpack.c.l.s4 1966171168
        %v1732 = vunpack.c.0.s8 %v1731
        %v1733 = vlaneseq
        %v1734 = vshrl.u32 %v1733, 7
        %v1735 = vsub.s32 %v1732, %v1734
        %v1736 = vrot.slane %v1726, %v1735
        %v1738 = vunpack.c.l.s4 1966171168
        %v1739 = vunpack.c.0.s8 %v1738
        %v1740 = vlaneseq
        %v1741 = vshrl.u32 %v1740, 7
        %v1742 = vsub.s32 %v1739, %v1741
        %v1743 = vrot.slane %v1727, %v1742
        %v1745 = vunpack.c.l.s4 1966171168
        %v1746 = vunpack.c.0.s8 %v1745
        %v1747 = vlaneseq
        %v1748 = vshrl.u32 %v1747, 7
        %v1749 = vsub.s32 %v1746, %v1748
        %v1750 = vrot.slane %v1728, %v1749
        %v1752 = vunpack.c.l.s4 1966171168
        %v1753 = vunpack.c.0.s8 %v1752
        %v1754 = vlaneseq
        %v1755 = vshrl.u32 %v1754, 7
        %v1756 = vsub.s32 %v1753, %v1755
        %v1757 = vrot.slane %v1729, %v1756
        %v1758 = vcombine.low %v1736, %v1743
        %v1759 = vcombine.low %v1750, %v1757
        %v1761 = vunpack.c.l.s4 1966171168
        %v1762 = vunpack.c.0.s8 %v1761
        %v1763 = vlaneseq
        %v1764 = vshrl.u32 %v1763, 7
        %v1765 = vsub.s32 %v1762, %v1764
        %v1766 = vrot.slane %v1758, %v1765
        %v1768 = vunpack.c.l.s4 1966171168
        %v1769 = vunpack.c.0.s8 %v1768
        %v1770 = vlaneseq
        %v1771 = vshrl.u32 %v1770, 7
        %v1772 = vsub.s32 %v1769, %v1771
        %v1773 = vrot.slane %v1759, %v1772
        %v1774 = vcombine.low %v1766, %v1773
        %v1775 = vcombine.low %v1213, %v1227
        %v1777 = vunpack.c.l.s4 1966171168
        %v1778 = vunpack.c.0.s8 %v1777
        %v1779 = vlaneseq
        %v1780 = vshrl.u32 %v1779, 7
        %v1781 = vsub.s32 %v1778, %v1780
        %v1782 = vrot.slane %v1775, %v1781
        %v1784 = vunpack.c.l.s4 1966171168
        %v1785 = vunpack.c.0.s8 %v1784
        %v1786 = vlaneseq
        %v1787 = vshrl.u32 %v1786, 7
        %v1788 = vsub.s32 %v1785, %v1787
        %v1789 = vrot.slane %v1782, %v1788
        %vm1790 = vcmask 64512
        %v1792 = vsel %vm1790, %v1284, 0
        %v1795 = vsel %vm1790, %v1333, 0
        %v1798 = vsel %vm1790, %v1382, 0
        %v1801 = vsel %vm1790, %v1431, 0
        %v1804 = vsel %vm1790, %v1480, 0
        %v1807 = vsel %vm1790, %v1529, 0
        %v1810 = vsel %vm1790, %v1578, 0
        %v1813 = vsel %vm1790, %v1627, 0
        %v1816 = vsel %vm1790, %v1676, 0
        %v1819 = vsel %vm1790, %v1725, 0
        %v1822 = vsel %vm1790, %v1774, 0
        %v1825 = vsel %vm1790, %v1789, 0
        %vm1827 = vcmask 1043456
        %v1829 = vsel %vm1827, %v1228, 0
        %1831 = vmatprep.subr.bf16.mxu0 0
        %1832 = vmatpush1.bf16.msra.mxu0 0
        %1833 = vmatprep.subr.bf16.mxu0 0
        %1834 = vmatpush1.bf16.msra.mxu0 0
        %1835 = vmatprep.subr.bf16.mxu0 0
        %1836 = vmatpush1.bf16.msra.mxu0 0
        %1837 = vmatprep.subr.bf16.mxu0 0
        %1838 = vmatpush1.bf16.msra.mxu0 0
        %1839 = vmatprep.subr.bf16.mxu0 0
        %1840 = vmatpush1.bf16.msra.mxu0 0
        %1841 = vmatprep.subr.bf16.mxu0 0
        %1842 = vmatpush1.bf16.msra.mxu0 0
        %1843 = vmatprep.subr.bf16.mxu0 0
        %1844 = vmatpush1.bf16.msra.mxu0 0
        %1845 = vmatprep.subr.bf16.mxu0 0
        %1846 = vmatpush1.bf16.msra.mxu0 %v1829
        %1847 = vmatprep.subr.bf16.mxu0 0
        %1848 = vmatpush2.bf16.msra.mxu0 0
        %1849 = vmatprep.subr.bf16.mxu0 0
        %1850 = vmatpush2.bf16.msra.mxu0 0
        %1851 = vmatprep.subr.bf16.mxu0 0
        %1852 = vmatpush2.bf16.msra.mxu0 0
        %1853 = vmatprep.subr.bf16.mxu0 0
        %1854 = vmatpush2.bf16.msra.mxu0 0
        %1855 = vmatprep.subr.bf16.mxu0 0
        %1856 = vmatpush2.bf16.msra.mxu0 0
        %1857 = vmatprep.subr.bf16.mxu0 0
        %1858 = vmatpush2.bf16.msra.mxu0 0
        %1859 = vmatprep.subr.bf16.mxu0 0
        %1860 = vmatpush2.bf16.msra.mxu0 0
        %1861 = vmatprep.subr.bf16.mxu0 0
        %1862 = vmatpush2.bf16.msra.mxu0 0
        %1863 = vmatprep.mubr.bf16.mxu0 0
        %1864 = vmatmul.mubr.bf16.gmra.mxu0 %v1792
        %v1865 = vpop.f32.mrf.mxu0
        %v1866 = vadd.f32 %v1234, %v1865
        %v1867 = vpop.f32.mrf.mxu0
        %v1868 = vpop.f32.mrf.mxu0
        %v1869 = vadd.f32 %v1234, %v1868
        %v1870 = vpop.f32.mrf.mxu0
        %1871 = vmatprep.mubr.bf16.mxu0 0
        %1872 = vmatmul.mubr.bf16.gmra.mxu0 %v1795
        %v1873 = vpop.f32.mrf.mxu0
        %v1874 = vadd.f32 %v1234, %v1873
        %v1875 = vpop.f32.mrf.mxu0
        %v1876 = vpop.f32.mrf.mxu0
        %v1877 = vadd.f32 %v1234, %v1876
        %v1878 = vpop.f32.mrf.mxu0
        %1879 = vmatprep.mubr.bf16.mxu0 0
        %1880 = vmatmul.mubr.bf16.gmra.mxu0 %v1798
        %v1881 = vpop.f32.mrf.mxu0
        %v1882 = vadd.f32 %v1234, %v1881
        %v1883 = vpop.f32.mrf.mxu0
        %v1884 = vpop.f32.mrf.mxu0
        %v1885 = vadd.f32 %v1234, %v1884
        %v1886 = vpop.f32.mrf.mxu0
        %1887 = vmatprep.mubr.bf16.mxu0 0
        %1888 = vmatmul.mubr.bf16.gmra.mxu0 %v1801
        %v1889 = vpop.f32.mrf.mxu0
        %v1890 = vadd.f32 %v1234, %v1889
        %v1891 = vpop.f32.mrf.mxu0
        %v1892 = vpop.f32.mrf.mxu0
        %v1893 = vadd.f32 %v1234, %v1892
        %v1894 = vpop.f32.mrf.mxu0
        %1895 = vmatprep.mubr.bf16.mxu0 0
        %1896 = vmatmul.mubr.bf16.gmra.mxu0 %v1804
        %v1897 = vpop.f32.mrf.mxu0
        %v1898 = vadd.f32 %v1234, %v1897
        %v1899 = vpop.f32.mrf.mxu0
        %v1900 = vpop.f32.mrf.mxu0
        %v1901 = vadd.f32 %v1234, %v1900
        %v1902 = vpop.f32.mrf.mxu0
        %1903 = vmatprep.mubr.bf16.mxu0 0
        %1904 = vmatmul.mubr.bf16.gmra.mxu0 %v1807
        %v1905 = vpop.f32.mrf.mxu0
        %v1906 = vadd.f32 %v1234, %v1905
        %v1907 = vpop.f32.mrf.mxu0
        %v1908 = vpop.f32.mrf.mxu0
        %v1909 = vadd.f32 %v1234, %v1908
        %v1910 = vpop.f32.mrf.mxu0
        %1911 = vmatprep.mubr.bf16.mxu0 0
        %1912 = vmatmul.mubr.bf16.gmra.mxu0 %v1810
        %v1913 = vpop.f32.mrf.mxu0
        %v1914 = vadd.f32 %v1234, %v1913
        %v1915 = vpop.f32.mrf.mxu0
        %v1916 = vpop.f32.mrf.mxu0
        %v1917 = vadd.f32 %v1234, %v1916
        %v1918 = vpop.f32.mrf.mxu0
        %1919 = vmatprep.mubr.bf16.mxu0 0
        %1920 = vmatmul.mubr.bf16.gmra.mxu0 %v1813
        %v1921 = vpop.f32.mrf.mxu0
        %v1922 = vadd.f32 %v1234, %v1921
        %v1923 = vpop.f32.mrf.mxu0
        %v1924 = vpop.f32.mrf.mxu0
        %v1925 = vadd.f32 %v1234, %v1924
        %v1926 = vpop.f32.mrf.mxu0
        %1927 = vmatprep.mubr.bf16.mxu0 0
        %1928 = vmatmul.mubr.bf16.gmra.mxu0 %v1816
        %v1929 = vpop.f32.mrf.mxu0
        %v1930 = vadd.f32 %v1234, %v1929
        %v1931 = vpop.f32.mrf.mxu0
        %v1932 = vpop.f32.mrf.mxu0
        %v1933 = vadd.f32 %v1234, %v1932
        %v1934 = vpop.f32.mrf.mxu0
        %1935 = vmatprep.mubr.bf16.mxu0 0
        %1936 = vmatmul.mubr.bf16.gmra.mxu0 %v1819
        %v1937 = vpop.f32.mrf.mxu0
        %v1938 = vadd.f32 %v1234, %v1937
        %v1939 = vpop.f32.mrf.mxu0
        %v1940 = vpop.f32.mrf.mxu0
        %v1941 = vadd.f32 %v1234, %v1940
        %v1942 = vpop.f32.mrf.mxu0
        %1943 = vmatprep.mubr.bf16.mxu0 0
        %1944 = vmatmul.mubr.bf16.gmra.mxu0 %v1822
        %v1945 = vpop.f32.mrf.mxu0
        %v1946 = vadd.f32 %v1234, %v1945
        %v1947 = vpop.f32.mrf.mxu0
        %v1948 = vpop.f32.mrf.mxu0
        %v1949 = vadd.f32 %v1234, %v1948
        %v1950 = vpop.f32.mrf.mxu0
        %1951 = vmatprep.mubr.bf16.mxu0 0
        %1952 = vmatmul.mubr.bf16.gmra.mxu0 %v1825
        %v1953 = vpop.f32.mrf.mxu0
        %v1954 = vadd.f32 %v1234, %v1953
        %v1955 = vpop.f32.mrf.mxu0
        %v1956 = vpop.f32.mrf.mxu0
        %v1957 = vpop.f32.mrf.mxu0
        %1958 = vdwg.mxu0
        %v1959 = vmax.f32 %v1866, 0.0
        %v1960 = vmax.f32 %v1869, 0.0
        %v1961 = vmax.f32 %v1874, 0.0
        %v1962 = vmax.f32 %v1877, 0.0
        %v1963 = vmax.f32 %v1882, 0.0
        %v1964 = vmax.f32 %v1885, 0.0
        %v1965 = vmax.f32 %v1890, 0.0
        %v1966 = vmax.f32 %v1893, 0.0
        %v1967 = vmax.f32 %v1898, 0.0
        %v1968 = vmax.f32 %v1901, 0.0
        %v1969 = vmax.f32 %v1906, 0.0
        %v1970 = vmax.f32 %v1909, 0.0
        %v1971 = vmax.f32 %v1914, 0.0
        %v1972 = vmax.f32 %v1917, 0.0
        %v1973 = vmax.f32 %v1922, 0.0
        %v1974 = vmax.f32 %v1925, 0.0
        %v1975 = vmax.f32 %v1930, 0.0
        %v1976 = vmax.f32 %v1933, 0.0
        %v1977 = vmax.f32 %v1938, 0.0
        %v1978 = vmax.f32 %v1941, 0.0
        %v1979 = vmax.f32 %v1946, 0.0
        %v1980 = vmax.f32 %v1949, 0.0
        %v1981 = vmax.f32 %v1954, 0.0
        %v2005 = vcombine.high %v1959, %v1959
        %v2007 = vunpack.c.l.s4 1983009808
        %v2008 = vunpack.c.0.s8 %v2007
        %v2009 = vlaneseq
        %v2010 = vshrl.u32 %v2009, 7
        %v2011 = vsub.s32 %v2008, %v2010
        %v2012 = vrot.slane %v1959, %v2011
        %v2014 = vunpack.c.l.s4 1983009808
        %v2015 = vunpack.c.0.s8 %v2014
        %v2016 = vlaneseq
        %v2017 = vshrl.u32 %v2016, 7
        %v2018 = vsub.s32 %v2015, %v2017
        %v2019 = vrot.slane %v2005, %v2018
        %v2020 = vcombine.high %v2012, %v2012
        %v2021 = vcombine.high %v2019, %v2019
        %v2022 = vcombine.high %v1960, %v1960
        %v2024 = vunpack.c.l.s4 1983009808
        %v2025 = vunpack.c.0.s8 %v2024
        %v2026 = vlaneseq
        %v2027 = vshrl.u32 %v2026, 7
        %v2028 = vsub.s32 %v2025, %v2027
        %v2029 = vrot.slane %v1960, %v2028
        %v2031 = vunpack.c.l.s4 1983009808
        %v2032 = vunpack.c.0.s8 %v2031
        %v2033 = vlaneseq
        %v2034 = vshrl.u32 %v2033, 7
        %v2035 = vsub.s32 %v2032, %v2034
        %v2036 = vrot.slane %v2022, %v2035
        %v2037 = vcombine.high %v2029, %v2029
        %v2038 = vcombine.high %v2036, %v2036
        %v2039 = vcombine.high %v1961, %v1961
        %v2041 = vunpack.c.l.s4 1983009808
        %v2042 = vunpack.c.0.s8 %v2041
        %v2043 = vlaneseq
        %v2044 = vshrl.u32 %v2043, 7
        %v2045 = vsub.s32 %v2042, %v2044
        %v2046 = vrot.slane %v1961, %v2045
        %v2048 = vunpack.c.l.s4 1983009808
        %v2049 = vunpack.c.0.s8 %v2048
        %v2050 = vlaneseq
        %v2051 = vshrl.u32 %v2050, 7
        %v2052 = vsub.s32 %v2049, %v2051
        %v2053 = vrot.slane %v2039, %v2052
        %v2054 = vcombine.high %v2046, %v2046
        %v2055 = vcombine.high %v2053, %v2053
        %v2056 = vcombine.high %v1962, %v1962
        %v2058 = vunpack.c.l.s4 1983009808
        %v2059 = vunpack.c.0.s8 %v2058
        %v2060 = vlaneseq
        %v2061 = vshrl.u32 %v2060, 7
        %v2062 = vsub.s32 %v2059, %v2061
        %v2063 = vrot.slane %v1962, %v2062
        %v2065 = vunpack.c.l.s4 1983009808
        %v2066 = vunpack.c.0.s8 %v2065
        %v2067 = vlaneseq
        %v2068 = vshrl.u32 %v2067, 7
        %v2069 = vsub.s32 %v2066, %v2068
        %v2070 = vrot.slane %v2056, %v2069
        %v2071 = vcombine.high %v2063, %v2063
        %v2072 = vcombine.high %v2070, %v2070
        %v2073 = vcombine.high %v1963, %v1963
        %v2075 = vunpack.c.l.s4 1983009808
        %v2076 = vunpack.c.0.s8 %v2075
        %v2077 = vlaneseq
        %v2078 = vshrl.u32 %v2077, 7
        %v2079 = vsub.s32 %v2076, %v2078
        %v2080 = vrot.slane %v1963, %v2079
        %v2082 = vunpack.c.l.s4 1983009808
        %v2083 = vunpack.c.0.s8 %v2082
        %v2084 = vlaneseq
        %v2085 = vshrl.u32 %v2084, 7
        %v2086 = vsub.s32 %v2083, %v2085
        %v2087 = vrot.slane %v2073, %v2086
        %v2088 = vcombine.high %v2080, %v2080
        %v2089 = vcombine.high %v2087, %v2087
        %v2090 = vcombine.high %v1964, %v1964
        %v2092 = vunpack.c.l.s4 1983009808
        %v2093 = vunpack.c.0.s8 %v2092
        %v2094 = vlaneseq
        %v2095 = vshrl.u32 %v2094, 7
        %v2096 = vsub.s32 %v2093, %v2095
        %v2097 = vrot.slane %v1964, %v2096
        %v2099 = vunpack.c.l.s4 1983009808
        %v2100 = vunpack.c.0.s8 %v2099
        %v2101 = vlaneseq
        %v2102 = vshrl.u32 %v2101, 7
        %v2103 = vsub.s32 %v2100, %v2102
        %v2104 = vrot.slane %v2090, %v2103
        %v2105 = vcombine.high %v2097, %v2097
        %v2106 = vcombine.high %v2104, %v2104
        %v2107 = vcombine.high %v1965, %v1965
        %v2109 = vunpack.c.l.s4 1983009808
        %v2110 = vunpack.c.0.s8 %v2109
        %v2111 = vlaneseq
        %v2112 = vshrl.u32 %v2111, 7
        %v2113 = vsub.s32 %v2110, %v2112
        %v2114 = vrot.slane %v1965, %v2113
        %v2116 = vunpack.c.l.s4 1983009808
        %v2117 = vunpack.c.0.s8 %v2116
        %v2118 = vlaneseq
        %v2119 = vshrl.u32 %v2118, 7
        %v2120 = vsub.s32 %v2117, %v2119
        %v2121 = vrot.slane %v2107, %v2120
        %v2122 = vcombine.high %v2114, %v2114
        %v2123 = vcombine.high %v2121, %v2121
        %v2124 = vcombine.high %v1966, %v1966
        %v2126 = vunpack.c.l.s4 1983009808
        %v2127 = vunpack.c.0.s8 %v2126
        %v2128 = vlaneseq
        %v2129 = vshrl.u32 %v2128, 7
        %v2130 = vsub.s32 %v2127, %v2129
        %v2131 = vrot.slane %v1966, %v2130
        %v2133 = vunpack.c.l.s4 1983009808
        %v2134 = vunpack.c.0.s8 %v2133
        %v2135 = vlaneseq
        %v2136 = vshrl.u32 %v2135, 7
        %v2137 = vsub.s32 %v2134, %v2136
        %v2138 = vrot.slane %v2124, %v2137
        %v2139 = vcombine.high %v2131, %v2131
        %v2140 = vcombine.high %v2138, %v2138
        %v2141 = vcombine.high %v1967, %v1967
        %v2143 = vunpack.c.l.s4 1983009808
        %v2144 = vunpack.c.0.s8 %v2143
        %v2145 = vlaneseq
        %v2146 = vshrl.u32 %v2145, 7
        %v2147 = vsub.s32 %v2144, %v2146
        %v2148 = vrot.slane %v1967, %v2147
        %v2150 = vunpack.c.l.s4 1983009808
        %v2151 = vunpack.c.0.s8 %v2150
        %v2152 = vlaneseq
        %v2153 = vshrl.u32 %v2152, 7
        %v2154 = vsub.s32 %v2151, %v2153
        %v2155 = vrot.slane %v2141, %v2154
        %v2156 = vcombine.high %v2148, %v2148
        %v2157 = vcombine.high %v2155, %v2155
        %v2158 = vcombine.high %v1968, %v1968
        %v2160 = vunpack.c.l.s4 1983009808
        %v2161 = vunpack.c.0.s8 %v2160
        %v2162 = vlaneseq
        %v2163 = vshrl.u32 %v2162, 7
        %v2164 = vsub.s32 %v2161, %v2163
        %v2165 = vrot.slane %v1968, %v2164
        %v2167 = vunpack.c.l.s4 1983009808
        %v2168 = vunpack.c.0.s8 %v2167
        %v2169 = vlaneseq
        %v2170 = vshrl.u32 %v2169, 7
        %v2171 = vsub.s32 %v2168, %v2170
        %v2172 = vrot.slane %v2158, %v2171
        %v2173 = vcombine.high %v2165, %v2165
        %v2174 = vcombine.high %v2172, %v2172
        %v2175 = vcombine.high %v1969, %v1969
        %v2177 = vunpack.c.l.s4 1983009808
        %v2178 = vunpack.c.0.s8 %v2177
        %v2179 = vlaneseq
        %v2180 = vshrl.u32 %v2179, 7
        %v2181 = vsub.s32 %v2178, %v2180
        %v2182 = vrot.slane %v1969, %v2181
        %v2184 = vunpack.c.l.s4 1983009808
        %v2185 = vunpack.c.0.s8 %v2184
        %v2186 = vlaneseq
        %v2187 = vshrl.u32 %v2186, 7
        %v2188 = vsub.s32 %v2185, %v2187
        %v2189 = vrot.slane %v2175, %v2188
        %v2190 = vcombine.high %v2182, %v2182
        %v2191 = vcombine.high %v2189, %v2189
        %v2192 = vcombine.high %v1970, %v1970
        %v2194 = vunpack.c.l.s4 1983009808
        %v2195 = vunpack.c.0.s8 %v2194
        %v2196 = vlaneseq
        %v2197 = vshrl.u32 %v2196, 7
        %v2198 = vsub.s32 %v2195, %v2197
        %v2199 = vrot.slane %v1970, %v2198
        %v2201 = vunpack.c.l.s4 1983009808
        %v2202 = vunpack.c.0.s8 %v2201
        %v2203 = vlaneseq
        %v2204 = vshrl.u32 %v2203, 7
        %v2205 = vsub.s32 %v2202, %v2204
        %v2206 = vrot.slane %v2192, %v2205
        %v2207 = vcombine.high %v2199, %v2199
        %v2208 = vcombine.high %v2206, %v2206
        %v2209 = vcombine.high %v1971, %v1971
        %v2211 = vunpack.c.l.s4 1983009808
        %v2212 = vunpack.c.0.s8 %v2211
        %v2213 = vlaneseq
        %v2214 = vshrl.u32 %v2213, 7
        %v2215 = vsub.s32 %v2212, %v2214
        %v2216 = vrot.slane %v1971, %v2215
        %v2218 = vunpack.c.l.s4 1983009808
        %v2219 = vunpack.c.0.s8 %v2218
        %v2220 = vlaneseq
        %v2221 = vshrl.u32 %v2220, 7
        %v2222 = vsub.s32 %v2219, %v2221
        %v2223 = vrot.slane %v2209, %v2222
        %v2224 = vcombine.high %v2216, %v2216
        %v2225 = vcombine.high %v2223, %v2223
        %v2226 = vcombine.high %v1972, %v1972
        %v2228 = vunpack.c.l.s4 1983009808
        %v2229 = vunpack.c.0.s8 %v2228
        %v2230 = vlaneseq
        %v2231 = vshrl.u32 %v2230, 7
        %v2232 = vsub.s32 %v2229, %v2231
        %v2233 = vrot.slane %v1972, %v2232
        %v2235 = vunpack.c.l.s4 1983009808
        %v2236 = vunpack.c.0.s8 %v2235
        %v2237 = vlaneseq
        %v2238 = vshrl.u32 %v2237, 7
        %v2239 = vsub.s32 %v2236, %v2238
        %v2240 = vrot.slane %v2226, %v2239
        %v2241 = vcombine.high %v2233, %v2233
        %v2242 = vcombine.high %v2240, %v2240
        %v2243 = vcombine.high %v1973, %v1973
        %v2245 = vunpack.c.l.s4 1983009808
        %v2246 = vunpack.c.0.s8 %v2245
        %v2247 = vlaneseq
        %v2248 = vshrl.u32 %v2247, 7
        %v2249 = vsub.s32 %v2246, %v2248
        %v2250 = vrot.slane %v1973, %v2249
        %v2252 = vunpack.c.l.s4 1983009808
        %v2253 = vunpack.c.0.s8 %v2252
        %v2254 = vlaneseq
        %v2255 = vshrl.u32 %v2254, 7
        %v2256 = vsub.s32 %v2253, %v2255
        %v2257 = vrot.slane %v2243, %v2256
        %v2258 = vcombine.high %v2250, %v2250
        %v2259 = vcombine.high %v2257, %v2257
        %v2260 = vcombine.high %v1974, %v1974
        %v2262 = vunpack.c.l.s4 1983009808
        %v2263 = vunpack.c.0.s8 %v2262
        %v2264 = vlaneseq
        %v2265 = vshrl.u32 %v2264, 7
        %v2266 = vsub.s32 %v2263, %v2265
        %v2267 = vrot.slane %v1974, %v2266
        %v2269 = vunpack.c.l.s4 1983009808
        %v2270 = vunpack.c.0.s8 %v2269
        %v2271 = vlaneseq
        %v2272 = vshrl.u32 %v2271, 7
        %v2273 = vsub.s32 %v2270, %v2272
        %v2274 = vrot.slane %v2260, %v2273
        %v2275 = vcombine.high %v2267, %v2267
        %v2276 = vcombine.high %v2274, %v2274
        %v2277 = vcombine.high %v1975, %v1975
        %v2279 = vunpack.c.l.s4 1983009808
        %v2280 = vunpack.c.0.s8 %v2279
        %v2281 = vlaneseq
        %v2282 = vshrl.u32 %v2281, 7
        %v2283 = vsub.s32 %v2280, %v2282
        %v2284 = vrot.slane %v1975, %v2283
        %v2286 = vunpack.c.l.s4 1983009808
        %v2287 = vunpack.c.0.s8 %v2286
        %v2288 = vlaneseq
        %v2289 = vshrl.u32 %v2288, 7
        %v2290 = vsub.s32 %v2287, %v2289
        %v2291 = vrot.slane %v2277, %v2290
        %v2292 = vcombine.high %v2284, %v2284
        %v2293 = vcombine.high %v2291, %v2291
        %v2294 = vcombine.high %v1976, %v1976
        %v2296 = vunpack.c.l.s4 1983009808
        %v2297 = vunpack.c.0.s8 %v2296
        %v2298 = vlaneseq
        %v2299 = vshrl.u32 %v2298, 7
        %v2300 = vsub.s32 %v2297, %v2299
        %v2301 = vrot.slane %v1976, %v2300
        %v2303 = vunpack.c.l.s4 1983009808
        %v2304 = vunpack.c.0.s8 %v2303
        %v2305 = vlaneseq
        %v2306 = vshrl.u32 %v2305, 7
        %v2307 = vsub.s32 %v2304, %v2306
        %v2308 = vrot.slane %v2294, %v2307
        %v2309 = vcombine.high %v2301, %v2301
        %v2310 = vcombine.high %v2308, %v2308
        %v2311 = vcombine.high %v1977, %v1977
        %v2313 = vunpack.c.l.s4 1983009808
        %v2314 = vunpack.c.0.s8 %v2313
        %v2315 = vlaneseq
        %v2316 = vshrl.u32 %v2315, 7
        %v2317 = vsub.s32 %v2314, %v2316
        %v2318 = vrot.slane %v1977, %v2317
        %v2320 = vunpack.c.l.s4 1983009808
        %v2321 = vunpack.c.0.s8 %v2320
        %v2322 = vlaneseq
        %v2323 = vshrl.u32 %v2322, 7
        %v2324 = vsub.s32 %v2321, %v2323
        %v2325 = vrot.slane %v2311, %v2324
        %v2326 = vcombine.high %v2318, %v2318
        %v2327 = vcombine.high %v2325, %v2325
        %v2328 = vcombine.high %v1978, %v1978
        %v2330 = vunpack.c.l.s4 1983009808
        %v2331 = vunpack.c.0.s8 %v2330
        %v2332 = vlaneseq
        %v2333 = vshrl.u32 %v2332, 7
        %v2334 = vsub.s32 %v2331, %v2333
        %v2335 = vrot.slane %v1978, %v2334
        %v2337 = vunpack.c.l.s4 1983009808
        %v2338 = vunpack.c.0.s8 %v2337
        %v2339 = vlaneseq
        %v2340 = vshrl.u32 %v2339, 7
        %v2341 = vsub.s32 %v2338, %v2340
        %v2342 = vrot.slane %v2328, %v2341
        %v2343 = vcombine.high %v2335, %v2335
        %v2344 = vcombine.high %v2342, %v2342
        %v2345 = vcombine.high %v1979, %v1979
        %v2347 = vunpack.c.l.s4 1983009808
        %v2348 = vunpack.c.0.s8 %v2347
        %v2349 = vlaneseq
        %v2350 = vshrl.u32 %v2349, 7
        %v2351 = vsub.s32 %v2348, %v2350
        %v2352 = vrot.slane %v1979, %v2351
        %v2354 = vunpack.c.l.s4 1983009808
        %v2355 = vunpack.c.0.s8 %v2354
        %v2356 = vlaneseq
        %v2357 = vshrl.u32 %v2356, 7
        %v2358 = vsub.s32 %v2355, %v2357
        %v2359 = vrot.slane %v2345, %v2358
        %v2360 = vcombine.high %v2352, %v2352
        %v2361 = vcombine.high %v2359, %v2359
        %v2362 = vcombine.high %v1980, %v1980
        %v2364 = vunpack.c.l.s4 1983009808
        %v2365 = vunpack.c.0.s8 %v2364
        %v2366 = vlaneseq
        %v2367 = vshrl.u32 %v2366, 7
        %v2368 = vsub.s32 %v2365, %v2367
        %v2369 = vrot.slane %v1980, %v2368
        %v2371 = vunpack.c.l.s4 1983009808
        %v2372 = vunpack.c.0.s8 %v2371
        %v2373 = vlaneseq
        %v2374 = vshrl.u32 %v2373, 7
        %v2375 = vsub.s32 %v2372, %v2374
        %v2376 = vrot.slane %v2362, %v2375
        %v2377 = vcombine.high %v2369, %v2369
        %v2378 = vcombine.high %v2376, %v2376
        %v2380 = vunpack.c.l.s4 1983009808
        %v2381 = vunpack.c.0.s8 %v2380
        %v2382 = vlaneseq
        %v2383 = vshrl.u32 %v2382, 7
        %v2384 = vsub.s32 %v2381, %v2383
        %v2385 = vrot.slane %v1981, %v2384
        %v2386 = vcombine.high %v2385, %v2385
        %s2387 = smul.u32 %s30, 8
        %v2388 = vstv %s2387
        %v2389 = vadd.s32 %v2388, 1
        %v2390 = vadd.s32 %v2388, 2
        %v2391 = vadd.s32 %v2388, 3
        %v2392 = vadd.s32 %v2388, 4
        %v2393 = vadd.s32 %v2388, 5
        %v2394 = vadd.s32 %v2388, 6
        %v2395 = vadd.s32 %v2388, 7
        %v2396 = vadd.s32 %v2388, 8
        %v2397 = vadd.s32 %v2388, 9
        %v2398 = vlaneseq
        %v2399 = vshrl.u32 %v2398, 7
        %v2400 = vadd.s32 %v2399, 8
        %v2401 = vadd.s32 %v2399, 16
        %vm2402 = vcmp.ge.s32.totalorder %v2388, 1
        %vm2403 = vcmp.ge.s32.totalorder %v2389, 1
        %vm2404 = vcmp.ge.s32.totalorder %v2390, 1
        %vm2405 = vcmp.ge.s32.totalorder %v2391, 1
        %vm2406 = vcmp.ge.s32.totalorder %v2392, 1
        %vm2407 = vcmp.ge.s32.totalorder %v2393, 1
        %vm2408 = vcmp.ge.s32.totalorder %v2394, 1
        %vm2409 = vcmp.ge.s32.totalorder %v2395, 1
        %vm2410 = vcmp.ge.s32.totalorder %v2396, 1
        %vm2411 = vcmp.ge.s32.totalorder %v2397, 1
        %vm2412 = vcmp.le.s32.totalorder %v2388, 16
        %vm2413 = vcmp.le.s32.totalorder %v2389, 16
        %vm2414 = vcmp.le.s32.totalorder %v2390, 16
        %vm2415 = vcmp.le.s32.totalorder %v2391, 16
        %vm2416 = vcmp.le.s32.totalorder %v2392, 16
        %vm2417 = vcmp.le.s32.totalorder %v2393, 16
        %vm2418 = vcmp.le.s32.totalorder %v2394, 16
        %vm2419 = vcmp.le.s32.totalorder %v2395, 16
        %vm2420 = vcmp.le.s32.totalorder %v2396, 16
        %vm2421 = vcmp.le.s32.totalorder %v2397, 16
        %vm2422 = vmand %vm2402, %vm2412
        %vm2423 = vmand %vm2403, %vm2413
        %vm2424 = vmand %vm2404, %vm2414
        %vm2425 = vmand %vm2405, %vm2415
        %vm2426 = vmand %vm2406, %vm2416
        %vm2427 = vmand %vm2407, %vm2417
        %vm2428 = vmand %vm2408, %vm2418
        %vm2429 = vmand %vm2409, %vm2419
        %vm2430 = vmand %vm2410, %vm2420
        %vm2431 = vmand %vm2411, %vm2421
        %vm2432 = vcmp.ge.s32.totalorder %v2399, 1
        %vm2433 = vcmp.ge.s32.totalorder %v2400, 1
        %vm2434 = vcmp.ge.s32.totalorder %v2401, 1
        %vm2435 = vmand %vm2422, %vm2432
        %vm2436 = vmand %vm2422, %vm2433
        %vm2437 = vmand %vm2422, %vm2434
        %vm2438 = vmand %vm2423, %vm2432
        %vm2439 = vmand %vm2423, %vm2433
        %vm2440 = vmand %vm2423, %vm2434
        %vm2441 = vmand %vm2424, %vm2432
        %vm2442 = vmand %vm2424, %vm2433
        %vm2443 = vmand %vm2424, %vm2434
        %vm2444 = vmand %vm2425, %vm2432
        %vm2445 = vmand %vm2425, %vm2433
        %vm2446 = vmand %vm2425, %vm2434
        %vm2447 = vmand %vm2426, %vm2432
        %vm2448 = vmand %vm2426, %vm2433
        %vm2449 = vmand %vm2426, %vm2434
        %vm2450 = vmand %vm2427, %vm2432
        %vm2451 = vmand %vm2427, %vm2433
        %vm2452 = vmand %vm2427, %vm2434
        %vm2453 = vmand %vm2428, %vm2432
        %vm2454 = vmand %vm2428, %vm2433
        %vm2455 = vmand %vm2428, %vm2434
        %vm2456 = vmand %vm2429, %vm2432
        %vm2457 = vmand %vm2429, %vm2433
        %vm2458 = vmand %vm2429, %vm2434
        %vm2459 = vmand %vm2430, %vm2432
        %vm2460 = vmand %vm2430, %vm2433
        %vm2461 = vmand %vm2430, %vm2434
        %vm2462 = vmand %vm2431, %vm2432
        %vm2463 = vmand %vm2431, %vm2433
        %vm2464 = vmand %vm2431, %vm2434
        %vm2465 = vcmp.le.s32.totalorder %v2399, 16
        %vm2466 = vcmp.le.s32.totalorder %v2400, 16
        %vm2467 = vcmp.le.s32.totalorder %v2401, 16
        %vm2468 = vmand %vm2435, %vm2465
        %vm2469 = vmand %vm2436, %vm2466
        %vm2470 = vmand %vm2437, %vm2467
        %vm2471 = vmand %vm2438, %vm2465
        %vm2472 = vmand %vm2439, %vm2466
        %vm2473 = vmand %vm2440, %vm2467
        %vm2474 = vmand %vm2441, %vm2465
        %vm2475 = vmand %vm2442, %vm2466
        %vm2476 = vmand %vm2443, %vm2467
        %vm2477 = vmand %vm2444, %vm2465
        %vm2478 = vmand %vm2445, %vm2466
        %vm2479 = vmand %vm2446, %vm2467
        %vm2480 = vmand %vm2447, %vm2465
        %vm2481 = vmand %vm2448, %vm2466
        %vm2482 = vmand %vm2449, %vm2467
        %vm2483 = vmand %vm2450, %vm2465
        %vm2484 = vmand %vm2451, %vm2466
        %vm2485 = vmand %vm2452, %vm2467
        %vm2486 = vmand %vm2453, %vm2465
        %vm2487 = vmand %vm2454, %vm2466
        %vm2488 = vmand %vm2455, %vm2467
        %vm2489 = vmand %vm2456, %vm2465
        %vm2490 = vmand %vm2457, %vm2466
        %vm2491 = vmand %vm2458, %vm2467
        %vm2492 = vmand %vm2459, %vm2465
        %vm2493 = vmand %vm2460, %vm2466
        %vm2494 = vmand %vm2461, %vm2467
        %vm2495 = vmand %vm2462, %vm2465
        %vm2496 = vmand %vm2463, %vm2466
        %vm2497 = vmand %vm2464, %vm2467
        %v2498 = vcombine.low %v2012, %v2020
        %v2499 = vcombine.low %v2019, %v2021
        %v2501 = vunpack.c.l.s4 1983009808
        %v2502 = vunpack.c.0.s8 %v2501
        %v2503 = vlaneseq
        %v2504 = vshrl.u32 %v2503, 7
        %v2505 = vsub.s32 %v2502, %v2504
        %v2506 = vrot.slane %v2498, %v2505
        %v2508 = vunpack.c.l.s4 1983009808
        %v2509 = vunpack.c.0.s8 %v2508
        %v2510 = vlaneseq
        %v2511 = vshrl.u32 %v2510, 7
        %v2512 = vsub.s32 %v2509, %v2511
        %v2513 = vrot.slane %v2499, %v2512
        %v2514 = vcombine.low %v2506, %v2513
        %v2515 = vcombine.low %v2029, %v2037
        %v2516 = vcombine.low %v2036, %v2038
        %v2518 = vunpack.c.l.s4 1983009808
        %v2519 = vunpack.c.0.s8 %v2518
        %v2520 = vlaneseq
        %v2521 = vshrl.u32 %v2520, 7
        %v2522 = vsub.s32 %v2519, %v2521
        %v2523 = vrot.slane %v2515, %v2522
        %v2525 = vunpack.c.l.s4 1983009808
        %v2526 = vunpack.c.0.s8 %v2525
        %v2527 = vlaneseq
        %v2528 = vshrl.u32 %v2527, 7
        %v2529 = vsub.s32 %v2526, %v2528
        %v2530 = vrot.slane %v2516, %v2529
        %v2531 = vcombine.low %v2523, %v2530
        %v2533 = vunpack.c.l.s4 1983009808
        %v2534 = vunpack.c.0.s8 %v2533
        %v2535 = vlaneseq
        %v2536 = vshrl.u32 %v2535, 7
        %v2537 = vsub.s32 %v2534, %v2536
        %v2538 = vrot.slane %v2046, %v2537
        %v2539 = vcombine.low %v2054, %v2053
        %v2540 = vcombine.low %v2055, %v2063
        %v2542 = vunpack.c.l.s4 1983009808
        %v2543 = vunpack.c.0.s8 %v2542
        %v2544 = vlaneseq
        %v2545 = vshrl.u32 %v2544, 7
        %v2546 = vsub.s32 %v2543, %v2545
        %v2547 = vrot.slane %v2539, %v2546
        %v2549 = vunpack.c.l.s4 1983009808
        %v2550 = vunpack.c.0.s8 %v2549
        %v2551 = vlaneseq
        %v2552 = vshrl.u32 %v2551, 7
        %v2553 = vsub.s32 %v2550, %v2552
        %v2554 = vrot.slane %v2540, %v2553
        %v2555 = vcombine.low %v2547, %v2554
        %v2556 = vcombine.low %v2071, %v2070
        %v2557 = vcombine.low %v2072, %v2080
        %v2559 = vunpack.c.l.s4 1983009808
        %v2560 = vunpack.c.0.s8 %v2559
        %v2561 = vlaneseq
        %v2562 = vshrl.u32 %v2561, 7
        %v2563 = vsub.s32 %v2560, %v2562
        %v2564 = vrot.slane %v2556, %v2563
        %v2566 = vunpack.c.l.s4 1983009808
        %v2567 = vunpack.c.0.s8 %v2566
        %v2568 = vlaneseq
        %v2569 = vshrl.u32 %v2568, 7
        %v2570 = vsub.s32 %v2567, %v2569
        %v2571 = vrot.slane %v2557, %v2570
        %v2572 = vcombine.low %v2564, %v2571
        %v2574 = vunpack.c.l.s4 1983009808
        %v2575 = vunpack.c.0.s8 %v2574
        %v2576 = vlaneseq
        %v2577 = vshrl.u32 %v2576, 7
        %v2578 = vsub.s32 %v2575, %v2577
        %v2579 = vrot.slane %v2088, %v2578
        %v2580 = vcombine.low %v2087, %v2089
        %v2581 = vcombine.low %v2097, %v2105
        %v2583 = vunpack.c.l.s4 1983009808
        %v2584 = vunpack.c.0.s8 %v2583
        %v2585 = vlaneseq
        %v2586 = vshrl.u32 %v2585, 7
        %v2587 = vsub.s32 %v2584, %v2586
        %v2588 = vrot.slane %v2580, %v2587
        %v2590 = vunpack.c.l.s4 1983009808
        %v2591 = vunpack.c.0.s8 %v2590
        %v2592 = vlaneseq
        %v2593 = vshrl.u32 %v2592, 7
        %v2594 = vsub.s32 %v2591, %v2593
        %v2595 = vrot.slane %v2581, %v2594
        %v2596 = vcombine.low %v2588, %v2595
        %v2597 = vcombine.low %v2104, %v2106
        %v2598 = vcombine.low %v2114, %v2122
        %v2600 = vunpack.c.l.s4 1983009808
        %v2601 = vunpack.c.0.s8 %v2600
        %v2602 = vlaneseq
        %v2603 = vshrl.u32 %v2602, 7
        %v2604 = vsub.s32 %v2601, %v2603
        %v2605 = vrot.slane %v2597, %v2604
        %v2607 = vunpack.c.l.s4 1983009808
        %v2608 = vunpack.c.0.s8 %v2607
        %v2609 = vlaneseq
        %v2610 = vshrl.u32 %v2609, 7
        %v2611 = vsub.s32 %v2608, %v2610
        %v2612 = vrot.slane %v2598, %v2611
        %v2613 = vcombine.low %v2605, %v2612
        %v2615 = vunpack.c.l.s4 1983009808
        %v2616 = vunpack.c.0.s8 %v2615
        %v2617 = vlaneseq
        %v2618 = vshrl.u32 %v2617, 7
        %v2619 = vsub.s32 %v2616, %v2618
        %v2620 = vrot.slane %v2121, %v2619
        %v2621 = vcombine.low %v2123, %v2131
        %v2622 = vcombine.low %v2139, %v2138
        %v2624 = vunpack.c.l.s4 1983009808
        %v2625 = vunpack.c.0.s8 %v2624
        %v2626 = vlaneseq
        %v2627 = vshrl.u32 %v2626, 7
        %v2628 = vsub.s32 %v2625, %v2627
        %v2629 = vrot.slane %v2621, %v2628
        %v2631 = vunpack.c.l.s4 1983009808
        %v2632 = vunpack.c.0.s8 %v2631
        %v2633 = vlaneseq
        %v2634 = vshrl.u32 %v2633, 7
        %v2635 = vsub.s32 %v2632, %v2634
        %v2636 = vrot.slane %v2622, %v2635
        %v2637 = vcombine.low %v2629, %v2636
        %v2638 = vcombine.low %v2140, %v2148
        %v2639 = vcombine.low %v2156, %v2155
        %v2641 = vunpack.c.l.s4 1983009808
        %v2642 = vunpack.c.0.s8 %v2641
        %v2643 = vlaneseq
        %v2644 = vshrl.u32 %v2643, 7
        %v2645 = vsub.s32 %v2642, %v2644
        %v2646 = vrot.slane %v2638, %v2645
        %v2648 = vunpack.c.l.s4 1983009808
        %v2649 = vunpack.c.0.s8 %v2648
        %v2650 = vlaneseq
        %v2651 = vshrl.u32 %v2650, 7
        %v2652 = vsub.s32 %v2649, %v2651
        %v2653 = vrot.slane %v2639, %v2652
        %v2654 = vcombine.low %v2646, %v2653
        %v2656 = vunpack.c.l.s4 1983009808
        %v2657 = vunpack.c.0.s8 %v2656
        %v2658 = vlaneseq
        %v2659 = vshrl.u32 %v2658, 7
        %v2660 = vsub.s32 %v2657, %v2659
        %v2661 = vrot.slane %v2157, %v2660
        %v2662 = vcombine.low %v2165, %v2173
        %v2663 = vcombine.low %v2172, %v2174
        %v2665 = vunpack.c.l.s4 1983009808
        %v2666 = vunpack.c.0.s8 %v2665
        %v2667 = vlaneseq
        %v2668 = vshrl.u32 %v2667, 7
        %v2669 = vsub.s32 %v2666, %v2668
        %v2670 = vrot.slane %v2662, %v2669
        %v2672 = vunpack.c.l.s4 1983009808
        %v2673 = vunpack.c.0.s8 %v2672
        %v2674 = vlaneseq
        %v2675 = vshrl.u32 %v2674, 7
        %v2676 = vsub.s32 %v2673, %v2675
        %v2677 = vrot.slane %v2663, %v2676
        %v2678 = vcombine.low %v2670, %v2677
        %v2679 = vcombine.low %v2182, %v2190
        %v2680 = vcombine.low %v2189, %v2191
        %v2682 = vunpack.c.l.s4 1983009808
        %v2683 = vunpack.c.0.s8 %v2682
        %v2684 = vlaneseq
        %v2685 = vshrl.u32 %v2684, 7
        %v2686 = vsub.s32 %v2683, %v2685
        %v2687 = vrot.slane %v2679, %v2686
        %v2689 = vunpack.c.l.s4 1983009808
        %v2690 = vunpack.c.0.s8 %v2689
        %v2691 = vlaneseq
        %v2692 = vshrl.u32 %v2691, 7
        %v2693 = vsub.s32 %v2690, %v2692
        %v2694 = vrot.slane %v2680, %v2693
        %v2695 = vcombine.low %v2687, %v2694
        %v2697 = vunpack.c.l.s4 1983009808
        %v2698 = vunpack.c.0.s8 %v2697
        %v2699 = vlaneseq
        %v2700 = vshrl.u32 %v2699, 7
        %v2701 = vsub.s32 %v2698, %v2700
        %v2702 = vrot.slane %v2199, %v2701
        %v2703 = vcombine.low %v2207, %v2206
        %v2704 = vcombine.low %v2208, %v2216
        %v2706 = vunpack.c.l.s4 1983009808
        %v2707 = vunpack.c.0.s8 %v2706
        %v2708 = vlaneseq
        %v2709 = vshrl.u32 %v2708, 7
        %v2710 = vsub.s32 %v2707, %v2709
        %v2711 = vrot.slane %v2703, %v2710
        %v2713 = vunpack.c.l.s4 1983009808
        %v2714 = vunpack.c.0.s8 %v2713
        %v2715 = vlaneseq
        %v2716 = vshrl.u32 %v2715, 7
        %v2717 = vsub.s32 %v2714, %v2716
        %v2718 = vrot.slane %v2704, %v2717
        %v2719 = vcombine.low %v2711, %v2718
        %v2720 = vcombine.low %v2224, %v2223
        %v2721 = vcombine.low %v2225, %v2233
        %v2723 = vunpack.c.l.s4 1983009808
        %v2724 = vunpack.c.0.s8 %v2723
        %v2725 = vlaneseq
        %v2726 = vshrl.u32 %v2725, 7
        %v2727 = vsub.s32 %v2724, %v2726
        %v2728 = vrot.slane %v2720, %v2727
        %v2730 = vunpack.c.l.s4 1983009808
        %v2731 = vunpack.c.0.s8 %v2730
        %v2732 = vlaneseq
        %v2733 = vshrl.u32 %v2732, 7
        %v2734 = vsub.s32 %v2731, %v2733
        %v2735 = vrot.slane %v2721, %v2734
        %v2736 = vcombine.low %v2728, %v2735
        %v2738 = vunpack.c.l.s4 1983009808
        %v2739 = vunpack.c.0.s8 %v2738
        %v2740 = vlaneseq
        %v2741 = vshrl.u32 %v2740, 7
        %v2742 = vsub.s32 %v2739, %v2741
        %v2743 = vrot.slane %v2241, %v2742
        %v2744 = vcombine.low %v2240, %v2242
        %v2745 = vcombine.low %v2250, %v2258
        %v2747 = vunpack.c.l.s4 1983009808
        %v2748 = vunpack.c.0.s8 %v2747
        %v2749 = vlaneseq
        %v2750 = vshrl.u32 %v2749, 7
        %v2751 = vsub.s32 %v2748, %v2750
        %v2752 = vrot.slane %v2744, %v2751
        %v2754 = vunpack.c.l.s4 1983009808
        %v2755 = vunpack.c.0.s8 %v2754
        %v2756 = vlaneseq
        %v2757 = vshrl.u32 %v2756, 7
        %v2758 = vsub.s32 %v2755, %v2757
        %v2759 = vrot.slane %v2745, %v2758
        %v2760 = vcombine.low %v2752, %v2759
        %v2761 = vcombine.low %v2257, %v2259
        %v2762 = vcombine.low %v2267, %v2275
        %v2764 = vunpack.c.l.s4 1983009808
        %v2765 = vunpack.c.0.s8 %v2764
        %v2766 = vlaneseq
        %v2767 = vshrl.u32 %v2766, 7
        %v2768 = vsub.s32 %v2765, %v2767
        %v2769 = vrot.slane %v2761, %v2768
        %v2771 = vunpack.c.l.s4 1983009808
        %v2772 = vunpack.c.0.s8 %v2771
        %v2773 = vlaneseq
        %v2774 = vshrl.u32 %v2773, 7
        %v2775 = vsub.s32 %v2772, %v2774
        %v2776 = vrot.slane %v2762, %v2775
        %v2777 = vcombine.low %v2769, %v2776
        %v2779 = vunpack.c.l.s4 1983009808
        %v2780 = vunpack.c.0.s8 %v2779
        %v2781 = vlaneseq
        %v2782 = vshrl.u32 %v2781, 7
        %v2783 = vsub.s32 %v2780, %v2782
        %v2784 = vrot.slane %v2274, %v2783
        %v2785 = vcombine.low %v2276, %v2284
        %v2786 = vcombine.low %v2292, %v2291
        %v2788 = vunpack.c.l.s4 1983009808
        %v2789 = vunpack.c.0.s8 %v2788
        %v2790 = vlaneseq
        %v2791 = vshrl.u32 %v2790, 7
        %v2792 = vsub.s32 %v2789, %v2791
        %v2793 = vrot.slane %v2785, %v2792
        %v2795 = vunpack.c.l.s4 1983009808
        %v2796 = vunpack.c.0.s8 %v2795
        %v2797 = vlaneseq
        %v2798 = vshrl.u32 %v2797, 7
        %v2799 = vsub.s32 %v2796, %v2798
        %v2800 = vrot.slane %v2786, %v2799
        %v2801 = vcombine.low %v2793, %v2800
        %v2802 = vcombine.low %v2293, %v2301
        %v2803 = vcombine.low %v2309, %v2308
        %v2805 = vunpack.c.l.s4 1983009808
        %v2806 = vunpack.c.0.s8 %v2805
        %v2807 = vlaneseq
        %v2808 = vshrl.u32 %v2807, 7
        %v2809 = vsub.s32 %v2806, %v2808
        %v2810 = vrot.slane %v2802, %v2809
        %v2812 = vunpack.c.l.s4 1983009808
        %v2813 = vunpack.c.0.s8 %v2812
        %v2814 = vlaneseq
        %v2815 = vshrl.u32 %v2814, 7
        %v2816 = vsub.s32 %v2813, %v2815
        %v2817 = vrot.slane %v2803, %v2816
        %v2818 = vcombine.low %v2810, %v2817
        %v2820 = vunpack.c.l.s4 1983009808
        %v2821 = vunpack.c.0.s8 %v2820
        %v2822 = vlaneseq
        %v2823 = vshrl.u32 %v2822, 7
        %v2824 = vsub.s32 %v2821, %v2823
        %v2825 = vrot.slane %v2310, %v2824
        %v2826 = vcombine.low %v2318, %v2326
        %v2827 = vcombine.low %v2325, %v2327
        %v2829 = vunpack.c.l.s4 1983009808
        %v2830 = vunpack.c.0.s8 %v2829
        %v2831 = vlaneseq
        %v2832 = vshrl.u32 %v2831, 7
        %v2833 = vsub.s32 %v2830, %v2832
        %v2834 = vrot.slane %v2826, %v2833
        %v2836 = vunpack.c.l.s4 1983009808
        %v2837 = vunpack.c.0.s8 %v2836
        %v2838 = vlaneseq
        %v2839 = vshrl.u32 %v2838, 7
        %v2840 = vsub.s32 %v2837, %v2839
        %v2841 = vrot.slane %v2827, %v2840
        %v2842 = vcombine.low %v2834, %v2841
        %v2843 = vcombine.low %v2335, %v2343
        %v2844 = vcombine.low %v2342, %v2344
        %v2846 = vunpack.c.l.s4 1983009808
        %v2847 = vunpack.c.0.s8 %v2846
        %v2848 = vlaneseq
        %v2849 = vshrl.u32 %v2848, 7
        %v2850 = vsub.s32 %v2847, %v2849
        %v2851 = vrot.slane %v2843, %v2850
        %v2853 = vunpack.c.l.s4 1983009808
        %v2854 = vunpack.c.0.s8 %v2853
        %v2855 = vlaneseq
        %v2856 = vshrl.u32 %v2855, 7
        %v2857 = vsub.s32 %v2854, %v2856
        %v2858 = vrot.slane %v2844, %v2857
        %v2859 = vcombine.low %v2851, %v2858
        %v2861 = vunpack.c.l.s4 1983009808
        %v2862 = vunpack.c.0.s8 %v2861
        %v2863 = vlaneseq
        %v2864 = vshrl.u32 %v2863, 7
        %v2865 = vsub.s32 %v2862, %v2864
        %v2866 = vrot.slane %v2352, %v2865
        %v2867 = vcombine.low %v2360, %v2359
        %v2868 = vcombine.low %v2361, %v2369
        %v2870 = vunpack.c.l.s4 1983009808
        %v2871 = vunpack.c.0.s8 %v2870
        %v2872 = vlaneseq
        %v2873 = vshrl.u32 %v2872, 7
        %v2874 = vsub.s32 %v2871, %v2873
        %v2875 = vrot.slane %v2867, %v2874
        %v2877 = vunpack.c.l.s4 1983009808
        %v2878 = vunpack.c.0.s8 %v2877
        %v2879 = vlaneseq
        %v2880 = vshrl.u32 %v2879, 7
        %v2881 = vsub.s32 %v2878, %v2880
        %v2882 = vrot.slane %v2868, %v2881
        %v2883 = vcombine.low %v2875, %v2882
        %v2884 = vcombine.low %v2377, %v2376
        %v2885 = vcombine.low %v2378, %v2385
        %v2887 = vunpack.c.l.s4 1983009808
        %v2888 = vunpack.c.0.s8 %v2887
        %v2889 = vlaneseq
        %v2890 = vshrl.u32 %v2889, 7
        %v2891 = vsub.s32 %v2888, %v2890
        %v2892 = vrot.slane %v2884, %v2891
        %v2894 = vunpack.c.l.s4 1983009808
        %v2895 = vunpack.c.0.s8 %v2894
        %v2896 = vlaneseq
        %v2897 = vshrl.u32 %v2896, 7
        %v2898 = vsub.s32 %v2895, %v2897
        %v2899 = vrot.slane %v2885, %v2898
        %v2900 = vcombine.low %v2892, %v2899
        %v2902 = vunpack.c.l.s4 1983009808
        %v2903 = vunpack.c.0.s8 %v2902
        %v2904 = vlaneseq
        %v2905 = vshrl.u32 %v2904, 7
        %v2906 = vsub.s32 %v2903, %v2905
        %v2907 = vrot.slane %v2386, %v2906
        %v2938 = vsel %vm2468, %v2514, 0.0
        %v2939 = vsel %vm2469, %v2531, 0.0
        %v2940 = vsel %vm2470, %v2538, 0.0
        %v2941 = vsel %vm2471, %v2555, 0.0
        %v2942 = vsel %vm2472, %v2572, 0.0
        %v2943 = vsel %vm2473, %v2579, 0.0
        %v2944 = vsel %vm2474, %v2596, 0.0
        %v2945 = vsel %vm2475, %v2613, 0.0
        %v2946 = vsel %vm2476, %v2620, 0.0
        %v2947 = vsel %vm2477, %v2637, 0.0
        %v2948 = vsel %vm2478, %v2654, 0.0
        %v2949 = vsel %vm2479, %v2661, 0.0
        %v2950 = vsel %vm2480, %v2678, 0.0
        %v2951 = vsel %vm2481, %v2695, 0.0
        %v2952 = vsel %vm2482, %v2702, 0.0
        %v2953 = vsel %vm2483, %v2719, 0.0
        %v2954 = vsel %vm2484, %v2736, 0.0
        %v2955 = vsel %vm2485, %v2743, 0.0
        %v2956 = vsel %vm2486, %v2760, 0.0
        %v2957 = vsel %vm2487, %v2777, 0.0
        %v2958 = vsel %vm2488, %v2784, 0.0
        %v2959 = vsel %vm2489, %v2801, 0.0
        %v2960 = vsel %vm2490, %v2818, 0.0
        %v2961 = vsel %vm2491, %v2825, 0.0
        %v2962 = vsel %vm2492, %v2842, 0.0
        %v2963 = vsel %vm2493, %v2859, 0.0
        %v2964 = vsel %vm2494, %v2866, 0.0
        %v2965 = vsel %vm2495, %v2883, 0.0
        %v2966 = vsel %vm2496, %v2900, 0.0
        %v2967 = vsel %vm2497, %v2907, 0.0
        %v2968 = vpack.c.bf16 %v2939, %v2938
        %v2969 = vpack.c.bf16 %v2940, %v2940
        %v2970 = vpack.c.bf16 %v2942, %v2941
        %v2971 = vpack.c.bf16 %v2943, %v2943
        %v2972 = vpack.c.bf16 %v2945, %v2944
        %v2973 = vpack.c.bf16 %v2946, %v2946
        %v2974 = vpack.c.bf16 %v2948, %v2947
        %v2975 = vpack.c.bf16 %v2949, %v2949
        %v2976 = vpack.c.bf16 %v2951, %v2950
        %v2977 = vpack.c.bf16 %v2952, %v2952
        %v2978 = vpack.c.bf16 %v2954, %v2953
        %v2979 = vpack.c.bf16 %v2955, %v2955
        %v2980 = vpack.c.bf16 %v2957, %v2956
        %v2981 = vpack.c.bf16 %v2958, %v2958
        %v2982 = vpack.c.bf16 %v2960, %v2959
        %v2983 = vpack.c.bf16 %v2961, %v2961
        %v2984 = vpack.c.bf16 %v2963, %v2962
        %v2985 = vpack.c.bf16 %v2964, %v2964
        %v2986 = vpack.c.bf16 %v2966, %v2965
        %v2987 = vpack.c.bf16 %v2967, %v2967
        %v2988 = vld [vmem:[%s4] sm:$0x3]
        %s2989 = scalar_lea.vmem %s4, 6
        %v2990 = vld [vmem:[%s2989] sm:$0x3]
        %vm2991 = vcmask 31744
        %v2993 = vsel %vm2991, %v2970, 0
        %v2996 = vsel %vm2991, %v2972, 0
        %v2999 = vsel %vm2991, %v2974, 0
        %v3002 = vsel %vm2991, %v2976, 0
        %v3005 = vsel %vm2991, %v2978, 0
        %v3008 = vsel %vm2991, %v2980, 0
        %v3011 = vsel %vm2991, %v2982, 0
        %v3014 = vsel %vm2991, %v2984, 0
        %vm3016 = vcmask 1041408
        %v3018 = vsel %vm3016, %v2990, 0
        %3020 = vmatprep.subr.bf16.mxu0 0
        %3021 = vmatpush1.bf16.msra.mxu0 0
        %3022 = vmatprep.subr.bf16.mxu0 0
        %3023 = vmatpush1.bf16.msra.mxu0 0
        %3024 = vmatprep.subr.bf16.mxu0 0
        %3025 = vmatpush1.bf16.msra.mxu0 0
        %3026 = vmatprep.subr.bf16.mxu0 0
        %3027 = vmatpush1.bf16.msra.mxu0 0
        %3028 = vmatprep.subr.bf16.mxu0 0
        %3029 = vmatpush1.bf16.msra.mxu0 0
        %3030 = vmatprep.subr.bf16.mxu0 0
        %3031 = vmatpush1.bf16.msra.mxu0 0
        %3032 = vmatprep.subr.bf16.mxu0 0
        %3033 = vmatpush1.bf16.msra.mxu0 0
        %3034 = vmatprep.subr.bf16.mxu0 0
        %3035 = vmatpush1.bf16.msra.mxu0 %v3018
        %3036 = vmatprep.subr.bf16.mxu0 0
        %3037 = vmatpush2.bf16.msra.mxu0 0
        %3038 = vmatprep.subr.bf16.mxu0 0
        %3039 = vmatpush2.bf16.msra.mxu0 0
        %3040 = vmatprep.subr.bf16.mxu0 0
        %3041 = vmatpush2.bf16.msra.mxu0 0
        %3042 = vmatprep.subr.bf16.mxu0 0
        %3043 = vmatpush2.bf16.msra.mxu0 0
        %3044 = vmatprep.subr.bf16.mxu0 0
        %3045 = vmatpush2.bf16.msra.mxu0 0
        %3046 = vmatprep.subr.bf16.mxu0 0
        %3047 = vmatpush2.bf16.msra.mxu0 0
        %3048 = vmatprep.subr.bf16.mxu0 0
        %3049 = vmatpush2.bf16.msra.mxu0 0
        %3050 = vmatprep.subr.bf16.mxu0 0
        %3051 = vmatpush2.bf16.msra.mxu0 0
        %3052 = vmatprep.mubr.bf16.mxu0 0
        %3053 = vmatmul.mubr.bf16.gmra.mxu0 %v2993
        %v3054 = vpop.f32.mrf.mxu0
        %v3055 = vadd.f32 0.0, %v3054
        %v3056 = vpop.f32.mrf.mxu0
        %v3057 = vpop.f32.mrf.mxu0
        %v3058 = vadd.f32 0.0, %v3057
        %v3059 = vpop.f32.mrf.mxu0
        %3060 = vmatprep.mubr.bf16.mxu0 0
        %3061 = vmatmul.mubr.bf16.gmra.mxu0 %v2996
        %v3062 = vpop.f32.mrf.mxu0
        %v3063 = vadd.f32 0.0, %v3062
        %v3064 = vpop.f32.mrf.mxu0
        %v3065 = vpop.f32.mrf.mxu0
        %v3066 = vadd.f32 0.0, %v3065
        %v3067 = vpop.f32.mrf.mxu0
        %3068 = vmatprep.mubr.bf16.mxu0 0
        %3069 = vmatmul.mubr.bf16.gmra.mxu0 %v2999
        %v3070 = vpop.f32.mrf.mxu0
        %v3071 = vadd.f32 0.0, %v3070
        %v3072 = vpop.f32.mrf.mxu0
        %v3073 = vpop.f32.mrf.mxu0
        %v3074 = vadd.f32 0.0, %v3073
        %v3075 = vpop.f32.mrf.mxu0
        %3076 = vmatprep.mubr.bf16.mxu0 0
        %3077 = vmatmul.mubr.bf16.gmra.mxu0 %v3002
        %v3078 = vpop.f32.mrf.mxu0
        %v3079 = vadd.f32 0.0, %v3078
        %v3080 = vpop.f32.mrf.mxu0
        %v3081 = vpop.f32.mrf.mxu0
        %v3082 = vadd.f32 0.0, %v3081
        %v3083 = vpop.f32.mrf.mxu0
        %3084 = vmatprep.mubr.bf16.mxu0 0
        %3085 = vmatmul.mubr.bf16.gmra.mxu0 %v3005
        %v3086 = vpop.f32.mrf.mxu0
        %v3087 = vadd.f32 0.0, %v3086
        %v3088 = vpop.f32.mrf.mxu0
        %v3089 = vpop.f32.mrf.mxu0
        %v3090 = vadd.f32 0.0, %v3089
        %v3091 = vpop.f32.mrf.mxu0
        %3092 = vmatprep.mubr.bf16.mxu0 0
        %3093 = vmatmul.mubr.bf16.gmra.mxu0 %v3008
        %v3094 = vpop.f32.mrf.mxu0
        %v3095 = vadd.f32 0.0, %v3094
        %v3096 = vpop.f32.mrf.mxu0
        %v3097 = vpop.f32.mrf.mxu0
        %v3098 = vadd.f32 0.0, %v3097
        %v3099 = vpop.f32.mrf.mxu0
        %3100 = vmatprep.mubr.bf16.mxu0 0
        %3101 = vmatmul.mubr.bf16.gmra.mxu0 %v3011
        %v3102 = vpop.f32.mrf.mxu0
        %v3103 = vadd.f32 0.0, %v3102
        %v3104 = vpop.f32.mrf.mxu0
        %v3105 = vpop.f32.mrf.mxu0
        %v3106 = vadd.f32 0.0, %v3105
        %v3107 = vpop.f32.mrf.mxu0
        %3108 = vmatprep.mubr.bf16.mxu0 0
        %3109 = vmatmul.mubr.bf16.gmra.mxu0 %v3014
        %v3110 = vpop.f32.mrf.mxu0
        %v3111 = vadd.f32 0.0, %v3110
        %v3112 = vpop.f32.mrf.mxu0
        %v3113 = vpop.f32.mrf.mxu0
        %v3114 = vadd.f32 0.0, %v3113
        %v3115 = vpop.f32.mrf.mxu0
        %3116 = vdwg.mxu0
        %v3118 = vsel %vm2991, %v2968, 0
        %v3121 = vsel %vm3016, %v2988, 0
        %3123 = vmatprep.subr.bf16.mxu0 0
        %3124 = vmatpush1.bf16.msra.mxu0 0
        %3125 = vmatprep.subr.bf16.mxu0 0
        %3126 = vmatpush1.bf16.msra.mxu0 0
        %3127 = vmatprep.subr.bf16.mxu0 0
        %3128 = vmatpush1.bf16.msra.mxu0 0
        %3129 = vmatprep.subr.bf16.mxu0 0
        %3130 = vmatpush1.bf16.msra.mxu0 0
        %3131 = vmatprep.subr.bf16.mxu0 0
        %3132 = vmatpush1.bf16.msra.mxu0 0
        %3133 = vmatprep.subr.bf16.mxu0 0
        %3134 = vmatpush1.bf16.msra.mxu0 0
        %3135 = vmatprep.subr.bf16.mxu0 0
        %3136 = vmatpush1.bf16.msra.mxu0 0
        %3137 = vmatprep.subr.bf16.mxu0 0
        %3138 = vmatpush1.bf16.msra.mxu0 %v3121
        %3139 = vmatprep.subr.bf16.mxu0 0
        %3140 = vmatpush2.bf16.msra.mxu0 0
        %3141 = vmatprep.subr.bf16.mxu0 0
        %3142 = vmatpush2.bf16.msra.mxu0 0
        %3143 = vmatprep.subr.bf16.mxu0 0
        %3144 = vmatpush2.bf16.msra.mxu0 0
        %3145 = vmatprep.subr.bf16.mxu0 0
        %3146 = vmatpush2.bf16.msra.mxu0 0
        %3147 = vmatprep.subr.bf16.mxu0 0
        %3148 = vmatpush2.bf16.msra.mxu0 0
        %3149 = vmatprep.subr.bf16.mxu0 0
        %3150 = vmatpush2.bf16.msra.mxu0 0
        %3151 = vmatprep.subr.bf16.mxu0 0
        %3152 = vmatpush2.bf16.msra.mxu0 0
        %3153 = vmatprep.subr.bf16.mxu0 0
        %3154 = vmatpush2.bf16.msra.mxu0 0
        %3155 = vmatprep.mubr.bf16.mxu0 0
        %3156 = vmatmul.mubr.bf16.gmra.mxu0 %v3118
        %v3157 = vpop.f32.mrf.mxu0
        %v3158 = vadd.f32 %v3055, %v3157
        %v3159 = vpop.f32.mrf.mxu0
        %v3160 = vpop.f32.mrf.mxu0
        %v3161 = vadd.f32 %v3058, %v3160
        %v3162 = vpop.f32.mrf.mxu0
        %3163 = vmatprep.mubr.bf16.mxu0 0
        %3164 = vmatmul.mubr.bf16.gmra.mxu0 %v2993
        %v3165 = vpop.f32.mrf.mxu0
        %v3166 = vadd.f32 %v3063, %v3165
        %v3167 = vpop.f32.mrf.mxu0
        %v3168 = vpop.f32.mrf.mxu0
        %v3169 = vadd.f32 %v3066, %v3168
        %v3170 = vpop.f32.mrf.mxu0
        %3171 = vmatprep.mubr.bf16.mxu0 0
        %3172 = vmatmul.mubr.bf16.gmra.mxu0 %v2996
        %v3173 = vpop.f32.mrf.mxu0
        %v3174 = vadd.f32 %v3071, %v3173
        %v3175 = vpop.f32.mrf.mxu0
        %v3176 = vpop.f32.mrf.mxu0
        %v3177 = vadd.f32 %v3074, %v3176
        %v3178 = vpop.f32.mrf.mxu0
        %3179 = vmatprep.mubr.bf16.mxu0 0
        %3180 = vmatmul.mubr.bf16.gmra.mxu0 %v2999
        %v3181 = vpop.f32.mrf.mxu0
        %v3182 = vadd.f32 %v3079, %v3181
        %v3183 = vpop.f32.mrf.mxu0
        %v3184 = vpop.f32.mrf.mxu0
        %v3185 = vadd.f32 %v3082, %v3184
        %v3186 = vpop.f32.mrf.mxu0
        %3187 = vmatprep.mubr.bf16.mxu0 0
        %3188 = vmatmul.mubr.bf16.gmra.mxu0 %v3002
        %v3189 = vpop.f32.mrf.mxu0
        %v3190 = vadd.f32 %v3087, %v3189
        %v3191 = vpop.f32.mrf.mxu0
        %v3192 = vpop.f32.mrf.mxu0
        %v3193 = vadd.f32 %v3090, %v3192
        %v3194 = vpop.f32.mrf.mxu0
        %3195 = vmatprep.mubr.bf16.mxu0 0
        %3196 = vmatmul.mubr.bf16.gmra.mxu0 %v3005
        %v3197 = vpop.f32.mrf.mxu0
        %v3198 = vadd.f32 %v3095, %v3197
        %v3199 = vpop.f32.mrf.mxu0
        %v3200 = vpop.f32.mrf.mxu0
        %v3201 = vadd.f32 %v3098, %v3200
        %v3202 = vpop.f32.mrf.mxu0
        %3203 = vmatprep.mubr.bf16.mxu0 0
        %3204 = vmatmul.mubr.bf16.gmra.mxu0 %v3008
        %v3205 = vpop.f32.mrf.mxu0
        %v3206 = vadd.f32 %v3103, %v3205
        %v3207 = vpop.f32.mrf.mxu0
        %v3208 = vpop.f32.mrf.mxu0
        %v3209 = vadd.f32 %v3106, %v3208
        %v3210 = vpop.f32.mrf.mxu0
        %3211 = vmatprep.mubr.bf16.mxu0 0
        %3212 = vmatmul.mubr.bf16.gmra.mxu0 %v3011
        %v3213 = vpop.f32.mrf.mxu0
        %v3214 = vadd.f32 %v3111, %v3213
        %v3215 = vpop.f32.mrf.mxu0
        %v3216 = vpop.f32.mrf.mxu0
        %v3217 = vadd.f32 %v3114, %v3216
        %v3218 = vpop.f32.mrf.mxu0
        %3219 = vdwg.mxu0
        %s3220 = scalar_lea.vmem %s4, 12
        %v3221 = vld [vmem:[%s3220] sm:$0x3]
        %v3223 = vsel %vm2991, %v2986, 0
        %v3226 = vsel %vm3016, %v3221, 0
        %3228 = vmatprep.subr.bf16.mxu0 0
        %3229 = vmatpush1.bf16.msra.mxu0 0
        %3230 = vmatprep.subr.bf16.mxu0 0
        %3231 = vmatpush1.bf16.msra.mxu0 0
        %3232 = vmatprep.subr.bf16.mxu0 0
        %3233 = vmatpush1.bf16.msra.mxu0 0
        %3234 = vmatprep.subr.bf16.mxu0 0
        %3235 = vmatpush1.bf16.msra.mxu0 0
        %3236 = vmatprep.subr.bf16.mxu0 0
        %3237 = vmatpush1.bf16.msra.mxu0 0
        %3238 = vmatprep.subr.bf16.mxu0 0
        %3239 = vmatpush1.bf16.msra.mxu0 0
        %3240 = vmatprep.subr.bf16.mxu0 0
        %3241 = vmatpush1.bf16.msra.mxu0 0
        %3242 = vmatprep.subr.bf16.mxu0 0
        %3243 = vmatpush1.bf16.msra.mxu0 %v3226
        %3244 = vmatprep.subr.bf16.mxu0 0
        %3245 = vmatpush2.bf16.msra.mxu0 0
        %3246 = vmatprep.subr.bf16.mxu0 0
        %3247 = vmatpush2.bf16.msra.mxu0 0
        %3248 = vmatprep.subr.bf16.mxu0 0
        %3249 = vmatpush2.bf16.msra.mxu0 0
        %3250 = vmatprep.subr.bf16.mxu0 0
        %3251 = vmatpush2.bf16.msra.mxu0 0
        %3252 = vmatprep.subr.bf16.mxu0 0
        %3253 = vmatpush2.bf16.msra.mxu0 0
        %3254 = vmatprep.subr.bf16.mxu0 0
        %3255 = vmatpush2.bf16.msra.mxu0 0
        %3256 = vmatprep.subr.bf16.mxu0 0
        %3257 = vmatpush2.bf16.msra.mxu0 0
        %3258 = vmatprep.subr.bf16.mxu0 0
        %3259 = vmatpush2.bf16.msra.mxu0 0
        %3260 = vmatprep.mubr.bf16.mxu0 0
        %3261 = vmatmul.mubr.bf16.gmra.mxu0 %v2996
        %v3262 = vpop.f32.mrf.mxu0
        %v3263 = vadd.f32 0.0, %v3262
        %v3264 = vpop.f32.mrf.mxu0
        %v3265 = vpop.f32.mrf.mxu0
        %v3266 = vadd.f32 0.0, %v3265
        %v3267 = vpop.f32.mrf.mxu0
        %3268 = vmatprep.mubr.bf16.mxu0 0
        %3269 = vmatmul.mubr.bf16.gmra.mxu0 %v2999
        %v3270 = vpop.f32.mrf.mxu0
        %v3271 = vadd.f32 0.0, %v3270
        %v3272 = vpop.f32.mrf.mxu0
        %v3273 = vpop.f32.mrf.mxu0
        %v3274 = vadd.f32 0.0, %v3273
        %v3275 = vpop.f32.mrf.mxu0
        %3276 = vmatprep.mubr.bf16.mxu0 0
        %3277 = vmatmul.mubr.bf16.gmra.mxu0 %v3002
        %v3278 = vpop.f32.mrf.mxu0
        %v3279 = vadd.f32 0.0, %v3278
        %v3280 = vpop.f32.mrf.mxu0
        %v3281 = vpop.f32.mrf.mxu0
        %v3282 = vadd.f32 0.0, %v3281
        %v3283 = vpop.f32.mrf.mxu0
        %3284 = vmatprep.mubr.bf16.mxu0 0
        %3285 = vmatmul.mubr.bf16.gmra.mxu0 %v3005
        %v3286 = vpop.f32.mrf.mxu0
        %v3287 = vadd.f32 0.0, %v3286
        %v3288 = vpop.f32.mrf.mxu0
        %v3289 = vpop.f32.mrf.mxu0
        %v3290 = vadd.f32 0.0, %v3289
        %v3291 = vpop.f32.mrf.mxu0
        %3292 = vmatprep.mubr.bf16.mxu0 0
        %3293 = vmatmul.mubr.bf16.gmra.mxu0 %v3008
        %v3294 = vpop.f32.mrf.mxu0
        %v3295 = vadd.f32 0.0, %v3294
        %v3296 = vpop.f32.mrf.mxu0
        %v3297 = vpop.f32.mrf.mxu0
        %v3298 = vadd.f32 0.0, %v3297
        %v3299 = vpop.f32.mrf.mxu0
        %3300 = vmatprep.mubr.bf16.mxu0 0
        %3301 = vmatmul.mubr.bf16.gmra.mxu0 %v3011
        %v3302 = vpop.f32.mrf.mxu0
        %v3303 = vadd.f32 0.0, %v3302
        %v3304 = vpop.f32.mrf.mxu0
        %v3305 = vpop.f32.mrf.mxu0
        %v3306 = vadd.f32 0.0, %v3305
        %v3307 = vpop.f32.mrf.mxu0
        %3308 = vmatprep.mubr.bf16.mxu0 0
        %3309 = vmatmul.mubr.bf16.gmra.mxu0 %v3014
        %v3310 = vpop.f32.mrf.mxu0
        %v3311 = vadd.f32 0.0, %v3310
        %v3312 = vpop.f32.mrf.mxu0
        %v3313 = vpop.f32.mrf.mxu0
        %v3314 = vadd.f32 0.0, %v3313
        %v3315 = vpop.f32.mrf.mxu0
        %3316 = vmatprep.mubr.bf16.mxu0 0
        %3317 = vmatmul.mubr.bf16.gmra.mxu0 %v3223
        %v3318 = vpop.f32.mrf.mxu0
        %v3319 = vadd.f32 0.0, %v3318
        %v3320 = vpop.f32.mrf.mxu0
        %v3321 = vpop.f32.mrf.mxu0
        %v3322 = vadd.f32 0.0, %v3321
        %v3323 = vpop.f32.mrf.mxu0
        %3324 = vdwg.mxu0
        %v3325 = vadd.f32 %v3158, %v3263
        %v3326 = vadd.f32 %v3161, %v3266
        %v3327 = vadd.f32 %v3166, %v3271
        %v3328 = vadd.f32 %v3169, %v3274
        %v3329 = vadd.f32 %v3174, %v3279
        %v3330 = vadd.f32 %v3177, %v3282
        %v3331 = vadd.f32 %v3182, %v3287
        %v3332 = vadd.f32 %v3185, %v3290
        %v3333 = vadd.f32 %v3190, %v3295
        %v3334 = vadd.f32 %v3193, %v3298
        %v3335 = vadd.f32 %v3198, %v3303
        %v3336 = vadd.f32 %v3201, %v3306
        %v3337 = vadd.f32 %v3206, %v3311
        %v3338 = vadd.f32 %v3209, %v3314
        %v3339 = vadd.f32 %v3214, %v3319
        %v3340 = vadd.f32 %v3217, %v3322
        %vm3341 = vsmask.f32 7424
        %v3342 = vshrl.u32 %v2968, 16
        %v3344 = vshll.u32 %v2968, 16
        %v3346 = vrot.slane %v3344, 1
        %v3347 = vor.u32 %v3342, %v3346
        %v3349 = vshll.u32 %v2969, 16
        %v3351 = vrot.slane %v3349, 1
        %v3352 = vsel %vm3341, %v3347, %v3351
        %v3353 = vshrl.u32 %v2970, 16
        %v3355 = vshll.u32 %v2970, 16
        %v3357 = vrot.slane %v3355, 1
        %v3358 = vor.u32 %v3353, %v3357
        %v3360 = vshll.u32 %v2971, 16
        %v3362 = vrot.slane %v3360, 1
        %v3363 = vsel %vm3341, %v3358, %v3362
        %v3364 = vshrl.u32 %v2972, 16
        %v3366 = vshll.u32 %v2972, 16
        %v3368 = vrot.slane %v3366, 1
        %v3369 = vor.u32 %v3364, %v3368
        %v3371 = vshll.u32 %v2973, 16
        %v3373 = vrot.slane %v3371, 1
        %v3374 = vsel %vm3341, %v3369, %v3373
        %v3375 = vshrl.u32 %v2974, 16
        %v3377 = vshll.u32 %v2974, 16
        %v3379 = vrot.slane %v3377, 1
        %v3380 = vor.u32 %v3375, %v3379
        %v3382 = vshll.u32 %v2975, 16
        %v3384 = vrot.slane %v3382, 1
        %v3385 = vsel %vm3341, %v3380, %v3384
        %v3386 = vshrl.u32 %v2976, 16
        %v3388 = vshll.u32 %v2976, 16
        %v3390 = vrot.slane %v3388, 1
        %v3391 = vor.u32 %v3386, %v3390
        %v3393 = vshll.u32 %v2977, 16
        %v3395 = vrot.slane %v3393, 1
        %v3396 = vsel %vm3341, %v3391, %v3395
        %v3397 = vshrl.u32 %v2978, 16
        %v3399 = vshll.u32 %v2978, 16
        %v3401 = vrot.slane %v3399, 1
        %v3402 = vor.u32 %v3397, %v3401
        %v3404 = vshll.u32 %v2979, 16
        %v3406 = vrot.slane %v3404, 1
        %v3407 = vsel %vm3341, %v3402, %v3406
        %v3408 = vshrl.u32 %v2980, 16
        %v3410 = vshll.u32 %v2980, 16
        %v3412 = vrot.slane %v3410, 1
        %v3413 = vor.u32 %v3408, %v3412
        %v3415 = vshll.u32 %v2981, 16
        %v3417 = vrot.slane %v3415, 1
        %v3418 = vsel %vm3341, %v3413, %v3417
        %v3419 = vshrl.u32 %v2982, 16
        %v3421 = vshll.u32 %v2982, 16
        %v3423 = vrot.slane %v3421, 1
        %v3424 = vor.u32 %v3419, %v3423
        %v3426 = vshll.u32 %v2983, 16
        %v3428 = vrot.slane %v3426, 1
        %v3429 = vsel %vm3341, %v3424, %v3428
        %s3430 = scalar_lea.vmem %s4, 2
        %v3431 = vld [vmem:[%s3430] sm:$0x3]
        %v3433 = vsel %vm2991, %v3352, 0
        %v3436 = vsel %vm2991, %v3363, 0
        %v3439 = vsel %vm2991, %v3374, 0
        %v3442 = vsel %vm2991, %v3385, 0
        %v3445 = vsel %vm2991, %v3396, 0
        %v3448 = vsel %vm2991, %v3407, 0
        %v3451 = vsel %vm2991, %v3418, 0
        %v3454 = vsel %vm2991, %v3429, 0
        %v3457 = vsel %vm3016, %v3431, 0
        %3459 = vmatprep.subr.bf16.mxu0 0
        %3460 = vmatpush1.bf16.msra.mxu0 0
        %3461 = vmatprep.subr.bf16.mxu0 0
        %3462 = vmatpush1.bf16.msra.mxu0 0
        %3463 = vmatprep.subr.bf16.mxu0 0
        %3464 = vmatpush1.bf16.msra.mxu0 0
        %3465 = vmatprep.subr.bf16.mxu0 0
        %3466 = vmatpush1.bf16.msra.mxu0 0
        %3467 = vmatprep.subr.bf16.mxu0 0
        %3468 = vmatpush1.bf16.msra.mxu0 0
        %3469 = vmatprep.subr.bf16.mxu0 0
        %3470 = vmatpush1.bf16.msra.mxu0 0
        %3471 = vmatprep.subr.bf16.mxu0 0
        %3472 = vmatpush1.bf16.msra.mxu0 0
        %3473 = vmatprep.subr.bf16.mxu0 0
        %3474 = vmatpush1.bf16.msra.mxu0 %v3457
        %3475 = vmatprep.subr.bf16.mxu0 0
        %3476 = vmatpush2.bf16.msra.mxu0 0
        %3477 = vmatprep.subr.bf16.mxu0 0
        %3478 = vmatpush2.bf16.msra.mxu0 0
        %3479 = vmatprep.subr.bf16.mxu0 0
        %3480 = vmatpush2.bf16.msra.mxu0 0
        %3481 = vmatprep.subr.bf16.mxu0 0
        %3482 = vmatpush2.bf16.msra.mxu0 0
        %3483 = vmatprep.subr.bf16.mxu0 0
        %3484 = vmatpush2.bf16.msra.mxu0 0
        %3485 = vmatprep.subr.bf16.mxu0 0
        %3486 = vmatpush2.bf16.msra.mxu0 0
        %3487 = vmatprep.subr.bf16.mxu0 0
        %3488 = vmatpush2.bf16.msra.mxu0 0
        %3489 = vmatprep.subr.bf16.mxu0 0
        %3490 = vmatpush2.bf16.msra.mxu0 0
        %3491 = vmatprep.mubr.bf16.mxu0 0
        %3492 = vmatmul.mubr.bf16.gmra.mxu0 %v3433
        %v3493 = vpop.f32.mrf.mxu0
        %v3494 = vadd.f32 0.0, %v3493
        %v3495 = vpop.f32.mrf.mxu0
        %v3496 = vpop.f32.mrf.mxu0
        %v3497 = vadd.f32 0.0, %v3496
        %v3498 = vpop.f32.mrf.mxu0
        %3499 = vmatprep.mubr.bf16.mxu0 0
        %3500 = vmatmul.mubr.bf16.gmra.mxu0 %v3436
        %v3501 = vpop.f32.mrf.mxu0
        %v3502 = vadd.f32 0.0, %v3501
        %v3503 = vpop.f32.mrf.mxu0
        %v3504 = vpop.f32.mrf.mxu0
        %v3505 = vadd.f32 0.0, %v3504
        %v3506 = vpop.f32.mrf.mxu0
        %3507 = vmatprep.mubr.bf16.mxu0 0
        %3508 = vmatmul.mubr.bf16.gmra.mxu0 %v3439
        %v3509 = vpop.f32.mrf.mxu0
        %v3510 = vadd.f32 0.0, %v3509
        %v3511 = vpop.f32.mrf.mxu0
        %v3512 = vpop.f32.mrf.mxu0
        %v3513 = vadd.f32 0.0, %v3512
        %v3514 = vpop.f32.mrf.mxu0
        %3515 = vmatprep.mubr.bf16.mxu0 0
        %3516 = vmatmul.mubr.bf16.gmra.mxu0 %v3442
        %v3517 = vpop.f32.mrf.mxu0
        %v3518 = vadd.f32 0.0, %v3517
        %v3519 = vpop.f32.mrf.mxu0
        %v3520 = vpop.f32.mrf.mxu0
        %v3521 = vadd.f32 0.0, %v3520
        %v3522 = vpop.f32.mrf.mxu0
        %3523 = vmatprep.mubr.bf16.mxu0 0
        %3524 = vmatmul.mubr.bf16.gmra.mxu0 %v3445
        %v3525 = vpop.f32.mrf.mxu0
        %v3526 = vadd.f32 0.0, %v3525
        %v3527 = vpop.f32.mrf.mxu0
        %v3528 = vpop.f32.mrf.mxu0
        %v3529 = vadd.f32 0.0, %v3528
        %v3530 = vpop.f32.mrf.mxu0
        %3531 = vmatprep.mubr.bf16.mxu0 0
        %3532 = vmatmul.mubr.bf16.gmra.mxu0 %v3448
        %v3533 = vpop.f32.mrf.mxu0
        %v3534 = vadd.f32 0.0, %v3533
        %v3535 = vpop.f32.mrf.mxu0
        %v3536 = vpop.f32.mrf.mxu0
        %v3537 = vadd.f32 0.0, %v3536
        %v3538 = vpop.f32.mrf.mxu0
        %3539 = vmatprep.mubr.bf16.mxu0 0
        %3540 = vmatmul.mubr.bf16.gmra.mxu0 %v3451
        %v3541 = vpop.f32.mrf.mxu0
        %v3542 = vadd.f32 0.0, %v3541
        %v3543 = vpop.f32.mrf.mxu0
        %v3544 = vpop.f32.mrf.mxu0
        %v3545 = vadd.f32 0.0, %v3544
        %v3546 = vpop.f32.mrf.mxu0
        %3547 = vmatprep.mubr.bf16.mxu0 0
        %3548 = vmatmul.mubr.bf16.gmra.mxu0 %v3454
        %v3549 = vpop.f32.mrf.mxu0
        %v3550 = vadd.f32 0.0, %v3549
        %v3551 = vpop.f32.mrf.mxu0
        %v3552 = vpop.f32.mrf.mxu0
        %v3553 = vadd.f32 0.0, %v3552
        %v3554 = vpop.f32.mrf.mxu0
        %3555 = vdwg.mxu0
        %v3556 = vadd.f32 %v3325, %v3494
        %v3557 = vadd.f32 %v3326, %v3497
        %v3558 = vadd.f32 %v3327, %v3502
        %v3559 = vadd.f32 %v3328, %v3505
        %v3560 = vadd.f32 %v3329, %v3510
        %v3561 = vadd.f32 %v3330, %v3513
        %v3562 = vadd.f32 %v3331, %v3518
        %v3563 = vadd.f32 %v3332, %v3521
        %v3564 = vadd.f32 %v3333, %v3526
        %v3565 = vadd.f32 %v3334, %v3529
        %v3566 = vadd.f32 %v3335, %v3534
        %v3567 = vadd.f32 %v3336, %v3537
        %v3568 = vadd.f32 %v3337, %v3542
        %v3569 = vadd.f32 %v3338, %v3545
        %v3570 = vadd.f32 %v3339, %v3550
        %v3571 = vadd.f32 %v3340, %v3553
        %v3572 = vshrl.u32 %v2984, 16
        %v3574 = vshll.u32 %v2984, 16
        %v3576 = vrot.slane %v3574, 1
        %v3577 = vor.u32 %v3572, %v3576
        %v3579 = vshll.u32 %v2985, 16
        %v3581 = vrot.slane %v3579, 1
        %v3582 = vsel %vm3341, %v3577, %v3581
        %s3583 = scalar_lea.vmem %s4, 8
        %v3584 = vld [vmem:[%s3583] sm:$0x3]
        %v3586 = vsel %vm2991, %v3582, 0
        %v3589 = vsel %vm3016, %v3584, 0
        %3591 = vmatprep.subr.bf16.mxu0 0
        %3592 = vmatpush1.bf16.msra.mxu0 0
        %3593 = vmatprep.subr.bf16.mxu0 0
        %3594 = vmatpush1.bf16.msra.mxu0 0
        %3595 = vmatprep.subr.bf16.mxu0 0
        %3596 = vmatpush1.bf16.msra.mxu0 0
        %3597 = vmatprep.subr.bf16.mxu0 0
        %3598 = vmatpush1.bf16.msra.mxu0 0
        %3599 = vmatprep.subr.bf16.mxu0 0
        %3600 = vmatpush1.bf16.msra.mxu0 0
        %3601 = vmatprep.subr.bf16.mxu0 0
        %3602 = vmatpush1.bf16.msra.mxu0 0
        %3603 = vmatprep.subr.bf16.mxu0 0
        %3604 = vmatpush1.bf16.msra.mxu0 0
        %3605 = vmatprep.subr.bf16.mxu0 0
        %3606 = vmatpush1.bf16.msra.mxu0 %v3589
        %3607 = vmatprep.subr.bf16.mxu0 0
        %3608 = vmatpush2.bf16.msra.mxu0 0
        %3609 = vmatprep.subr.bf16.mxu0 0
        %3610 = vmatpush2.bf16.msra.mxu0 0
        %3611 = vmatprep.subr.bf16.mxu0 0
        %3612 = vmatpush2.bf16.msra.mxu0 0
        %3613 = vmatprep.subr.bf16.mxu0 0
        %3614 = vmatpush2.bf16.msra.mxu0 0
        %3615 = vmatprep.subr.bf16.mxu0 0
        %3616 = vmatpush2.bf16.msra.mxu0 0
        %3617 = vmatprep.subr.bf16.mxu0 0
        %3618 = vmatpush2.bf16.msra.mxu0 0
        %3619 = vmatprep.subr.bf16.mxu0 0
        %3620 = vmatpush2.bf16.msra.mxu0 0
        %3621 = vmatprep.subr.bf16.mxu0 0
        %3622 = vmatpush2.bf16.msra.mxu0 0
        %3623 = vmatprep.mubr.bf16.mxu0 0
        %3624 = vmatmul.mubr.bf16.gmra.mxu0 %v3436
        %v3625 = vpop.f32.mrf.mxu0
        %v3626 = vadd.f32 0.0, %v3625
        %v3627 = vpop.f32.mrf.mxu0
        %v3628 = vpop.f32.mrf.mxu0
        %v3629 = vadd.f32 0.0, %v3628
        %v3630 = vpop.f32.mrf.mxu0
        %3631 = vmatprep.mubr.bf16.mxu0 0
        %3632 = vmatmul.mubr.bf16.gmra.mxu0 %v3439
        %v3633 = vpop.f32.mrf.mxu0
        %v3634 = vadd.f32 0.0, %v3633
        %v3635 = vpop.f32.mrf.mxu0
        %v3636 = vpop.f32.mrf.mxu0
        %v3637 = vadd.f32 0.0, %v3636
        %v3638 = vpop.f32.mrf.mxu0
        %3639 = vmatprep.mubr.bf16.mxu0 0
        %3640 = vmatmul.mubr.bf16.gmra.mxu0 %v3442
        %v3641 = vpop.f32.mrf.mxu0
        %v3642 = vadd.f32 0.0, %v3641
        %v3643 = vpop.f32.mrf.mxu0
        %v3644 = vpop.f32.mrf.mxu0
        %v3645 = vadd.f32 0.0, %v3644
        %v3646 = vpop.f32.mrf.mxu0
        %3647 = vmatprep.mubr.bf16.mxu0 0
        %3648 = vmatmul.mubr.bf16.gmra.mxu0 %v3445
        %v3649 = vpop.f32.mrf.mxu0
        %v3650 = vadd.f32 0.0, %v3649
        %v3651 = vpop.f32.mrf.mxu0
        %v3652 = vpop.f32.mrf.mxu0
        %v3653 = vadd.f32 0.0, %v3652
        %v3654 = vpop.f32.mrf.mxu0
        %3655 = vmatprep.mubr.bf16.mxu0 0
        %3656 = vmatmul.mubr.bf16.gmra.mxu0 %v3448
        %v3657 = vpop.f32.mrf.mxu0
        %v3658 = vadd.f32 0.0, %v3657
        %v3659 = vpop.f32.mrf.mxu0
        %v3660 = vpop.f32.mrf.mxu0
        %v3661 = vadd.f32 0.0, %v3660
        %v3662 = vpop.f32.mrf.mxu0
        %3663 = vmatprep.mubr.bf16.mxu0 0
        %3664 = vmatmul.mubr.bf16.gmra.mxu0 %v3451
        %v3665 = vpop.f32.mrf.mxu0
        %v3666 = vadd.f32 0.0, %v3665
        %v3667 = vpop.f32.mrf.mxu0
        %v3668 = vpop.f32.mrf.mxu0
        %v3669 = vadd.f32 0.0, %v3668
        %v3670 = vpop.f32.mrf.mxu0
        %3671 = vmatprep.mubr.bf16.mxu0 0
        %3672 = vmatmul.mubr.bf16.gmra.mxu0 %v3454
        %v3673 = vpop.f32.mrf.mxu0
        %v3674 = vadd.f32 0.0, %v3673
        %v3675 = vpop.f32.mrf.mxu0
        %v3676 = vpop.f32.mrf.mxu0
        %v3677 = vadd.f32 0.0, %v3676
        %v3678 = vpop.f32.mrf.mxu0
        %3679 = vmatprep.mubr.bf16.mxu0 0
        %3680 = vmatmul.mubr.bf16.gmra.mxu0 %v3586
        %v3681 = vpop.f32.mrf.mxu0
        %v3682 = vadd.f32 0.0, %v3681
        %v3683 = vpop.f32.mrf.mxu0
        %v3684 = vpop.f32.mrf.mxu0
        %v3685 = vadd.f32 0.0, %v3684
        %v3686 = vpop.f32.mrf.mxu0
        %3687 = vdwg.mxu0
        %v3688 = vadd.f32 %v3556, %v3626
        %v3689 = vadd.f32 %v3557, %v3629
        %v3690 = vadd.f32 %v3558, %v3634
        %v3691 = vadd.f32 %v3559, %v3637
        %v3692 = vadd.f32 %v3560, %v3642
        %v3693 = vadd.f32 %v3561, %v3645
        %v3694 = vadd.f32 %v3562, %v3650
        %v3695 = vadd.f32 %v3563, %v3653
        %v3696 = vadd.f32 %v3564, %v3658
        %v3697 = vadd.f32 %v3565, %v3661
        %v3698 = vadd.f32 %v3566, %v3666
        %v3699 = vadd.f32 %v3567, %v3669
        %v3700 = vadd.f32 %v3568, %v3674
        %v3701 = vadd.f32 %v3569, %v3677
        %v3702 = vadd.f32 %v3570, %v3682
        %v3703 = vadd.f32 %v3571, %v3685
        %v3704 = vshrl.u32 %v2986, 16
        %v3706 = vshll.u32 %v2986, 16
        %v3708 = vrot.slane %v3706, 1
        %v3709 = vor.u32 %v3704, %v3708
        %v3711 = vshll.u32 %v2987, 16
        %v3713 = vrot.slane %v3711, 1
        %v3714 = vsel %vm3341, %v3709, %v3713
        %s3715 = scalar_lea.vmem %s4, 14
        %v3716 = vld [vmem:[%s3715] sm:$0x3]
        %v3718 = vsel %vm2991, %v3714, 0
        %v3721 = vsel %vm3016, %v3716, 0
        %3723 = vmatprep.subr.bf16.mxu0 0
        %3724 = vmatpush1.bf16.msra.mxu0 0
        %3725 = vmatprep.subr.bf16.mxu0 0
        %3726 = vmatpush1.bf16.msra.mxu0 0
        %3727 = vmatprep.subr.bf16.mxu0 0
        %3728 = vmatpush1.bf16.msra.mxu0 0
        %3729 = vmatprep.subr.bf16.mxu0 0
        %3730 = vmatpush1.bf16.msra.mxu0 0
        %3731 = vmatprep.subr.bf16.mxu0 0
        %3732 = vmatpush1.bf16.msra.mxu0 0
        %3733 = vmatprep.subr.bf16.mxu0 0
        %3734 = vmatpush1.bf16.msra.mxu0 0
        %3735 = vmatprep.subr.bf16.mxu0 0
        %3736 = vmatpush1.bf16.msra.mxu0 0
        %3737 = vmatprep.subr.bf16.mxu0 0
        %3738 = vmatpush1.bf16.msra.mxu0 %v3721
        %3739 = vmatprep.subr.bf16.mxu0 0
        %3740 = vmatpush2.bf16.msra.mxu0 0
        %3741 = vmatprep.subr.bf16.mxu0 0
        %3742 = vmatpush2.bf16.msra.mxu0 0
        %3743 = vmatprep.subr.bf16.mxu0 0
        %3744 = vmatpush2.bf16.msra.mxu0 0
        %3745 = vmatprep.subr.bf16.mxu0 0
        %3746 = vmatpush2.bf16.msra.mxu0 0
        %3747 = vmatprep.subr.bf16.mxu0 0
        %3748 = vmatpush2.bf16.msra.mxu0 0
        %3749 = vmatprep.subr.bf16.mxu0 0
        %3750 = vmatpush2.bf16.msra.mxu0 0
        %3751 = vmatprep.subr.bf16.mxu0 0
        %3752 = vmatpush2.bf16.msra.mxu0 0
        %3753 = vmatprep.subr.bf16.mxu0 0
        %3754 = vmatpush2.bf16.msra.mxu0 0
        %3755 = vmatprep.mubr.bf16.mxu0 0
        %3756 = vmatmul.mubr.bf16.gmra.mxu0 %v3439
        %v3757 = vpop.f32.mrf.mxu0
        %v3758 = vadd.f32 0.0, %v3757
        %v3759 = vpop.f32.mrf.mxu0
        %v3760 = vpop.f32.mrf.mxu0
        %v3761 = vadd.f32 0.0, %v3760
        %v3762 = vpop.f32.mrf.mxu0
        %3763 = vmatprep.mubr.bf16.mxu0 0
        %3764 = vmatmul.mubr.bf16.gmra.mxu0 %v3442
        %v3765 = vpop.f32.mrf.mxu0
        %v3766 = vadd.f32 0.0, %v3765
        %v3767 = vpop.f32.mrf.mxu0
        %v3768 = vpop.f32.mrf.mxu0
        %v3769 = vadd.f32 0.0, %v3768
        %v3770 = vpop.f32.mrf.mxu0
        %3771 = vmatprep.mubr.bf16.mxu0 0
        %3772 = vmatmul.mubr.bf16.gmra.mxu0 %v3445
        %v3773 = vpop.f32.mrf.mxu0
        %v3774 = vadd.f32 0.0, %v3773
        %v3775 = vpop.f32.mrf.mxu0
        %v3776 = vpop.f32.mrf.mxu0
        %v3777 = vadd.f32 0.0, %v3776
        %v3778 = vpop.f32.mrf.mxu0
        %3779 = vmatprep.mubr.bf16.mxu0 0
        %3780 = vmatmul.mubr.bf16.gmra.mxu0 %v3448
        %v3781 = vpop.f32.mrf.mxu0
        %v3782 = vadd.f32 0.0, %v3781
        %v3783 = vpop.f32.mrf.mxu0
        %v3784 = vpop.f32.mrf.mxu0
        %v3785 = vadd.f32 0.0, %v3784
        %v3786 = vpop.f32.mrf.mxu0
        %3787 = vmatprep.mubr.bf16.mxu0 0
        %3788 = vmatmul.mubr.bf16.gmra.mxu0 %v3451
        %v3789 = vpop.f32.mrf.mxu0
        %v3790 = vadd.f32 0.0, %v3789
        %v3791 = vpop.f32.mrf.mxu0
        %v3792 = vpop.f32.mrf.mxu0
        %v3793 = vadd.f32 0.0, %v3792
        %v3794 = vpop.f32.mrf.mxu0
        %3795 = vmatprep.mubr.bf16.mxu0 0
        %3796 = vmatmul.mubr.bf16.gmra.mxu0 %v3454
        %v3797 = vpop.f32.mrf.mxu0
        %v3798 = vadd.f32 0.0, %v3797
        %v3799 = vpop.f32.mrf.mxu0
        %v3800 = vpop.f32.mrf.mxu0
        %v3801 = vadd.f32 0.0, %v3800
        %v3802 = vpop.f32.mrf.mxu0
        %3803 = vmatprep.mubr.bf16.mxu0 0
        %3804 = vmatmul.mubr.bf16.gmra.mxu0 %v3586
        %v3805 = vpop.f32.mrf.mxu0
        %v3806 = vadd.f32 0.0, %v3805
        %v3807 = vpop.f32.mrf.mxu0
        %v3808 = vpop.f32.mrf.mxu0
        %v3809 = vadd.f32 0.0, %v3808
        %v3810 = vpop.f32.mrf.mxu0
        %3811 = vmatprep.mubr.bf16.mxu0 0
        %3812 = vmatmul.mubr.bf16.gmra.mxu0 %v3718
        %v3813 = vpop.f32.mrf.mxu0
        %v3814 = vadd.f32 0.0, %v3813
        %v3815 = vpop.f32.mrf.mxu0
        %v3816 = vpop.f32.mrf.mxu0
        %v3817 = vadd.f32 0.0, %v3816
        %v3818 = vpop.f32.mrf.mxu0
        %3819 = vdwg.mxu0
        %v3820 = vadd.f32 %v3688, %v3758
        %v3821 = vadd.f32 %v3689, %v3761
        %v3822 = vadd.f32 %v3690, %v3766
        %v3823 = vadd.f32 %v3691, %v3769
        %v3824 = vadd.f32 %v3692, %v3774
        %v3825 = vadd.f32 %v3693, %v3777
        %v3826 = vadd.f32 %v3694, %v3782
        %v3827 = vadd.f32 %v3695, %v3785
        %v3828 = vadd.f32 %v3696, %v3790
        %v3829 = vadd.f32 %v3697, %v3793
        %v3830 = vadd.f32 %v3698, %v3798
        %v3831 = vadd.f32 %v3699, %v3801
        %v3832 = vadd.f32 %v3700, %v3806
        %v3833 = vadd.f32 %v3701, %v3809
        %v3834 = vadd.f32 %v3702, %v3814
        %v3835 = vadd.f32 %v3703, %v3817
        %vm3852 = vcmask 1046528
        %v3853 = vrot.slane %v2968, 1
        %v3854 = vrot.slane %v2969, 1
        %v3855 = vsel %vm3852, %v3853, %v3854
        %v3856 = vrot.slane %v2970, 1
        %v3857 = vrot.slane %v2971, 1
        %v3858 = vsel %vm3852, %v3856, %v3857
        %v3859 = vrot.slane %v2972, 1
        %v3860 = vrot.slane %v2973, 1
        %v3861 = vsel %vm3852, %v3859, %v3860
        %v3862 = vrot.slane %v2974, 1
        %v3863 = vrot.slane %v2975, 1
        %v3864 = vsel %vm3852, %v3862, %v3863
        %v3865 = vrot.slane %v2976, 1
        %v3866 = vrot.slane %v2977, 1
        %v3867 = vsel %vm3852, %v3865, %v3866
        %v3868 = vrot.slane %v2978, 1
        %v3869 = vrot.slane %v2979, 1
        %v3870 = vsel %vm3852, %v3868, %v3869
        %v3871 = vrot.slane %v2980, 1
        %v3872 = vrot.slane %v2981, 1
        %v3873 = vsel %vm3852, %v3871, %v3872
        %v3874 = vrot.slane %v2982, 1
        %v3875 = vrot.slane %v2983, 1
        %v3876 = vsel %vm3852, %v3874, %v3875
        %s3877 = scalar_lea.vmem %s4, 4
        %v3878 = vld [vmem:[%s3877] sm:$0x3]
        %v3880 = vsel %vm2991, %v3855, 0
        %v3883 = vsel %vm2991, %v3858, 0
        %v3886 = vsel %vm2991, %v3861, 0
        %v3889 = vsel %vm2991, %v3864, 0
        %v3892 = vsel %vm2991, %v3867, 0
        %v3895 = vsel %vm2991, %v3870, 0
        %v3898 = vsel %vm2991, %v3873, 0
        %v3901 = vsel %vm2991, %v3876, 0
        %v3904 = vsel %vm3016, %v3878, 0
        %3906 = vmatprep.subr.bf16.mxu0 0
        %3907 = vmatpush1.bf16.msra.mxu0 0
        %3908 = vmatprep.subr.bf16.mxu0 0
        %3909 = vmatpush1.bf16.msra.mxu0 0
        %3910 = vmatprep.subr.bf16.mxu0 0
        %3911 = vmatpush1.bf16.msra.mxu0 0
        %3912 = vmatprep.subr.bf16.mxu0 0
        %3913 = vmatpush1.bf16.msra.mxu0 0
        %3914 = vmatprep.subr.bf16.mxu0 0
        %3915 = vmatpush1.bf16.msra.mxu0 0
        %3916 = vmatprep.subr.bf16.mxu0 0
        %3917 = vmatpush1.bf16.msra.mxu0 0
        %3918 = vmatprep.subr.bf16.mxu0 0
        %3919 = vmatpush1.bf16.msra.mxu0 0
        %3920 = vmatprep.subr.bf16.mxu0 0
        %3921 = vmatpush1.bf16.msra.mxu0 %v3904
        %3922 = vmatprep.subr.bf16.mxu0 0
        %3923 = vmatpush2.bf16.msra.mxu0 0
        %3924 = vmatprep.subr.bf16.mxu0 0
        %3925 = vmatpush2.bf16.msra.mxu0 0
        %3926 = vmatprep.subr.bf16.mxu0 0
        %3927 = vmatpush2.bf16.msra.mxu0 0
        %3928 = vmatprep.subr.bf16.mxu0 0
        %3929 = vmatpush2.bf16.msra.mxu0 0
        %3930 = vmatprep.subr.bf16.mxu0 0
        %3931 = vmatpush2.bf16.msra.mxu0 0
        %3932 = vmatprep.subr.bf16.mxu0 0
        %3933 = vmatpush2.bf16.msra.mxu0 0
        %3934 = vmatprep.subr.bf16.mxu0 0
        %3935 = vmatpush2.bf16.msra.mxu0 0
        %3936 = vmatprep.subr.bf16.mxu0 0
        %3937 = vmatpush2.bf16.msra.mxu0 0
        %3938 = vmatprep.mubr.bf16.mxu0 0
        %3939 = vmatmul.mubr.bf16.gmra.mxu0 %v3880
        %v3940 = vpop.f32.mrf.mxu0
        %v3941 = vadd.f32 0.0, %v3940
        %v3942 = vpop.f32.mrf.mxu0
        %v3943 = vpop.f32.mrf.mxu0
        %v3944 = vadd.f32 0.0, %v3943
        %v3945 = vpop.f32.mrf.mxu0
        %3946 = vmatprep.mubr.bf16.mxu0 0
        %3947 = vmatmul.mubr.bf16.gmra.mxu0 %v3883
        %v3948 = vpop.f32.mrf.mxu0
        %v3949 = vadd.f32 0.0, %v3948
        %v3950 = vpop.f32.mrf.mxu0
        %v3951 = vpop.f32.mrf.mxu0
        %v3952 = vadd.f32 0.0, %v3951
        %v3953 = vpop.f32.mrf.mxu0
        %3954 = vmatprep.mubr.bf16.mxu0 0
        %3955 = vmatmul.mubr.bf16.gmra.mxu0 %v3886
        %v3956 = vpop.f32.mrf.mxu0
        %v3957 = vadd.f32 0.0, %v3956
        %v3958 = vpop.f32.mrf.mxu0
        %v3959 = vpop.f32.mrf.mxu0
        %v3960 = vadd.f32 0.0, %v3959
        %v3961 = vpop.f32.mrf.mxu0
        %3962 = vmatprep.mubr.bf16.mxu0 0
        %3963 = vmatmul.mubr.bf16.gmra.mxu0 %v3889
        %v3964 = vpop.f32.mrf.mxu0
        %v3965 = vadd.f32 0.0, %v3964
        %v3966 = vpop.f32.mrf.mxu0
        %v3967 = vpop.f32.mrf.mxu0
        %v3968 = vadd.f32 0.0, %v3967
        %v3969 = vpop.f32.mrf.mxu0
        %3970 = vmatprep.mubr.bf16.mxu0 0
        %3971 = vmatmul.mubr.bf16.gmra.mxu0 %v3892
        %v3972 = vpop.f32.mrf.mxu0
        %v3973 = vadd.f32 0.0, %v3972
        %v3974 = vpop.f32.mrf.mxu0
        %v3975 = vpop.f32.mrf.mxu0
        %v3976 = vadd.f32 0.0, %v3975
        %v3977 = vpop.f32.mrf.mxu0
        %3978 = vmatprep.mubr.bf16.mxu0 0
        %3979 = vmatmul.mubr.bf16.gmra.mxu0 %v3895
        %v3980 = vpop.f32.mrf.mxu0
        %v3981 = vadd.f32 0.0, %v3980
        %v3982 = vpop.f32.mrf.mxu0
        %v3983 = vpop.f32.mrf.mxu0
        %v3984 = vadd.f32 0.0, %v3983
        %v3985 = vpop.f32.mrf.mxu0
        %3986 = vmatprep.mubr.bf16.mxu0 0
        %3987 = vmatmul.mubr.bf16.gmra.mxu0 %v3898
        %v3988 = vpop.f32.mrf.mxu0
        %v3989 = vadd.f32 0.0, %v3988
        %v3990 = vpop.f32.mrf.mxu0
        %v3991 = vpop.f32.mrf.mxu0
        %v3992 = vadd.f32 0.0, %v3991
        %v3993 = vpop.f32.mrf.mxu0
        %3994 = vmatprep.mubr.bf16.mxu0 0
        %3995 = vmatmul.mubr.bf16.gmra.mxu0 %v3901
        %v3996 = vpop.f32.mrf.mxu0
        %v3997 = vadd.f32 0.0, %v3996
        %v3998 = vpop.f32.mrf.mxu0
        %v3999 = vpop.f32.mrf.mxu0
        %v4000 = vadd.f32 0.0, %v3999
        %v4001 = vpop.f32.mrf.mxu0
        %4002 = vdwg.mxu0
        %v4003 = vadd.f32 %v3820, %v3941
        %v4004 = vadd.f32 %v3821, %v3944
        %v4005 = vadd.f32 %v3822, %v3949
        %v4006 = vadd.f32 %v3823, %v3952
        %v4007 = vadd.f32 %v3824, %v3957
        %v4008 = vadd.f32 %v3825, %v3960
        %v4009 = vadd.f32 %v3826, %v3965
        %v4010 = vadd.f32 %v3827, %v3968
        %v4011 = vadd.f32 %v3828, %v3973
        %v4012 = vadd.f32 %v3829, %v3976
        %v4013 = vadd.f32 %v3830, %v3981
        %v4014 = vadd.f32 %v3831, %v3984
        %v4015 = vadd.f32 %v3832, %v3989
        %v4016 = vadd.f32 %v3833, %v3992
        %v4017 = vadd.f32 %v3834, %v3997
        %v4018 = vadd.f32 %v3835, %v4000
        %v4021 = vrot.slane %v2984, 1
        %v4022 = vrot.slane %v2985, 1
        %v4023 = vsel %vm3852, %v4021, %v4022
        %s4024 = scalar_lea.vmem %s4, 10
        %v4025 = vld [vmem:[%s4024] sm:$0x3]
        %v4027 = vsel %vm2991, %v4023, 0
        %v4030 = vsel %vm3016, %v4025, 0
        %4032 = vmatprep.subr.bf16.mxu0 0
        %4033 = vmatpush1.bf16.msra.mxu0 0
        %4034 = vmatprep.subr.bf16.mxu0 0
        %4035 = vmatpush1.bf16.msra.mxu0 0
        %4036 = vmatprep.subr.bf16.mxu0 0
        %4037 = vmatpush1.bf16.msra.mxu0 0
        %4038 = vmatprep.subr.bf16.mxu0 0
        %4039 = vmatpush1.bf16.msra.mxu0 0
        %4040 = vmatprep.subr.bf16.mxu0 0
        %4041 = vmatpush1.bf16.msra.mxu0 0
        %4042 = vmatprep.subr.bf16.mxu0 0
        %4043 = vmatpush1.bf16.msra.mxu0 0
        %4044 = vmatprep.subr.bf16.mxu0 0
        %4045 = vmatpush1.bf16.msra.mxu0 0
        %4046 = vmatprep.subr.bf16.mxu0 0
        %4047 = vmatpush1.bf16.msra.mxu0 %v4030
        %4048 = vmatprep.subr.bf16.mxu0 0
        %4049 = vmatpush2.bf16.msra.mxu0 0
        %4050 = vmatprep.subr.bf16.mxu0 0
        %4051 = vmatpush2.bf16.msra.mxu0 0
        %4052 = vmatprep.subr.bf16.mxu0 0
        %4053 = vmatpush2.bf16.msra.mxu0 0
        %4054 = vmatprep.subr.bf16.mxu0 0
        %4055 = vmatpush2.bf16.msra.mxu0 0
        %4056 = vmatprep.subr.bf16.mxu0 0
        %4057 = vmatpush2.bf16.msra.mxu0 0
        %4058 = vmatprep.subr.bf16.mxu0 0
        %4059 = vmatpush2.bf16.msra.mxu0 0
        %4060 = vmatprep.subr.bf16.mxu0 0
        %4061 = vmatpush2.bf16.msra.mxu0 0
        %4062 = vmatprep.subr.bf16.mxu0 0
        %4063 = vmatpush2.bf16.msra.mxu0 0
        %4064 = vmatprep.mubr.bf16.mxu0 0
        %4065 = vmatmul.mubr.bf16.gmra.mxu0 %v3883
        %v4066 = vpop.f32.mrf.mxu0
        %v4067 = vadd.f32 0.0, %v4066
        %v4068 = vpop.f32.mrf.mxu0
        %v4069 = vpop.f32.mrf.mxu0
        %v4070 = vadd.f32 0.0, %v4069
        %v4071 = vpop.f32.mrf.mxu0
        %4072 = vmatprep.mubr.bf16.mxu0 0
        %4073 = vmatmul.mubr.bf16.gmra.mxu0 %v3886
        %v4074 = vpop.f32.mrf.mxu0
        %v4075 = vadd.f32 0.0, %v4074
        %v4076 = vpop.f32.mrf.mxu0
        %v4077 = vpop.f32.mrf.mxu0
        %v4078 = vadd.f32 0.0, %v4077
        %v4079 = vpop.f32.mrf.mxu0
        %4080 = vmatprep.mubr.bf16.mxu0 0
        %4081 = vmatmul.mubr.bf16.gmra.mxu0 %v3889
        %v4082 = vpop.f32.mrf.mxu0
        %v4083 = vadd.f32 0.0, %v4082
        %v4084 = vpop.f32.mrf.mxu0
        %v4085 = vpop.f32.mrf.mxu0
        %v4086 = vadd.f32 0.0, %v4085
        %v4087 = vpop.f32.mrf.mxu0
        %4088 = vmatprep.mubr.bf16.mxu0 0
        %4089 = vmatmul.mubr.bf16.gmra.mxu0 %v3892
        %v4090 = vpop.f32.mrf.mxu0
        %v4091 = vadd.f32 0.0, %v4090
        %v4092 = vpop.f32.mrf.mxu0
        %v4093 = vpop.f32.mrf.mxu0
        %v4094 = vadd.f32 0.0, %v4093
        %v4095 = vpop.f32.mrf.mxu0
        %4096 = vmatprep.mubr.bf16.mxu0 0
        %4097 = vmatmul.mubr.bf16.gmra.mxu0 %v3895
        %v4098 = vpop.f32.mrf.mxu0
        %v4099 = vadd.f32 0.0, %v4098
        %v4100 = vpop.f32.mrf.mxu0
        %v4101 = vpop.f32.mrf.mxu0
        %v4102 = vadd.f32 0.0, %v4101
        %v4103 = vpop.f32.mrf.mxu0
        %4104 = vmatprep.mubr.bf16.mxu0 0
        %4105 = vmatmul.mubr.bf16.gmra.mxu0 %v3898
        %v4106 = vpop.f32.mrf.mxu0
        %v4107 = vadd.f32 0.0, %v4106
        %v4108 = vpop.f32.mrf.mxu0
        %v4109 = vpop.f32.mrf.mxu0
        %v4110 = vadd.f32 0.0, %v4109
        %v4111 = vpop.f32.mrf.mxu0
        %4112 = vmatprep.mubr.bf16.mxu0 0
        %4113 = vmatmul.mubr.bf16.gmra.mxu0 %v3901
        %v4114 = vpop.f32.mrf.mxu0
        %v4115 = vadd.f32 0.0, %v4114
        %v4116 = vpop.f32.mrf.mxu0
        %v4117 = vpop.f32.mrf.mxu0
        %v4118 = vadd.f32 0.0, %v4117
        %v4119 = vpop.f32.mrf.mxu0
        %4120 = vmatprep.mubr.bf16.mxu0 0
        %4121 = vmatmul.mubr.bf16.gmra.mxu0 %v4027
        %v4122 = vpop.f32.mrf.mxu0
        %v4123 = vadd.f32 0.0, %v4122
        %v4124 = vpop.f32.mrf.mxu0
        %v4125 = vpop.f32.mrf.mxu0
        %v4126 = vadd.f32 0.0, %v4125
        %v4127 = vpop.f32.mrf.mxu0
        %4128 = vdwg.mxu0
        %v4129 = vadd.f32 %v4003, %v4067
        %v4130 = vadd.f32 %v4004, %v4070
        %v4131 = vadd.f32 %v4005, %v4075
        %v4132 = vadd.f32 %v4006, %v4078
        %v4133 = vadd.f32 %v4007, %v4083
        %v4134 = vadd.f32 %v4008, %v4086
        %v4135 = vadd.f32 %v4009, %v4091
        %v4136 = vadd.f32 %v4010, %v4094
        %v4137 = vadd.f32 %v4011, %v4099
        %v4138 = vadd.f32 %v4012, %v4102
        %v4139 = vadd.f32 %v4013, %v4107
        %v4140 = vadd.f32 %v4014, %v4110
        %v4141 = vadd.f32 %v4015, %v4115
        %v4142 = vadd.f32 %v4016, %v4118
        %v4143 = vadd.f32 %v4017, %v4123
        %v4144 = vadd.f32 %v4018, %v4126
        %v4147 = vrot.slane %v2986, 1
        %v4148 = vrot.slane %v2987, 1
        %v4149 = vsel %vm3852, %v4147, %v4148
        %s4150 = scalar_lea.vmem %s4, 16
        %v4151 = vld [vmem:[%s4150] sm:$0x3]
        %v4153 = vsel %vm2991, %v4149, 0
        %v4156 = vsel %vm3016, %v4151, 0
        %4158 = vmatprep.subr.bf16.mxu0 0
        %4159 = vmatpush1.bf16.msra.mxu0 0
        %4160 = vmatprep.subr.bf16.mxu0 0
        %4161 = vmatpush1.bf16.msra.mxu0 0
        %4162 = vmatprep.subr.bf16.mxu0 0
        %4163 = vmatpush1.bf16.msra.mxu0 0
        %4164 = vmatprep.subr.bf16.mxu0 0
        %4165 = vmatpush1.bf16.msra.mxu0 0
        %4166 = vmatprep.subr.bf16.mxu0 0
        %4167 = vmatpush1.bf16.msra.mxu0 0
        %4168 = vmatprep.subr.bf16.mxu0 0
        %4169 = vmatpush1.bf16.msra.mxu0 0
        %4170 = vmatprep.subr.bf16.mxu0 0
        %4171 = vmatpush1.bf16.msra.mxu0 0
        %4172 = vmatprep.subr.bf16.mxu0 0
        %4173 = vmatpush1.bf16.msra.mxu0 %v4156
        %4174 = vmatprep.subr.bf16.mxu0 0
        %4175 = vmatpush2.bf16.msra.mxu0 0
        %4176 = vmatprep.subr.bf16.mxu0 0
        %4177 = vmatpush2.bf16.msra.mxu0 0
        %4178 = vmatprep.subr.bf16.mxu0 0
        %4179 = vmatpush2.bf16.msra.mxu0 0
        %4180 = vmatprep.subr.bf16.mxu0 0
        %4181 = vmatpush2.bf16.msra.mxu0 0
        %4182 = vmatprep.subr.bf16.mxu0 0
        %4183 = vmatpush2.bf16.msra.mxu0 0
        %4184 = vmatprep.subr.bf16.mxu0 0
        %4185 = vmatpush2.bf16.msra.mxu0 0
        %4186 = vmatprep.subr.bf16.mxu0 0
        %4187 = vmatpush2.bf16.msra.mxu0 0
        %4188 = vmatprep.subr.bf16.mxu0 0
        %4189 = vmatpush2.bf16.msra.mxu0 0
        %4190 = vmatprep.mubr.bf16.mxu0 0
        %4191 = vmatmul.mubr.bf16.gmra.mxu0 %v3886
        %v4192 = vpop.f32.mrf.mxu0
        %v4193 = vadd.f32 0.0, %v4192
        %v4194 = vpop.f32.mrf.mxu0
        %v4195 = vpop.f32.mrf.mxu0
        %v4196 = vadd.f32 0.0, %v4195
        %v4197 = vpop.f32.mrf.mxu0
        %4198 = vmatprep.mubr.bf16.mxu0 0
        %4199 = vmatmul.mubr.bf16.gmra.mxu0 %v3889
        %v4200 = vpop.f32.mrf.mxu0
        %v4201 = vadd.f32 0.0, %v4200
        %v4202 = vpop.f32.mrf.mxu0
        %v4203 = vpop.f32.mrf.mxu0
        %v4204 = vadd.f32 0.0, %v4203
        %v4205 = vpop.f32.mrf.mxu0
        %4206 = vmatprep.mubr.bf16.mxu0 0
        %4207 = vmatmul.mubr.bf16.gmra.mxu0 %v3892
        %v4208 = vpop.f32.mrf.mxu0
        %v4209 = vadd.f32 0.0, %v4208
        %v4210 = vpop.f32.mrf.mxu0
        %v4211 = vpop.f32.mrf.mxu0
        %v4212 = vadd.f32 0.0, %v4211
        %v4213 = vpop.f32.mrf.mxu0
        %4214 = vmatprep.mubr.bf16.mxu0 0
        %4215 = vmatmul.mubr.bf16.gmra.mxu0 %v3895
        %v4216 = vpop.f32.mrf.mxu0
        %v4217 = vadd.f32 0.0, %v4216
        %v4218 = vpop.f32.mrf.mxu0
        %v4219 = vpop.f32.mrf.mxu0
        %v4220 = vadd.f32 0.0, %v4219
        %v4221 = vpop.f32.mrf.mxu0
        %4222 = vmatprep.mubr.bf16.mxu0 0
        %4223 = vmatmul.mubr.bf16.gmra.mxu0 %v3898
        %v4224 = vpop.f32.mrf.mxu0
        %v4225 = vadd.f32 0.0, %v4224
        %v4226 = vpop.f32.mrf.mxu0
        %v4227 = vpop.f32.mrf.mxu0
        %v4228 = vadd.f32 0.0, %v4227
        %v4229 = vpop.f32.mrf.mxu0
        %4230 = vmatprep.mubr.bf16.mxu0 0
        %4231 = vmatmul.mubr.bf16.gmra.mxu0 %v3901
        %v4232 = vpop.f32.mrf.mxu0
        %v4233 = vadd.f32 0.0, %v4232
        %v4234 = vpop.f32.mrf.mxu0
        %v4235 = vpop.f32.mrf.mxu0
        %v4236 = vadd.f32 0.0, %v4235
        %v4237 = vpop.f32.mrf.mxu0
        %4238 = vmatprep.mubr.bf16.mxu0 0
        %4239 = vmatmul.mubr.bf16.gmra.mxu0 %v4027
        %v4240 = vpop.f32.mrf.mxu0
        %v4241 = vadd.f32 0.0, %v4240
        %v4242 = vpop.f32.mrf.mxu0
        %v4243 = vpop.f32.mrf.mxu0
        %v4244 = vadd.f32 0.0, %v4243
        %v4245 = vpop.f32.mrf.mxu0
        %4246 = vmatprep.mubr.bf16.mxu0 0
        %4247 = vmatmul.mubr.bf16.gmra.mxu0 %v4153
        %v4248 = vpop.f32.mrf.mxu0
        %v4249 = vadd.f32 0.0, %v4248
        %v4250 = vpop.f32.mrf.mxu0
        %v4251 = vpop.f32.mrf.mxu0
        %v4252 = vadd.f32 0.0, %v4251
        %v4253 = vpop.f32.mrf.mxu0
        %4254 = vdwg.mxu0
        %v4255 = vadd.f32 %v4129, %v4193
        %v4256 = vadd.f32 %v4130, %v4196
        %v4257 = vadd.f32 %v4131, %v4201
        %v4258 = vadd.f32 %v4132, %v4204
        %v4259 = vadd.f32 %v4133, %v4209
        %v4260 = vadd.f32 %v4134, %v4212
        %v4261 = vadd.f32 %v4135, %v4217
        %v4262 = vadd.f32 %v4136, %v4220
        %v4263 = vadd.f32 %v4137, %v4225
        %v4264 = vadd.f32 %v4138, %v4228
        %v4265 = vadd.f32 %v4139, %v4233
        %v4266 = vadd.f32 %v4140, %v4236
        %v4267 = vadd.f32 %v4141, %v4241
        %v4268 = vadd.f32 %v4142, %v4244
        %v4269 = vadd.f32 %v4143, %v4249
        %v4270 = vadd.f32 %v4144, %v4252
        %v4271 = vld [vmem:[%s7] sm:$0x1]
        %v4273 = vlaneseq
        %v4274 = vshrl.u32 %v4273, 7
        %v4275 = vsub.s32 0, %v4274
        %v4276 = vrot.slane %v4271, %v4275
        %v4278 = vadd.f32 %v4255, %v4276
        %v4279 = vadd.f32 %v4256, %v4276
        %v4280 = vadd.f32 %v4257, %v4276
        %v4281 = vadd.f32 %v4258, %v4276
        %v4282 = vadd.f32 %v4259, %v4276
        %v4283 = vadd.f32 %v4260, %v4276
        %v4284 = vadd.f32 %v4261, %v4276
        %v4285 = vadd.f32 %v4262, %v4276
        %v4286 = vadd.f32 %v4263, %v4276
        %v4287 = vadd.f32 %v4264, %v4276
        %v4288 = vadd.f32 %v4265, %v4276
        %v4289 = vadd.f32 %v4266, %v4276
        %v4290 = vadd.f32 %v4267, %v4276
        %v4291 = vadd.f32 %v4268, %v4276
        %v4292 = vadd.f32 %v4269, %v4276
        %v4293 = vadd.f32 %v4270, %v4276
        %v4294 = vmax.f32 %v4278, 0.0
        %v4295 = vmax.f32 %v4279, 0.0
        %v4296 = vmax.f32 %v4280, 0.0
        %v4297 = vmax.f32 %v4281, 0.0
        %v4298 = vmax.f32 %v4282, 0.0
        %v4299 = vmax.f32 %v4283, 0.0
        %v4300 = vmax.f32 %v4284, 0.0
        %v4301 = vmax.f32 %v4285, 0.0
        %v4302 = vmax.f32 %v4286, 0.0
        %v4303 = vmax.f32 %v4287, 0.0
        %v4304 = vmax.f32 %v4288, 0.0
        %v4305 = vmax.f32 %v4289, 0.0
        %v4306 = vmax.f32 %v4290, 0.0
        %v4307 = vmax.f32 %v4291, 0.0
        %v4308 = vmax.f32 %v4292, 0.0
        %v4309 = vmax.f32 %v4293, 0.0
        %v4310 = vpack.c.bf16 %v4295, %v4294
        %v4311 = vpack.c.bf16 %v4297, %v4296
        %v4312 = vpack.c.bf16 %v4299, %v4298
        %v4313 = vpack.c.bf16 %v4301, %v4300
        %v4314 = vpack.c.bf16 %v4303, %v4302
        %v4315 = vpack.c.bf16 %v4305, %v4304
        %v4316 = vpack.c.bf16 %v4307, %v4306
        %v4317 = vpack.c.bf16 %v4309, %v4308
        %v4318 = vld [vmem:[%s5] sm:$0x3]
        %v4319 = vld [vmem:[%s8] sm:$0x1]
        %v4321 = vlaneseq
        %v4322 = vshrl.u32 %v4321, 7
        %v4323 = vsub.s32 0, %v4322
        %v4324 = vrot.slane %v4319, %v4323
        %v4327 = vsel %vm2991, %v4310, 0
        %v4330 = vsel %vm2991, %v4311, 0
        %v4333 = vsel %vm2991, %v4312, 0
        %v4336 = vsel %vm2991, %v4313, 0
        %v4339 = vsel %vm2991, %v4314, 0
        %v4342 = vsel %vm2991, %v4315, 0
        %v4345 = vsel %vm2991, %v4316, 0
        %v4348 = vsel %vm2991, %v4317, 0
        %v4351 = vsel %vm3016, %v4318, 0
        %4353 = vmatprep.subr.bf16.mxu0 0
        %4354 = vmatpush1.bf16.msra.mxu0 0
        %4355 = vmatprep.subr.bf16.mxu0 0
        %4356 = vmatpush1.bf16.msra.mxu0 0
        %4357 = vmatprep.subr.bf16.mxu0 0
        %4358 = vmatpush1.bf16.msra.mxu0 0
        %4359 = vmatprep.subr.bf16.mxu0 0
        %4360 = vmatpush1.bf16.msra.mxu0 0
        %4361 = vmatprep.subr.bf16.mxu0 0
        %4362 = vmatpush1.bf16.msra.mxu0 0
        %4363 = vmatprep.subr.bf16.mxu0 0
        %4364 = vmatpush1.bf16.msra.mxu0 0
        %4365 = vmatprep.subr.bf16.mxu0 0
        %4366 = vmatpush1.bf16.msra.mxu0 0
        %4367 = vmatprep.subr.bf16.mxu0 0
        %4368 = vmatpush1.bf16.msra.mxu0 %v4351
        %4369 = vmatprep.subr.bf16.mxu0 0
        %4370 = vmatpush2.bf16.msra.mxu0 0
        %4371 = vmatprep.subr.bf16.mxu0 0
        %4372 = vmatpush2.bf16.msra.mxu0 0
        %4373 = vmatprep.subr.bf16.mxu0 0
        %4374 = vmatpush2.bf16.msra.mxu0 0
        %4375 = vmatprep.subr.bf16.mxu0 0
        %4376 = vmatpush2.bf16.msra.mxu0 0
        %4377 = vmatprep.subr.bf16.mxu0 0
        %4378 = vmatpush2.bf16.msra.mxu0 0
        %4379 = vmatprep.subr.bf16.mxu0 0
        %4380 = vmatpush2.bf16.msra.mxu0 0
        %4381 = vmatprep.subr.bf16.mxu0 0
        %4382 = vmatpush2.bf16.msra.mxu0 0
        %4383 = vmatprep.subr.bf16.mxu0 0
        %4384 = vmatpush2.bf16.msra.mxu0 0
        %4385 = vmatprep.mubr.bf16.mxu0 0
        %4386 = vmatmul.mubr.bf16.gmra.mxu0 %v4327
        %v4387 = vpop.f32.mrf.mxu0
        %v4388 = vadd.f32 %v4324, %v4387
        %v4389 = vpop.f32.mrf.mxu0
        %v4390 = vpop.f32.mrf.mxu0
        %v4391 = vadd.f32 %v4324, %v4390
        %v4392 = vpop.f32.mrf.mxu0
        %4393 = vmatprep.mubr.bf16.mxu0 0
        %4394 = vmatmul.mubr.bf16.gmra.mxu0 %v4330
        %v4395 = vpop.f32.mrf.mxu0
        %v4396 = vadd.f32 %v4324, %v4395
        %v4397 = vpop.f32.mrf.mxu0
        %v4398 = vpop.f32.mrf.mxu0
        %v4399 = vadd.f32 %v4324, %v4398
        %v4400 = vpop.f32.mrf.mxu0
        %4401 = vmatprep.mubr.bf16.mxu0 0
        %4402 = vmatmul.mubr.bf16.gmra.mxu0 %v4333
        %v4403 = vpop.f32.mrf.mxu0
        %v4404 = vadd.f32 %v4324, %v4403
        %v4405 = vpop.f32.mrf.mxu0
        %v4406 = vpop.f32.mrf.mxu0
        %v4407 = vadd.f32 %v4324, %v4406
        %v4408 = vpop.f32.mrf.mxu0
        %4409 = vmatprep.mubr.bf16.mxu0 0
        %4410 = vmatmul.mubr.bf16.gmra.mxu0 %v4336
        %v4411 = vpop.f32.mrf.mxu0
        %v4412 = vadd.f32 %v4324, %v4411
        %v4413 = vpop.f32.mrf.mxu0
        %v4414 = vpop.f32.mrf.mxu0
        %v4415 = vadd.f32 %v4324, %v4414
        %v4416 = vpop.f32.mrf.mxu0
        %4417 = vmatprep.mubr.bf16.mxu0 0
        %4418 = vmatmul.mubr.bf16.gmra.mxu0 %v4339
        %v4419 = vpop.f32.mrf.mxu0
        %v4420 = vadd.f32 %v4324, %v4419
        %v4421 = vpop.f32.mrf.mxu0
        %v4422 = vpop.f32.mrf.mxu0
        %v4423 = vadd.f32 %v4324, %v4422
        %v4424 = vpop.f32.mrf.mxu0
        %4425 = vmatprep.mubr.bf16.mxu0 0
        %4426 = vmatmul.mubr.bf16.gmra.mxu0 %v4342
        %v4427 = vpop.f32.mrf.mxu0
        %v4428 = vadd.f32 %v4324, %v4427
        %v4429 = vpop.f32.mrf.mxu0
        %v4430 = vpop.f32.mrf.mxu0
        %v4431 = vadd.f32 %v4324, %v4430
        %v4432 = vpop.f32.mrf.mxu0
        %4433 = vmatprep.mubr.bf16.mxu0 0
        %4434 = vmatmul.mubr.bf16.gmra.mxu0 %v4345
        %v4435 = vpop.f32.mrf.mxu0
        %v4436 = vadd.f32 %v4324, %v4435
        %v4437 = vpop.f32.mrf.mxu0
        %v4438 = vpop.f32.mrf.mxu0
        %v4439 = vadd.f32 %v4324, %v4438
        %v4440 = vpop.f32.mrf.mxu0
        %4441 = vmatprep.mubr.bf16.mxu0 0
        %4442 = vmatmul.mubr.bf16.gmra.mxu0 %v4348
        %v4443 = vpop.f32.mrf.mxu0
        %v4444 = vadd.f32 %v4324, %v4443
        %v4445 = vpop.f32.mrf.mxu0
        %v4446 = vpop.f32.mrf.mxu0
        %v4447 = vadd.f32 %v4324, %v4446
        %v4448 = vpop.f32.mrf.mxu0
        %4449 = vdwg.mxu0
        %vm4450 = vsmask.f32 3328
        %vm4451 = vsmask.f32 7440
        %vm4452 = vmor %vm4450, %vm4451
        %v4454 = vshrl.u32 %v551, 16
        %v4456 = vrot.slane %v4454, 4
        %v4457 = vshll.u32 %v551, 16
        %v4459 = vrot.slane %v4457, 5
        %v4460 = vor.u32 %v4456, %v4459
        %v4461 = vrot.slane %v4460, 4
        %v4463 = vshll.u32 %v552, 16
        %v4465 = vrot.slane %v4463, 5
        %v4466 = vsel %vm4452, %v4461, %v4465
        %v4467 = vshrl.u32 %v552, 16
        %v4469 = vrot.slane %v4467, 4
        %v4470 = vor.u32 %v4469, %v4465
        %v4471 = vrot.slane %v4470, 4
        %v4473 = vshll.u32 %v553, 16
        %v4475 = vrot.slane %v4473, 5
        %v4476 = vsel %vm4452, %v4471, %v4475
        %v4478 = vshrl.u32 %v554, 16
        %v4480 = vrot.slane %v4478, 4
        %v4481 = vshll.u32 %v554, 16
        %v4483 = vrot.slane %v4481, 5
        %v4484 = vor.u32 %v4480, %v4483
        %v4485 = vrot.slane %v4484, 4
        %v4487 = vshll.u32 %v555, 16
        %v4489 = vrot.slane %v4487, 5
        %v4490 = vsel %vm4452, %v4485, %v4489
        %v4491 = vshrl.u32 %v555, 16
        %v4493 = vrot.slane %v4491, 4
        %v4494 = vor.u32 %v4493, %v4489
        %v4495 = vrot.slane %v4494, 4
        %v4497 = vshll.u32 %v556, 16
        %v4499 = vrot.slane %v4497, 5
        %v4500 = vsel %vm4452, %v4495, %v4499
        %v4502 = vshrl.u32 %v557, 16
        %v4504 = vrot.slane %v4502, 4
        %v4505 = vshll.u32 %v557, 16
        %v4507 = vrot.slane %v4505, 5
        %v4508 = vor.u32 %v4504, %v4507
        %v4509 = vrot.slane %v4508, 4
        %v4511 = vshll.u32 %v558, 16
        %v4513 = vrot.slane %v4511, 5
        %v4514 = vsel %vm4452, %v4509, %v4513
        %v4515 = vshrl.u32 %v558, 16
        %v4517 = vrot.slane %v4515, 4
        %v4518 = vor.u32 %v4517, %v4513
        %v4519 = vrot.slane %v4518, 4
        %v4521 = vshll.u32 %v559, 16
        %v4523 = vrot.slane %v4521, 5
        %v4524 = vsel %vm4452, %v4519, %v4523
        %v4526 = vshrl.u32 %v560, 16
        %v4528 = vrot.slane %v4526, 4
        %v4529 = vshll.u32 %v560, 16
        %v4531 = vrot.slane %v4529, 5
        %v4532 = vor.u32 %v4528, %v4531
        %v4533 = vrot.slane %v4532, 4
        %v4535 = vshll.u32 %v561, 16
        %v4537 = vrot.slane %v4535, 5
        %v4538 = vsel %vm4452, %v4533, %v4537
        %v4539 = vshrl.u32 %v561, 16
        %v4541 = vrot.slane %v4539, 4
        %v4542 = vor.u32 %v4541, %v4537
        %v4543 = vrot.slane %v4542, 4
        %v4545 = vshll.u32 %v562, 16
        %v4547 = vrot.slane %v4545, 5
        %v4548 = vsel %vm4452, %v4543, %v4547
        %v4550 = vshrl.u32 %v563, 16
        %v4552 = vrot.slane %v4550, 4
        %v4553 = vshll.u32 %v563, 16
        %v4555 = vrot.slane %v4553, 5
        %v4556 = vor.u32 %v4552, %v4555
        %v4557 = vrot.slane %v4556, 4
        %v4559 = vshll.u32 %v564, 16
        %v4561 = vrot.slane %v4559, 5
        %v4562 = vsel %vm4452, %v4557, %v4561
        %v4563 = vshrl.u32 %v564, 16
        %v4565 = vrot.slane %v4563, 4
        %v4566 = vor.u32 %v4565, %v4561
        %v4567 = vrot.slane %v4566, 4
        %v4569 = vshll.u32 %v565, 16
        %v4571 = vrot.slane %v4569, 5
        %v4572 = vsel %vm4452, %v4567, %v4571
        %v4574 = vshrl.u32 %v566, 16
        %v4576 = vrot.slane %v4574, 4
        %v4577 = vshll.u32 %v566, 16
        %v4579 = vrot.slane %v4577, 5
        %v4580 = vor.u32 %v4576, %v4579
        %v4581 = vrot.slane %v4580, 4
        %v4583 = vshll.u32 %v567, 16
        %v4585 = vrot.slane %v4583, 5
        %v4586 = vsel %vm4452, %v4581, %v4585
        %v4587 = vshrl.u32 %v567, 16
        %v4589 = vrot.slane %v4587, 4
        %v4590 = vor.u32 %v4589, %v4585
        %v4591 = vrot.slane %v4590, 4
        %v4593 = vshll.u32 %v568, 16
        %v4595 = vrot.slane %v4593, 5
        %v4596 = vsel %vm4452, %v4591, %v4595
        %v4598 = vshrl.u32 %v569, 16
        %v4600 = vrot.slane %v4598, 4
        %v4601 = vshll.u32 %v569, 16
        %v4603 = vrot.slane %v4601, 5
        %v4604 = vor.u32 %v4600, %v4603
        %v4605 = vrot.slane %v4604, 4
        %v4607 = vshll.u32 %v570, 16
        %v4609 = vrot.slane %v4607, 5
        %v4610 = vsel %vm4452, %v4605, %v4609
        %v4611 = vshrl.u32 %v570, 16
        %v4613 = vrot.slane %v4611, 4
        %v4614 = vor.u32 %v4613, %v4609
        %v4615 = vrot.slane %v4614, 4
        %v4617 = vshll.u32 %v571, 16
        %v4619 = vrot.slane %v4617, 5
        %v4620 = vsel %vm4452, %v4615, %v4619
        %v4622 = vshrl.u32 %v572, 16
        %v4624 = vrot.slane %v4622, 4
        %v4625 = vshll.u32 %v572, 16
        %v4627 = vrot.slane %v4625, 5
        %v4628 = vor.u32 %v4624, %v4627
        %v4629 = vrot.slane %v4628, 4
        %v4631 = vshll.u32 %v573, 16
        %v4633 = vrot.slane %v4631, 5
        %v4634 = vsel %vm4452, %v4629, %v4633
        %v4635 = vshrl.u32 %v573, 16
        %v4637 = vrot.slane %v4635, 4
        %v4638 = vor.u32 %v4637, %v4633
        %v4639 = vrot.slane %v4638, 4
        %v4641 = vshll.u32 %v574, 16
        %v4643 = vrot.slane %v4641, 5
        %v4644 = vsel %vm4452, %v4639, %v4643
        %v4645 = vld [vmem:[%s9] sm:$0xf]
        %v4646 = vld [vmem:[%s10] sm:$0x1]
        %v4648 = vlaneseq
        %v4649 = vshrl.u32 %v4648, 7
        %v4650 = vsub.s32 0, %v4649
        %v4651 = vrot.slane %v4646, %v4650
        %v4653 = vunpack.c.l.b16 %v4466
        %v4654 = vunpack.c.l.b16 %v4476
        %v4655 = vunpack.c.l.b16 %v4490
        %v4656 = vunpack.c.l.b16 %v4500
        %v4657 = vunpack.c.l.b16 %v4514
        %v4658 = vunpack.c.l.b16 %v4524
        %v4659 = vunpack.c.l.b16 %v4538
        %v4660 = vunpack.c.l.b16 %v4548
        %v4661 = vunpack.c.l.b16 %v4562
        %v4662 = vunpack.c.l.b16 %v4572
        %v4663 = vunpack.c.l.b16 %v4586
        %v4664 = vunpack.c.l.b16 %v4596
        %v4665 = vunpack.c.l.b16 %v4610
        %v4666 = vunpack.c.l.b16 %v4620
        %v4667 = vunpack.c.l.b16 %v4634
        %v4668 = vunpack.c.l.b16 %v4644
        %v4669 = vpack.c.b16 %v4654, %v4653
        %v4670 = vpack.c.b16 %v4656, %v4655
        %v4671 = vpack.c.b16 %v4658, %v4657
        %v4672 = vpack.c.b16 %v4660, %v4659
        %v4673 = vpack.c.b16 %v4662, %v4661
        %v4674 = vpack.c.b16 %v4664, %v4663
        %v4675 = vpack.c.b16 %v4666, %v4665
        %v4676 = vpack.c.b16 %v4668, %v4667
        %v4678 = vsel %vm1790, %v4669, 0
        %v4681 = vsel %vm1790, %v4670, 0
        %v4684 = vsel %vm1790, %v4671, 0
        %v4687 = vsel %vm1790, %v4672, 0
        %v4690 = vsel %vm1790, %v4673, 0
        %v4693 = vsel %vm1790, %v4674, 0
        %v4696 = vsel %vm1790, %v4675, 0
        %v4699 = vsel %vm1790, %v4676, 0
        %v4702 = vsel %vm1827, %v4645, 0
        %4704 = vmatprep.subr.bf16.mxu0 0
        %4705 = vmatpush1.bf16.msra.mxu0 0
        %4706 = vmatprep.subr.bf16.mxu0 0
        %4707 = vmatpush1.bf16.msra.mxu0 0
        %4708 = vmatprep.subr.bf16.mxu0 0
        %4709 = vmatpush1.bf16.msra.mxu0 0
        %4710 = vmatprep.subr.bf16.mxu0 0
        %4711 = vmatpush1.bf16.msra.mxu0 0
        %4712 = vmatprep.subr.bf16.mxu0 0
        %4713 = vmatpush1.bf16.msra.mxu0 0
        %4714 = vmatprep.subr.bf16.mxu0 0
        %4715 = vmatpush1.bf16.msra.mxu0 0
        %4716 = vmatprep.subr.bf16.mxu0 0
        %4717 = vmatpush1.bf16.msra.mxu0 0
        %4718 = vmatprep.subr.bf16.mxu0 0
        %4719 = vmatpush1.bf16.msra.mxu0 %v4702
        %4720 = vmatprep.subr.bf16.mxu0 0
        %4721 = vmatpush2.bf16.msra.mxu0 0
        %4722 = vmatprep.subr.bf16.mxu0 0
        %4723 = vmatpush2.bf16.msra.mxu0 0
        %4724 = vmatprep.subr.bf16.mxu0 0
        %4725 = vmatpush2.bf16.msra.mxu0 0
        %4726 = vmatprep.subr.bf16.mxu0 0
        %4727 = vmatpush2.bf16.msra.mxu0 0
        %4728 = vmatprep.subr.bf16.mxu0 0
        %4729 = vmatpush2.bf16.msra.mxu0 0
        %4730 = vmatprep.subr.bf16.mxu0 0
        %4731 = vmatpush2.bf16.msra.mxu0 0
        %4732 = vmatprep.subr.bf16.mxu0 0
        %4733 = vmatpush2.bf16.msra.mxu0 0
        %4734 = vmatprep.subr.bf16.mxu0 0
        %4735 = vmatpush2.bf16.msra.mxu0 0
        %4736 = vmatprep.mubr.bf16.mxu0 0
        %4737 = vmatmul.mubr.bf16.gmra.mxu0 %v4678
        %v4738 = vpop.f32.mrf.mxu0
        %v4739 = vadd.f32 %v4651, %v4738
        %v4740 = vpop.f32.mrf.mxu0
        %v4741 = vpop.f32.mrf.mxu0
        %v4742 = vadd.f32 %v4651, %v4741
        %v4743 = vpop.f32.mrf.mxu0
        %4744 = vmatprep.mubr.bf16.mxu0 0
        %4745 = vmatmul.mubr.bf16.gmra.mxu0 %v4681
        %v4746 = vpop.f32.mrf.mxu0
        %v4747 = vadd.f32 %v4651, %v4746
        %v4748 = vpop.f32.mrf.mxu0
        %v4749 = vpop.f32.mrf.mxu0
        %v4750 = vadd.f32 %v4651, %v4749
        %v4751 = vpop.f32.mrf.mxu0
        %4752 = vmatprep.mubr.bf16.mxu0 0
        %4753 = vmatmul.mubr.bf16.gmra.mxu0 %v4684
        %v4754 = vpop.f32.mrf.mxu0
        %v4755 = vadd.f32 %v4651, %v4754
        %v4756 = vpop.f32.mrf.mxu0
        %v4757 = vpop.f32.mrf.mxu0
        %v4758 = vadd.f32 %v4651, %v4757
        %v4759 = vpop.f32.mrf.mxu0
        %4760 = vmatprep.mubr.bf16.mxu0 0
        %4761 = vmatmul.mubr.bf16.gmra.mxu0 %v4687
        %v4762 = vpop.f32.mrf.mxu0
        %v4763 = vadd.f32 %v4651, %v4762
        %v4764 = vpop.f32.mrf.mxu0
        %v4765 = vpop.f32.mrf.mxu0
        %v4766 = vadd.f32 %v4651, %v4765
        %v4767 = vpop.f32.mrf.mxu0
        %4768 = vmatprep.mubr.bf16.mxu0 0
        %4769 = vmatmul.mubr.bf16.gmra.mxu0 %v4690
        %v4770 = vpop.f32.mrf.mxu0
        %v4771 = vadd.f32 %v4651, %v4770
        %v4772 = vpop.f32.mrf.mxu0
        %v4773 = vpop.f32.mrf.mxu0
        %v4774 = vadd.f32 %v4651, %v4773
        %v4775 = vpop.f32.mrf.mxu0
        %4776 = vmatprep.mubr.bf16.mxu0 0
        %4777 = vmatmul.mubr.bf16.gmra.mxu0 %v4693
        %v4778 = vpop.f32.mrf.mxu0
        %v4779 = vadd.f32 %v4651, %v4778
        %v4780 = vpop.f32.mrf.mxu0
        %v4781 = vpop.f32.mrf.mxu0
        %v4782 = vadd.f32 %v4651, %v4781
        %v4783 = vpop.f32.mrf.mxu0
        %4784 = vmatprep.mubr.bf16.mxu0 0
        %4785 = vmatmul.mubr.bf16.gmra.mxu0 %v4696
        %v4786 = vpop.f32.mrf.mxu0
        %v4787 = vadd.f32 %v4651, %v4786
        %v4788 = vpop.f32.mrf.mxu0
        %v4789 = vpop.f32.mrf.mxu0
        %v4790 = vadd.f32 %v4651, %v4789
        %v4791 = vpop.f32.mrf.mxu0
        %4792 = vmatprep.mubr.bf16.mxu0 0
        %4793 = vmatmul.mubr.bf16.gmra.mxu0 %v4699
        %v4794 = vpop.f32.mrf.mxu0
        %v4795 = vadd.f32 %v4651, %v4794
        %v4796 = vpop.f32.mrf.mxu0
        %v4797 = vpop.f32.mrf.mxu0
        %v4798 = vadd.f32 %v4651, %v4797
        %v4799 = vpop.f32.mrf.mxu0
        %4800 = vdwg.mxu0
        %v4801 = vadd.f32 %v4388, %v4739
        %v4802 = vadd.f32 %v4391, %v4742
        %v4803 = vadd.f32 %v4396, %v4747
        %v4804 = vadd.f32 %v4399, %v4750
        %v4805 = vadd.f32 %v4404, %v4755
        %v4806 = vadd.f32 %v4407, %v4758
        %v4807 = vadd.f32 %v4412, %v4763
        %v4808 = vadd.f32 %v4415, %v4766
        %v4809 = vadd.f32 %v4420, %v4771
        %v4810 = vadd.f32 %v4423, %v4774
        %v4811 = vadd.f32 %v4428, %v4779
        %v4812 = vadd.f32 %v4431, %v4782
        %v4813 = vadd.f32 %v4436, %v4787
        %v4814 = vadd.f32 %v4439, %v4790
        %v4815 = vadd.f32 %v4444, %v4795
        %v4816 = vadd.f32 %v4447, %v4798
        %v4817 = vmax.f32 %v4801, 0.0
        %v4818 = vmax.f32 %v4802, 0.0
        %v4819 = vmax.f32 %v4803, 0.0
        %v4820 = vmax.f32 %v4804, 0.0
        %v4821 = vmax.f32 %v4805, 0.0
        %v4822 = vmax.f32 %v4806, 0.0
        %v4823 = vmax.f32 %v4807, 0.0
        %v4824 = vmax.f32 %v4808, 0.0
        %v4825 = vmax.f32 %v4809, 0.0
        %v4826 = vmax.f32 %v4810, 0.0
        %v4827 = vmax.f32 %v4811, 0.0
        %v4828 = vmax.f32 %v4812, 0.0
        %v4829 = vmax.f32 %v4813, 0.0
        %v4830 = vmax.f32 %v4814, 0.0
        %v4831 = vmax.f32 %v4815, 0.0
        %v4832 = vmax.f32 %v4816, 0.0
        %vm4833 = vcmask 130048
        %4834 = vst.msk [vmem:[%s496] sm:$0xff] %vm4833, %v4817
        %4835 = vst.msk [vmem:[%s496 + $0x8] sm:$0xff] %vm4833, %v4818
        %4836 = vst.msk [vmem:[%s496 + $0x10] sm:$0xff] %vm4833, %v4819
        %4837 = vst.msk [vmem:[%s496 + $0x18] sm:$0xff] %vm4833, %v4820
        %4838 = vst.msk [vmem:[%s496 + $0x20] sm:$0xff] %vm4833, %v4821
        %4839 = vst.msk [vmem:[%s496 + $0x28] sm:$0xff] %vm4833, %v4822
        %4840 = vst.msk [vmem:[%s496 + $0x30] sm:$0xff] %vm4833, %v4823
        %4841 = vst.msk [vmem:[%s496 + $0x38] sm:$0xff] %vm4833, %v4824
        %4842 = vst.msk [vmem:[%s496 + $0x40] sm:$0xff] %vm4833, %v4825
        %4843 = vst.msk [vmem:[%s496 + $0x48] sm:$0xff] %vm4833, %v4826
        %4844 = vst.msk [vmem:[%s496 + $0x50] sm:$0xff] %vm4833, %v4827
        %4845 = vst.msk [vmem:[%s496 + $0x58] sm:$0xff] %vm4833, %v4828
        %4846 = vst.msk [vmem:[%s496 + $0x60] sm:$0xff] %vm4833, %v4829
        %4847 = vst.msk [vmem:[%s496 + $0x68] sm:$0xff] %vm4833, %v4830
        %4848 = vst.msk [vmem:[%s496 + $0x70] sm:$0xff] %vm4833, %v4831
        %4849 = vst.msk [vmem:[%s496 + $0x78] sm:$0xff] %vm4833, %v4832
        %s4850 = sand.u32 %s309, 1
        %s4851 = scalar_lea.sflag [#allocation3], %s4850
        %s4852 = sand.u32 %s309, 1
        %s4853 = smul.addr %s4852, 128
        %s4854 = scalar_lea.vmem [#allocation2], %s4853
        // Predicated region
        $region65: #{tpu_custom_call.1} parent=63 // pred_check
          %p4855 = pneg %p319
        $region66: #{tpu_custom_call.1} parent=63 // pred_check_branch
          %4857 = sbr.rel (%p4855) target = $region68
        $region67: #{tpu_custom_call.1} parent=63 // pred_region
          %s4858 = smul.u32 8, %s30
          %s4860 = ssub.s32 2048, 2048
          %4861 = vsyncadd %s4851, %s4860
          %s4862 = smul.addr %s4858, 2
          %s4863 = smul.addr %s29, 32
          %s4864 = sadd.s32 %s4862, %s4863
          %s4865 = smul.addr %s4864, 128
          %s4866 = scalar_lea.hbm %s11, %s4865
          %s4867 = sshll.u32 %s4854, 4
          %s4868 = int_to_ptr.vmem [resolvable:$true] %s4867
          %4873 = dma.vmem_to_hbm [thread:$0]  %s4868, 2048, %s4866, %s4851, 128, 128, 8
        $region68: #{tpu_custom_call.1} parent=63 // pred_fallthru
          _
      $region64: #{tpu_custom_call.1} parent=5 // pred_fallthru
        _
      %p4874 = scmp.le.s32.totalorder 2, %s20
      // Predicated region
      $region69: #{tpu_custom_call.1} parent=5 // pred_check
        %p4875 = pneg %p4874
      $region70: #{tpu_custom_call.1} parent=5 // pred_check_branch
        %4877 = sbr.rel (%p4875) target = $region72
      $region71: #{tpu_custom_call.1} parent=5 // pred_region
        %s4878 = ssub.s32 %s20, 2
        // Predicated region
        $region73: #{tpu_custom_call.1} parent=71 // pred_check
          %p4879 = pneg %p325
        $region74: #{tpu_custom_call.1} parent=71 // pred_check_branch
          %4881 = sbr.rel (%p4879) target = $region76
        $region75: #{tpu_custom_call.1} parent=71 // pred_region
          %s4882 = sand.u32 %s310, 1
          %s4883 = scalar_lea.sflag [#allocation3], %s4882
          %s4884 = sand.u32 %s310, 1
          %s4885 = smul.addr %s4884, 128
          %s4886 = scalar_lea.vmem [#allocation2], %s4885
          %4887 = dma.done %s4883, 2048
        $region76: #{tpu_custom_call.1} parent=71 // pred_fallthru
          _
      $region72: #{tpu_custom_call.1} parent=5 // pred_fallthru
        _
    $region6: #{tpu_custom_call.1} parent=1 // loop_footer
      %s24 = sadd.s32 1, %s20
    $region7: #{tpu_custom_call.1} parent=1 // loop_footer_branch
      %19 = sbr.rel target = $region3
    $region8: #{tpu_custom_call.1} parent=1 // loop_exit
      _
    %4888 = vsyncpa [#allocation3], 1
    %s4889 = scalar_lea.sflag [#allocation3], 1
    %4890 = vsyncpa %s4889, 1

</llo_original>
